<compile_context>
chip_gen: v6e
topology: v6e:2x2x1
jax: 0.10.0
libtpu: 0.0.40
codegen_flags: <defaults>
</compile_context>

<pallas_src>
import functools
import inspect

import jax
import jax.numpy as jnp
import numpy as np
from jax.experimental import pallas as pl
from jax.experimental.pallas import tpu as pltpu


# ---------------------------------------------------------------------------
# Kernel
# ---------------------------------------------------------------------------
def _layernorm_f32(x, gamma, beta, eps=1e-5):
    """LayerNorm over the last axis, computed and returned in float32."""
    xf = x.astype(jnp.float32)
    mu = jnp.mean(xf, axis=-1, keepdims=True)
    xc = xf - mu
    var = jnp.mean(xc * xc, axis=-1, keepdims=True)
    y = xc * jax.lax.rsqrt(var + eps)
    return y * gamma.astype(jnp.float32) + beta.astype(jnp.float32)


def _rab_kernel(n_head, s_real,
                x_ref,
                ln1_g_ref, ln1_b_ref,
                wqkv_ref, bqkv_ref,          # (D, 3D) bf16 (q-scale folded), (1, 3D) f32
                wo_ref, bo_ref,              # (D, D)  bf16 (pre-transposed),  (1, D)  f32
                ln2_g_ref, ln2_b_ref,
                wfc_ref, bfc_ref,            # (D, 4D) bf16,                   (1, 4D) f32
                wproj_ref, bproj_ref,        # (4D, D) bf16,                   (1, D)  f32
                out_ref,
                attn_sc):                    # (S, D) f32 VMEM scratch
    x = x_ref[0]                             # (S_pad, D) f32
    S, D = x.shape
    Dh = D // n_head

    # ---------------- attention branch ----------------
    h = _layernorm_f32(x, ln1_g_ref[...], ln1_b_ref[...])               # f32 (S, D)

    # single wide in-projection: bf16 x bf16 -> f32 accumulation (MXU)
    qkv = jnp.dot(h.astype(jnp.bfloat16), wqkv_ref[...],
                  preferred_element_type=jnp.float32) + bqkv_ref[...]   # (S, 3D) f32

    # key-padding mask (only traced if S was actually padded); hoisted out of
    # the head loop so the broadcast is materialized once.
    kmask = None
    if s_real < S:
        kmask = jax.lax.broadcasted_iota(jnp.int32, (1, S), 1) < s_real

    for head in range(n_head):
        off = head * Dh
        # 1/sqrt(Dh) is already folded into the q rows of wqkv / bqkv.
        q = qkv[:, off:off + Dh].astype(jnp.bfloat16)                   # (S, Dh)
        k = qkv[:, D + off:D + off + Dh].astype(jnp.bfloat16)
        v = qkv[:, 2 * D + off:2 * D + off + Dh].astype(jnp.bfloat16)

        # scores: contract the last dim of both operands (no k.T relayout)
        s = jax.lax.dot_general(q, k, (((1,), (1,)), ((), ())),
                                preferred_element_type=jnp.float32)     # (S, S) f32
        if kmask is not None:
            s = jnp.where(kmask, s, jnp.float32(-1e30))
        s = s - jnp.max(s, axis=-1, keepdims=True)
        p = jnp.exp(s)
        p = p * pl.reciprocal(jnp.sum(p, axis=-1, keepdims=True), approx=True)

        o = jnp.dot(p.astype(jnp.bfloat16), v,
                    preferred_element_type=jnp.float32)                 # (S, Dh) f32
        # write this head's output straight into its lane slice of the scratch
        attn_sc[:, off:off + Dh] = o

    # single wide out-projection + residual
    attn = jnp.dot(attn_sc[...].astype(jnp.bfloat16), wo_ref[...],
                   preferred_element_type=jnp.float32) + bo_ref[...]
    x = x + attn

    # ---------------- MLP branch ----------------
    h2 = _layernorm_f32(x, ln2_g_ref[...], ln2_b_ref[...])
    fc = jnp.dot(h2.astype(jnp.bfloat16), wfc_ref[...],
                 preferred_element_type=jnp.float32) + bfc_ref[...]     # (S, 4D) f32
    fc = fc * jax.nn.sigmoid(1.702 * fc)                                # QuickGELU (f32)
    proj = jnp.dot(fc.astype(jnp.bfloat16), wproj_ref[...],
                   preferred_element_type=jnp.float32) + bproj_ref[...]
    x = x + proj

    out_ref[...] = x[None].astype(out_ref.dtype)


# ---------------------------------------------------------------------------
# Wrapper helpers
# ---------------------------------------------------------------------------
def _supports_single_buffering():
    try:
        return (hasattr(pl, "Buffered")
                and "pipeline_mode" in inspect.signature(pl.BlockSpec).parameters)
    except (TypeError, ValueError):
        return False


def _vmem_limit_bytes():
    # Raise the scoped-VMEM limit above the 16/32 MiB v5e/v6e defaults so
    # full-size weights stay resident, but clamp below physical capacity so the
    # same request is valid on v7x (64 MiB physical).
    try:
        cap = int(pltpu.get_tpu_info().vmem_capacity_bytes)
    except Exception:
        cap = 64 * 1024 * 1024
    return int(min(100 * 1024 * 1024, (cap * 3) // 4))


def _prepare_params(params, n_head):
    """Pre-transpose weights, fold the query scale, cast weights to bf16."""
    (ln1_g, ln1_b, wqkv, bqkv, wo, bo,
     ln2_g, ln2_b, wfc, bfc, wproj, bproj) = params
    D = wo.shape[0]
    Dh = D // n_head
    scale = 1.0 / float(np.sqrt(Dh))

    f32, bf16 = jnp.float32, jnp.bfloat16

    # Fold 1/sqrt(Dh) into the q columns of the (pre-transposed) in-projection.
    col_scale = jnp.concatenate(
        [jnp.full((1, D), scale, f32), jnp.ones((1, 2 * D), f32)], axis=1)
    wqkv_t = (jnp.transpose(wqkv).astype(f32) * col_scale).astype(bf16)   # (D, 3D)
    bqkv_s = bqkv.astype(f32).reshape(1, 3 * D) * col_scale               # (1, 3D)

    return (
        ln1_g.astype(f32).reshape(1, D), ln1_b.astype(f32).reshape(1, D),
        wqkv_t, bqkv_s,
        jnp.transpose(wo).astype(bf16), bo.astype(f32).reshape(1, D),
        ln2_g.astype(f32).reshape(1, D), ln2_b.astype(f32).reshape(1, D),
        jnp.transpose(wfc).astype(bf16), bfc.astype(f32).reshape(1, 4 * D),
        jnp.transpose(wproj).astype(bf16), bproj.astype(f32).reshape(1, D),
    )


def _run_pallas(x, kparams, n_head, s_real, single_buffer):
    B, S, D = x.shape

    def const_spec(arr):
        nd = arr.ndim
        imap = lambda b, _nd=nd: (0,) * _nd
        if single_buffer:
            # Constant-index blocks gain nothing from double-buffering; a
            # single resident copy halves weight VMEM footprint (v7x critical).
            return pl.BlockSpec(arr.shape, imap, pipeline_mode=pl.Buffered(1))
        return pl.BlockSpec(arr.shape, imap)

    in_specs = [pl.BlockSpec((1, S, D), lambda b: (b, 0, 0))]
    in_specs += [const_spec(p) for p in kparams]

    return pl.pallas_call(
        functools.partial(_rab_kernel, n_head, s_real),
        out_shape=jax.ShapeDtypeStruct((B, S, D), x.dtype),
        grid=(B,),
        in_specs=in_specs,
        out_specs=pl.BlockSpec((1, S, D), lambda b: (b, 0, 0)),
        scratch_shapes=[pltpu.VMEM((S, D), jnp.float32)],
        compiler_params=pltpu.CompilerParams(
            dimension_semantics=("parallel",),
            vmem_limit_bytes=_vmem_limit_bytes()),
    )(x, *kparams)


def residual_attention_block(x_sbd, params, n_head):
    """x_sbd: (seq, batch, d_model) — PyTorch nn.MultiheadAttention layout."""
    x = jnp.transpose(x_sbd, (1, 0, 2))      # (B, S, D)
    B, S, D = x.shape

    # pad the (sublane) sequence dim to a multiple of 8 (CLIP S=197/257 is not)
    s_pad = ((S + 7) // 8) * 8
    if s_pad != S:
        x = jnp.pad(x, ((0, 0), (0, s_pad - S), (0, 0)))

    kparams = _prepare_params(params, n_head)

    if _supports_single_buffering():
        try:
            out = _run_pallas(x, kparams, n_head, S, single_buffer=True)
        except Exception:
            # Graceful fallback if this jax build rejects Buffered(1) specs.
            out = _run_pallas(x, kparams, n_head, S, single_buffer=False)
    else:
        out = _run_pallas(x, kparams, n_head, S, single_buffer=False)

    if s_pad != S:
        out = out[:, :S, :]
    return jnp.transpose(out, (1, 0, 2))     # back to (seq, batch, d_model)


# ---------------------------------------------------------------------------
# Pure-JAX f32 reference (mirrors torch semantics) for a correctness check
# ---------------------------------------------------------------------------
def reference(x_sbd, params, n_head):
    (ln1_g, ln1_b, wqkv, bqkv, wo, bo,
     ln2_g, ln2_b, wfc, bfc, wproj, bproj) = params
    x = jnp.transpose(x_sbd, (1, 0, 2)).astype(jnp.float32)  # (B, S, D)
    B, S, D = x.shape
    Dh = D // n_head

    def ln(v, g, b, eps=1e-5):
        mu = jnp.mean(v, axis=-1, keepdims=True)
        var = jnp.mean((v - mu) ** 2, axis=-1, keepdims=True)
        return (v - mu) / jnp.sqrt(var + eps) * g + b

    h = ln(x, ln1_g, ln1_b)
    qkv = jnp.einsum('bsd,ed->bse', h, wqkv) + bqkv
    q, k, v = jnp.split(qkv, 3, axis=-1)
    q = q.reshape(B, S, n_head, Dh) / np.sqrt(Dh)
    k = k.reshape(B, S, n_head, Dh)
    v = v.reshape(B, S, n_head, Dh)
    s = jnp.einsum('bqhd,bkhd->bhqk', q, k)
    p = jax.nn.softmax(s, axis=-1)
    o = jnp.einsum('bhqk,bkhd->bqhd', p, v).reshape(B, S, D)
    o = jnp.einsum('bsd,ed->bse', o, wo) + bo
    x = x + o

    h2 = ln(x, ln2_g, ln2_b)
    fc = jnp.einsum('bsd,ed->bse', h2, wfc) + bfc
    fc = fc * jax.nn.sigmoid(1.702 * fc)
    pr = jnp.einsum('bse,de->bsd', fc, wproj) + bproj
    x = x + pr
    return jnp.transpose(x, (1, 0, 2))


# ---------------------------------------------------------------------------
if __name__ == "__main__":
    d_model, n_head, seq, batch = 32, 4, 8, 2

    key = jax.random.PRNGKey(0)
    ks = jax.random.split(key, 12)

    def nrm(k, shape, scale=0.05):
        return (scale * jax.random.normal(k, shape)).astype(jnp.float32)

    params = (
        (1.0 + nrm(ks[0], (1, d_model))),               # ln_1 gamma
        nrm(ks[1], (1, d_model)),                       # ln_1 beta
        nrm(ks[2], (3 * d_model, d_model)),             # attn.in_proj_weight
        nrm(ks[3], (1, 3 * d_model)),                   # attn.in_proj_bias
        nrm(ks[4], (d_model, d_model)),                 # attn.out_proj.weight
        nrm(ks[5], (1, d_model)),                       # attn.out_proj.bias
        (1.0 + nrm(ks[6], (1, d_model))),               # ln_2 gamma
        nrm(ks[7], (1, d_model)),                       # ln_2 beta
        nrm(ks[8], (4 * d_model, d_model)),             # mlp.c_fc.weight
        nrm(ks[9], (1, 4 * d_model)),                   # mlp.c_fc.bias
        nrm(ks[10], (d_model, 4 * d_model)),            # mlp.c_proj.weight
        nrm(ks[11], (1, d_model)),                      # mlp.c_proj.bias
    )

    x = jax.random.normal(jax.random.PRNGKey(42),
                          (seq, batch, d_model), dtype=jnp.float32)

    out = residual_attention_block(x, params, n_head)
    out = jax.block_until_ready(out)

    ref = reference(x, params, n_head)
    # tolerance loosened vs. the pure-f32 version: the kernel now runs its
    # projection matmuls in bf16 (f32 accumulation) and uses an approximate
    # EUP reciprocal in the softmax.
    np.testing.assert_allclose(np.asarray(out), np.asarray(ref),
                               rtol=3e-2, atol=3e-2)

    print("KERNEL_OK")
</pallas_src>

<mosaic_0001>
module attributes {stable_mosaic.version = 11 : i64} {
  func.func @_rab_kernel(%arg0: i32, %arg1: memref<1x8x32xf32, #tpu.memory_space<vmem>>, %arg2: memref<1x32xf32, #tpu.memory_space<vmem>>, %arg3: memref<1x32xf32, #tpu.memory_space<vmem>>, %arg4: memref<32x96xbf16, #tpu.memory_space<vmem>>, %arg5: memref<1x96xf32, #tpu.memory_space<vmem>>, %arg6: memref<32x32xbf16, #tpu.memory_space<vmem>>, %arg7: memref<1x32xf32, #tpu.memory_space<vmem>>, %arg8: memref<1x32xf32, #tpu.memory_space<vmem>>, %arg9: memref<1x32xf32, #tpu.memory_space<vmem>>, %arg10: memref<32x128xbf16, #tpu.memory_space<vmem>>, %arg11: memref<1x128xf32, #tpu.memory_space<vmem>>, %arg12: memref<128x32xbf16, #tpu.memory_space<vmem>>, %arg13: memref<1x32xf32, #tpu.memory_space<vmem>>, %arg14: memref<1x8x32xf32, #tpu.memory_space<vmem>>, %arg15: memref<8x32xf32, #tpu.memory_space<vmem>>) attributes {dimension_semantics = [#tpu.dimension_semantics<parallel>], iteration_bounds = array<i64: 2>, scalar_prefetch = 0 : i64, scratch_operands = 1 : i64, tpu.core_type = #tpu.core_type<tc>, window_params = [{transform_indices = @transform_0, window_bounds = array<i64: 1, 8, 32>}, {pipeline_mode = #tpu.pipeline_mode<synchronous>, transform_indices = @transform_1, window_bounds = array<i64: 1, 32>}, {pipeline_mode = #tpu.pipeline_mode<synchronous>, transform_indices = @transform_2, window_bounds = array<i64: 1, 32>}, {pipeline_mode = #tpu.pipeline_mode<synchronous>, transform_indices = @transform_3, window_bounds = array<i64: 32, 96>}, {pipeline_mode = #tpu.pipeline_mode<synchronous>, transform_indices = @transform_4, window_bounds = array<i64: 1, 96>}, {pipeline_mode = #tpu.pipeline_mode<synchronous>, transform_indices = @transform_5, window_bounds = array<i64: 32, 32>}, {pipeline_mode = #tpu.pipeline_mode<synchronous>, transform_indices = @transform_6, window_bounds = array<i64: 1, 32>}, {pipeline_mode = #tpu.pipeline_mode<synchronous>, transform_indices = @transform_7, window_bounds = array<i64: 1, 32>}, {pipeline_mode = #tpu.pipeline_mode<synchronous>, transform_indices = @transform_8, window_bounds = array<i64: 1, 32>}, {pipeline_mode = #tpu.pipeline_mode<synchronous>, transform_indices = @transform_9, window_bounds = array<i64: 32, 128>}, {pipeline_mode = #tpu.pipeline_mode<synchronous>, transform_indices = @transform_10, window_bounds = array<i64: 1, 128>}, {pipeline_mode = #tpu.pipeline_mode<synchronous>, transform_indices = @transform_11, window_bounds = array<i64: 128, 32>}, {pipeline_mode = #tpu.pipeline_mode<synchronous>, transform_indices = @transform_12, window_bounds = array<i64: 1, 32>}, {transform_indices = @transform_13, window_bounds = array<i64: 1, 8, 32>}]} {
    %c0 = arith.constant 0 : index
    %c0_0 = arith.constant 0 : index
    %c0_1 = arith.constant 0 : index
    %0 = vector.load %arg1[%c0, %c0_0, %c0_1] : memref<1x8x32xf32, #tpu.memory_space<vmem>>, vector<1x8x32xf32>
    %1 = vector.shape_cast %0 : vector<1x8x32xf32> to vector<8x32xf32>
    %c0_2 = arith.constant 0 : index
    %c0_3 = arith.constant 0 : index
    %2 = vector.load %arg2[%c0_2, %c0_3] : memref<1x32xf32, #tpu.memory_space<vmem>>, vector<1x32xf32>
    %c0_4 = arith.constant 0 : index
    %c0_5 = arith.constant 0 : index
    %3 = vector.load %arg3[%c0_4, %c0_5] : memref<1x32xf32, #tpu.memory_space<vmem>>, vector<1x32xf32>
    %cst = arith.constant dense<0.000000e+00> : vector<8xf32>
    %4 = vector.multi_reduction <add>, %1, %cst [1] : vector<8x32xf32> to vector<8xf32>
    %5 = vector.shape_cast %4 : vector<8xf32> to vector<8x1xf32>
    %cst_6 = arith.constant 3.200000e+01 : f32
    %6 = vector.broadcast %cst_6 : f32 to vector<8x1xf32>
    %7 = arith.divf %5, %6 : vector<8x1xf32>
    %8 = vector.broadcast %7 : vector<8x1xf32> to vector<8x32xf32>
    %9 = arith.subf %1, %8 : vector<8x32xf32>
    %10 = arith.mulf %9, %9 : vector<8x32xf32>
    %cst_7 = arith.constant dense<0.000000e+00> : vector<8xf32>
    %11 = vector.multi_reduction <add>, %10, %cst_7 [1] : vector<8x32xf32> to vector<8xf32>
    %12 = vector.shape_cast %11 : vector<8xf32> to vector<8x1xf32>
    %cst_8 = arith.constant 3.200000e+01 : f32
    %13 = vector.broadcast %cst_8 : f32 to vector<8x1xf32>
    %14 = arith.divf %12, %13 : vector<8x1xf32>
    %cst_9 = arith.constant 9.99999974E-6 : f32
    %15 = vector.broadcast %cst_9 : f32 to vector<8x1xf32>
    %16 = arith.addf %14, %15 : vector<8x1xf32>
    %17 = math.rsqrt %16 : vector<8x1xf32>
    %18 = vector.broadcast %17 : vector<8x1xf32> to vector<8x32xf32>
    %19 = arith.mulf %9, %18 : vector<8x32xf32>
    %20 = vector.broadcast %2 : vector<1x32xf32> to vector<8x32xf32>
    %21 = arith.mulf %19, %20 : vector<8x32xf32>
    %22 = vector.broadcast %3 : vector<1x32xf32> to vector<8x32xf32>
    %23 = arith.addf %21, %22 : vector<8x32xf32>
    %24 = arith.truncf %23 : vector<8x32xf32> to vector<8x32xbf16>
    %c0_10 = arith.constant 0 : index
    %c0_11 = arith.constant 0 : index
    %25 = vector.load %arg4[%c0_10, %c0_11] : memref<32x96xbf16, #tpu.memory_space<vmem>>, vector<32x96xbf16>
    %cst_12 = arith.constant dense<0.000000e+00> : vector<8x96xf32>
    %26 = tpu.matmul %24, %25, %cst_12 {dimension_numbers = #tpu.dot_dimension_numbers<[1], [0], [0], [1], [0, 0, 1, 1], [], []>} : vector<8x32xbf16>, vector<32x96xbf16>, vector<8x96xf32> -> vector<8x96xf32>
    %c0_13 = arith.constant 0 : index
    %c0_14 = arith.constant 0 : index
    %27 = vector.load %arg5[%c0_13, %c0_14] : memref<1x96xf32, #tpu.memory_space<vmem>>, vector<1x96xf32>
    %28 = vector.broadcast %27 : vector<1x96xf32> to vector<8x96xf32>
    %29 = arith.addf %26, %28 : vector<8x96xf32>
    %30 = vector.extract_strided_slice %29 {offsets = [0, 0], sizes = [8, 8], strides = [1, 1]} : vector<8x96xf32> to vector<8x8xf32>
    %31 = arith.truncf %30 : vector<8x8xf32> to vector<8x8xbf16>
    %32 = vector.extract_strided_slice %29 {offsets = [0, 32], sizes = [8, 8], strides = [1, 1]} : vector<8x96xf32> to vector<8x8xf32>
    %33 = arith.truncf %32 : vector<8x8xf32> to vector<8x8xbf16>
    %34 = vector.extract_strided_slice %29 {offsets = [0, 64], sizes = [8, 8], strides = [1, 1]} : vector<8x96xf32> to vector<8x8xf32>
    %35 = arith.truncf %34 : vector<8x8xf32> to vector<8x8xbf16>
    %cst_15 = arith.constant dense<0.000000e+00> : vector<8x8xf32>
    %36 = tpu.matmul %31, %33, %cst_15 {dimension_numbers = #tpu.dot_dimension_numbers<[1], [1], [0], [0], [0, 0, 1, 0], [], []>} : vector<8x8xbf16>, vector<8x8xbf16>, vector<8x8xf32> -> vector<8x8xf32>
    %cst_16 = arith.constant dense<0xFF800000> : vector<8xf32>
    %37 = vector.multi_reduction <maximumf>, %36, %cst_16 [1] : vector<8x8xf32> to vector<8xf32>
    %38 = vector.shape_cast %37 : vector<8xf32> to vector<8x1xf32>
    %39 = vector.broadcast %38 : vector<8x1xf32> to vector<8x8xf32>
    %40 = arith.subf %36, %39 : vector<8x8xf32>
    %41 = math.exp %40 : vector<8x8xf32>
    %cst_17 = arith.constant dense<0.000000e+00> : vector<8xf32>
    %42 = vector.multi_reduction <add>, %41, %cst_17 [1] : vector<8x8xf32> to vector<8xf32>
    %43 = vector.shape_cast %42 : vector<8xf32> to vector<8x1xf32>
    %44 = tpu.reciprocal %43 {approx = true} : vector<8x1xf32> -> vector<8x1xf32>
    %45 = vector.broadcast %44 : vector<8x1xf32> to vector<8x8xf32>
    %46 = arith.mulf %41, %45 : vector<8x8xf32>
    %47 = arith.truncf %46 : vector<8x8xf32> to vector<8x8xbf16>
    %cst_18 = arith.constant dense<0.000000e+00> : vector<8x8xf32>
    %48 = tpu.matmul %47, %35, %cst_18 {dimension_numbers = #tpu.dot_dimension_numbers<[1], [0], [0], [1], [0, 0, 1, 1], [], []>} : vector<8x8xbf16>, vector<8x8xbf16>, vector<8x8xf32> -> vector<8x8xf32>
    %c0_19 = arith.constant 0 : index
    %c0_20 = arith.constant 0 : index
    %49 = vector.load %arg15[%c0_19, %c0_20] : memref<8x32xf32, #tpu.memory_space<vmem>>, vector<8x8xf32>
    tpu.vector_store %arg15[%c0_19, %c0_20], %48 {strides = array<i32>} : memref<8x32xf32, #tpu.memory_space<vmem>>, vector<8x8xf32>,
    %50 = vector.extract_strided_slice %29 {offsets = [0, 8], sizes = [8, 8], strides = [1, 1]} : vector<8x96xf32> to vector<8x8xf32>
    %51 = arith.truncf %50 : vector<8x8xf32> to vector<8x8xbf16>
    %52 = vector.extract_strided_slice %29 {offsets = [0, 40], sizes = [8, 8], strides = [1, 1]} : vector<8x96xf32> to vector<8x8xf32>
    %53 = arith.truncf %52 : vector<8x8xf32> to vector<8x8xbf16>
    %54 = vector.extract_strided_slice %29 {offsets = [0, 72], sizes = [8, 8], strides = [1, 1]} : vector<8x96xf32> to vector<8x8xf32>
    %55 = arith.truncf %54 : vector<8x8xf32> to vector<8x8xbf16>
    %cst_21 = arith.constant dense<0.000000e+00> : vector<8x8xf32>
    %56 = tpu.matmul %51, %53, %cst_21 {dimension_numbers = #tpu.dot_dimension_numbers<[1], [1], [0], [0], [0, 0, 1, 0], [], []>} : vector<8x8xbf16>, vector<8x8xbf16>, vector<8x8xf32> -> vector<8x8xf32>
    %cst_22 = arith.constant dense<0xFF800000> : vector<8xf32>
    %57 = vector.multi_reduction <maximumf>, %56, %cst_22 [1] : vector<8x8xf32> to vector<8xf32>
    %58 = vector.shape_cast %57 : vector<8xf32> to vector<8x1xf32>
    %59 = vector.broadcast %58 : vector<8x1xf32> to vector<8x8xf32>
    %60 = arith.subf %56, %59 : vector<8x8xf32>
    %61 = math.exp %60 : vector<8x8xf32>
    %cst_23 = arith.constant dense<0.000000e+00> : vector<8xf32>
    %62 = vector.multi_reduction <add>, %61, %cst_23 [1] : vector<8x8xf32> to vector<8xf32>
    %63 = vector.shape_cast %62 : vector<8xf32> to vector<8x1xf32>
    %64 = tpu.reciprocal %63 {approx = true} : vector<8x1xf32> -> vector<8x1xf32>
    %65 = vector.broadcast %64 : vector<8x1xf32> to vector<8x8xf32>
    %66 = arith.mulf %61, %65 : vector<8x8xf32>
    %67 = arith.truncf %66 : vector<8x8xf32> to vector<8x8xbf16>
    %cst_24 = arith.constant dense<0.000000e+00> : vector<8x8xf32>
    %68 = tpu.matmul %67, %55, %cst_24 {dimension_numbers = #tpu.dot_dimension_numbers<[1], [0], [0], [1], [0, 0, 1, 1], [], []>} : vector<8x8xbf16>, vector<8x8xbf16>, vector<8x8xf32> -> vector<8x8xf32>
    %c0_25 = arith.constant 0 : index
    %c8 = arith.constant 8 : index
    %69 = vector.load %arg15[%c0_25, %c8] : memref<8x32xf32, #tpu.memory_space<vmem>>, vector<8x8xf32>
    tpu.vector_store %arg15[%c0_25, %c8], %68 {strides = array<i32>} : memref<8x32xf32, #tpu.memory_space<vmem>>, vector<8x8xf32>,
    %70 = vector.extract_strided_slice %29 {offsets = [0, 16], sizes = [8, 8], strides = [1, 1]} : vector<8x96xf32> to vector<8x8xf32>
    %71 = arith.truncf %70 : vector<8x8xf32> to vector<8x8xbf16>
    %72 = vector.extract_strided_slice %29 {offsets = [0, 48], sizes = [8, 8], strides = [1, 1]} : vector<8x96xf32> to vector<8x8xf32>
    %73 = arith.truncf %72 : vector<8x8xf32> to vector<8x8xbf16>
    %74 = vector.extract_strided_slice %29 {offsets = [0, 80], sizes = [8, 8], strides = [1, 1]} : vector<8x96xf32> to vector<8x8xf32>
    %75 = arith.truncf %74 : vector<8x8xf32> to vector<8x8xbf16>
    %cst_26 = arith.constant dense<0.000000e+00> : vector<8x8xf32>
    %76 = tpu.matmul %71, %73, %cst_26 {dimension_numbers = #tpu.dot_dimension_numbers<[1], [1], [0], [0], [0, 0, 1, 0], [], []>} : vector<8x8xbf16>, vector<8x8xbf16>, vector<8x8xf32> -> vector<8x8xf32>
    %cst_27 = arith.constant dense<0xFF800000> : vector<8xf32>
    %77 = vector.multi_reduction <maximumf>, %76, %cst_27 [1] : vector<8x8xf32> to vector<8xf32>
    %78 = vector.shape_cast %77 : vector<8xf32> to vector<8x1xf32>
    %79 = vector.broadcast %78 : vector<8x1xf32> to vector<8x8xf32>
    %80 = arith.subf %76, %79 : vector<8x8xf32>
    %81 = math.exp %80 : vector<8x8xf32>
    %cst_28 = arith.constant dense<0.000000e+00> : vector<8xf32>
    %82 = vector.multi_reduction <add>, %81, %cst_28 [1] : vector<8x8xf32> to vector<8xf32>
    %83 = vector.shape_cast %82 : vector<8xf32> to vector<8x1xf32>
    %84 = tpu.reciprocal %83 {approx = true} : vector<8x1xf32> -> vector<8x1xf32>
    %85 = vector.broadcast %84 : vector<8x1xf32> to vector<8x8xf32>
    %86 = arith.mulf %81, %85 : vector<8x8xf32>
    %87 = arith.truncf %86 : vector<8x8xf32> to vector<8x8xbf16>
    %cst_29 = arith.constant dense<0.000000e+00> : vector<8x8xf32>
    %88 = tpu.matmul %87, %75, %cst_29 {dimension_numbers = #tpu.dot_dimension_numbers<[1], [0], [0], [1], [0, 0, 1, 1], [], []>} : vector<8x8xbf16>, vector<8x8xbf16>, vector<8x8xf32> -> vector<8x8xf32>
    %c0_30 = arith.constant 0 : index
    %c16 = arith.constant 16 : index
    %89 = vector.load %arg15[%c0_30, %c16] : memref<8x32xf32, #tpu.memory_space<vmem>>, vector<8x8xf32>
    tpu.vector_store %arg15[%c0_30, %c16], %88 {strides = array<i32>} : memref<8x32xf32, #tpu.memory_space<vmem>>, vector<8x8xf32>,
    %90 = vector.extract_strided_slice %29 {offsets = [0, 24], sizes = [8, 8], strides = [1, 1]} : vector<8x96xf32> to vector<8x8xf32>
    %91 = arith.truncf %90 : vector<8x8xf32> to vector<8x8xbf16>
    %92 = vector.extract_strided_slice %29 {offsets = [0, 56], sizes = [8, 8], strides = [1, 1]} : vector<8x96xf32> to vector<8x8xf32>
    %93 = arith.truncf %92 : vector<8x8xf32> to vector<8x8xbf16>
    %94 = vector.extract_strided_slice %29 {offsets = [0, 88], sizes = [8, 8], strides = [1, 1]} : vector<8x96xf32> to vector<8x8xf32>
    %95 = arith.truncf %94 : vector<8x8xf32> to vector<8x8xbf16>
    %cst_31 = arith.constant dense<0.000000e+00> : vector<8x8xf32>
    %96 = tpu.matmul %91, %93, %cst_31 {dimension_numbers = #tpu.dot_dimension_numbers<[1], [1], [0], [0], [0, 0, 1, 0], [], []>} : vector<8x8xbf16>, vector<8x8xbf16>, vector<8x8xf32> -> vector<8x8xf32>
    %cst_32 = arith.constant dense<0xFF800000> : vector<8xf32>
    %97 = vector.multi_reduction <maximumf>, %96, %cst_32 [1] : vector<8x8xf32> to vector<8xf32>
    %98 = vector.shape_cast %97 : vector<8xf32> to vector<8x1xf32>
    %99 = vector.broadcast %98 : vector<8x1xf32> to vector<8x8xf32>
    %100 = arith.subf %96, %99 : vector<8x8xf32>
    %101 = math.exp %100 : vector<8x8xf32>
    %cst_33 = arith.constant dense<0.000000e+00> : vector<8xf32>
    %102 = vector.multi_reduction <add>, %101, %cst_33 [1] : vector<8x8xf32> to vector<8xf32>
    %103 = vector.shape_cast %102 : vector<8xf32> to vector<8x1xf32>
    %104 = tpu.reciprocal %103 {approx = true} : vector<8x1xf32> -> vector<8x1xf32>
    %105 = vector.broadcast %104 : vector<8x1xf32> to vector<8x8xf32>
    %106 = arith.mulf %101, %105 : vector<8x8xf32>
    %107 = arith.truncf %106 : vector<8x8xf32> to vector<8x8xbf16>
    %cst_34 = arith.constant dense<0.000000e+00> : vector<8x8xf32>
    %108 = tpu.matmul %107, %95, %cst_34 {dimension_numbers = #tpu.dot_dimension_numbers<[1], [0], [0], [1], [0, 0, 1, 1], [], []>} : vector<8x8xbf16>, vector<8x8xbf16>, vector<8x8xf32> -> vector<8x8xf32>
    %c0_35 = arith.constant 0 : index
    %c24 = arith.constant 24 : index
    %109 = vector.load %arg15[%c0_35, %c24] : memref<8x32xf32, #tpu.memory_space<vmem>>, vector<8x8xf32>
    tpu.vector_store %arg15[%c0_35, %c24], %108 {strides = array<i32>} : memref<8x32xf32, #tpu.memory_space<vmem>>, vector<8x8xf32>,
    %c0_36 = arith.constant 0 : index
    %c0_37 = arith.constant 0 : index
    %110 = vector.load %arg15[%c0_36, %c0_37] : memref<8x32xf32, #tpu.memory_space<vmem>>, vector<8x32xf32>
    %111 = arith.truncf %110 : vector<8x32xf32> to vector<8x32xbf16>
    %c0_38 = arith.constant 0 : index
    %c0_39 = arith.constant 0 : index
    %112 = vector.load %arg6[%c0_38, %c0_39] : memref<32x32xbf16, #tpu.memory_space<vmem>>, vector<32x32xbf16>
    %cst_40 = arith.constant dense<0.000000e+00> : vector<8x32xf32>
    %113 = tpu.matmul %111, %112, %cst_40 {dimension_numbers = #tpu.dot_dimension_numbers<[1], [0], [0], [1], [0, 0, 1, 1], [], []>} : vector<8x32xbf16>, vector<32x32xbf16>, vector<8x32xf32> -> vector<8x32xf32>
    %c0_41 = arith.constant 0 : index
    %c0_42 = arith.constant 0 : index
    %114 = vector.load %arg7[%c0_41, %c0_42] : memref<1x32xf32, #tpu.memory_space<vmem>>, vector<1x32xf32>
    %115 = vector.broadcast %114 : vector<1x32xf32> to vector<8x32xf32>
    %116 = arith.addf %113, %115 : vector<8x32xf32>
    %117 = arith.addf %1, %116 : vector<8x32xf32>
    %c0_43 = arith.constant 0 : index
    %c0_44 = arith.constant 0 : index
    %118 = vector.load %arg8[%c0_43, %c0_44] : memref<1x32xf32, #tpu.memory_space<vmem>>, vector<1x32xf32>
    %c0_45 = arith.constant 0 : index
    %c0_46 = arith.constant 0 : index
    %119 = vector.load %arg9[%c0_45, %c0_46] : memref<1x32xf32, #tpu.memory_space<vmem>>, vector<1x32xf32>
    %cst_47 = arith.constant dense<0.000000e+00> : vector<8xf32>
    %120 = vector.multi_reduction <add>, %117, %cst_47 [1] : vector<8x32xf32> to vector<8xf32>
    %121 = vector.shape_cast %120 : vector<8xf32> to vector<8x1xf32>
    %cst_48 = arith.constant 3.200000e+01 : f32
    %122 = vector.broadcast %cst_48 : f32 to vector<8x1xf32>
    %123 = arith.divf %121, %122 : vector<8x1xf32>
    %124 = vector.broadcast %123 : vector<8x1xf32> to vector<8x32xf32>
    %125 = arith.subf %117, %124 : vector<8x32xf32>
    %126 = arith.mulf %125, %125 : vector<8x32xf32>
    %cst_49 = arith.constant dense<0.000000e+00> : vector<8xf32>
    %127 = vector.multi_reduction <add>, %126, %cst_49 [1] : vector<8x32xf32> to vector<8xf32>
    %128 = vector.shape_cast %127 : vector<8xf32> to vector<8x1xf32>
    %cst_50 = arith.constant 3.200000e+01 : f32
    %129 = vector.broadcast %cst_50 : f32 to vector<8x1xf32>
    %130 = arith.divf %128, %129 : vector<8x1xf32>
    %cst_51 = arith.constant 9.99999974E-6 : f32
    %131 = vector.broadcast %cst_51 : f32 to vector<8x1xf32>
    %132 = arith.addf %130, %131 : vector<8x1xf32>
    %133 = math.rsqrt %132 : vector<8x1xf32>
    %134 = vector.broadcast %133 : vector<8x1xf32> to vector<8x32xf32>
    %135 = arith.mulf %125, %134 : vector<8x32xf32>
    %136 = vector.broadcast %118 : vector<1x32xf32> to vector<8x32xf32>
    %137 = arith.mulf %135, %136 : vector<8x32xf32>
    %138 = vector.broadcast %119 : vector<1x32xf32> to vector<8x32xf32>
    %139 = arith.addf %137, %138 : vector<8x32xf32>
    %140 = arith.truncf %139 : vector<8x32xf32> to vector<8x32xbf16>
    %c0_52 = arith.constant 0 : index
    %c0_53 = arith.constant 0 : index
    %141 = vector.load %arg10[%c0_52, %c0_53] : memref<32x128xbf16, #tpu.memory_space<vmem>>, vector<32x128xbf16>
    %cst_54 = arith.constant dense<0.000000e+00> : vector<8x128xf32>
    %142 = tpu.matmul %140, %141, %cst_54 {dimension_numbers = #tpu.dot_dimension_numbers<[1], [0], [0], [1], [0, 0, 1, 1], [], []>} : vector<8x32xbf16>, vector<32x128xbf16>, vector<8x128xf32> -> vector<8x128xf32>
    %c0_55 = arith.constant 0 : index
    %c0_56 = arith.constant 0 : index
    %143 = vector.load %arg11[%c0_55, %c0_56] : memref<1x128xf32, #tpu.memory_space<vmem>>, vector<1x128xf32>
    %144 = vector.broadcast %143 : vector<1x128xf32> to vector<8x128xf32>
    %145 = arith.addf %142, %144 : vector<8x128xf32>
    %cst_57 = arith.constant 1.702000e+00 : f32
    %146 = vector.broadcast %cst_57 : f32 to vector<8x128xf32>
    %147 = arith.mulf %146, %145 : vector<8x128xf32>
    %148 = arith.negf %147 : vector<8x128xf32>
    %149 = math.exp %148 : vector<8x128xf32>
    %cst_58 = arith.constant 1.000000e+00 : f32
    %150 = vector.broadcast %cst_58 : f32 to vector<8x128xf32>
    %151 = arith.addf %150, %149 : vector<8x128xf32>
    %152 = arith.divf %150, %151 : vector<8x128xf32>
    %153 = arith.mulf %145, %152 : vector<8x128xf32>
    %154 = arith.truncf %153 : vector<8x128xf32> to vector<8x128xbf16>
    %c0_59 = arith.constant 0 : index
    %c0_60 = arith.constant 0 : index
    %155 = vector.load %arg12[%c0_59, %c0_60] : memref<128x32xbf16, #tpu.memory_space<vmem>>, vector<128x32xbf16>
    %cst_61 = arith.constant dense<0.000000e+00> : vector<8x32xf32>
    %156 = tpu.matmul %154, %155, %cst_61 {dimension_numbers = #tpu.dot_dimension_numbers<[1], [0], [0], [1], [0, 0, 1, 1], [], []>} : vector<8x128xbf16>, vector<128x32xbf16>, vector<8x32xf32> -> vector<8x32xf32>
    %c0_62 = arith.constant 0 : index
    %c0_63 = arith.constant 0 : index
    %157 = vector.load %arg13[%c0_62, %c0_63] : memref<1x32xf32, #tpu.memory_space<vmem>>, vector<1x32xf32>
    %158 = vector.broadcast %157 : vector<1x32xf32> to vector<8x32xf32>
    %159 = arith.addf %156, %158 : vector<8x32xf32>
    %160 = arith.addf %117, %159 : vector<8x32xf32>
    %161 = vector.shape_cast %160 : vector<8x32xf32> to vector<1x8x32xf32>
    %c0_64 = arith.constant 0 : index
    %c0_65 = arith.constant 0 : index
    %c0_66 = arith.constant 0 : index
    %162 = vector.load %arg14[%c0_64, %c0_65, %c0_66] : memref<1x8x32xf32, #tpu.memory_space<vmem>>, vector<1x8x32xf32>
    tpu.vector_store %arg14[%c0_64, %c0_65, %c0_66], %161 {strides = array<i32>} : memref<1x8x32xf32, #tpu.memory_space<vmem>>, vector<1x8x32xf32>,
    return
  }
  func.func @transform_0(%arg0: i32) -> (i32, i32, i32) {
    %c0_i32 = arith.constant 0 : i32
    %c0_i32_0 = arith.constant 0 : i32
    %c0_i32_1 = arith.constant 0 : i32
    return %arg0, %c0_i32, %c0_i32_0 : i32, i32, i32
  }
  func.func @transform_1(%arg0: i32) -> (i32, i32) {
    %c0_i32 = arith.constant 0 : i32
    %c0_i32_0 = arith.constant 0 : i32
    %c0_i32_1 = arith.constant 0 : i32
    return %c0_i32, %c0_i32_0 : i32, i32
  }
  func.func @transform_2(%arg0: i32) -> (i32, i32) {
    %c0_i32 = arith.constant 0 : i32
    %c0_i32_0 = arith.constant 0 : i32
    %c0_i32_1 = arith.constant 0 : i32
    return %c0_i32, %c0_i32_0 : i32, i32
  }
  func.func @transform_3(%arg0: i32) -> (i32, i32) {
    %c0_i32 = arith.constant 0 : i32
    %c0_i32_0 = arith.constant 0 : i32
    %c0_i32_1 = arith.constant 0 : i32
    return %c0_i32, %c0_i32_0 : i32, i32
  }
  func.func @transform_4(%arg0: i32) -> (i32, i32) {
    %c0_i32 = arith.constant 0 : i32
    %c0_i32_0 = arith.constant 0 : i32
    %c0_i32_1 = arith.constant 0 : i32
    return %c0_i32, %c0_i32_0 : i32, i32
  }
  func.func @transform_5(%arg0: i32) -> (i32, i32) {
    %c0_i32 = arith.constant 0 : i32
    %c0_i32_0 = arith.constant 0 : i32
    %c0_i32_1 = arith.constant 0 : i32
    return %c0_i32, %c0_i32_0 : i32, i32
  }
  func.func @transform_6(%arg0: i32) -> (i32, i32) {
    %c0_i32 = arith.constant 0 : i32
    %c0_i32_0 = arith.constant 0 : i32
    %c0_i32_1 = arith.constant 0 : i32
    return %c0_i32, %c0_i32_0 : i32, i32
  }
  func.func @transform_7(%arg0: i32) -> (i32, i32) {
    %c0_i32 = arith.constant 0 : i32
    %c0_i32_0 = arith.constant 0 : i32
    %c0_i32_1 = arith.constant 0 : i32
    return %c0_i32, %c0_i32_0 : i32, i32
  }
  func.func @transform_8(%arg0: i32) -> (i32, i32) {
    %c0_i32 = arith.constant 0 : i32
    %c0_i32_0 = arith.constant 0 : i32
    %c0_i32_1 = arith.constant 0 : i32
    return %c0_i32, %c0_i32_0 : i32, i32
  }
  func.func @transform_9(%arg0: i32) -> (i32, i32) {
    %c0_i32 = arith.constant 0 : i32
    %c0_i32_0 = arith.constant 0 : i32
    %c0_i32_1 = arith.constant 0 : i32
    return %c0_i32, %c0_i32_0 : i32, i32
  }
  func.func @transform_10(%arg0: i32) -> (i32, i32) {
    %c0_i32 = arith.constant 0 : i32
    %c0_i32_0 = arith.constant 0 : i32
    %c0_i32_1 = arith.constant 0 : i32
    return %c0_i32, %c0_i32_0 : i32, i32
  }
  func.func @transform_11(%arg0: i32) -> (i32, i32) {
    %c0_i32 = arith.constant 0 : i32
    %c0_i32_0 = arith.constant 0 : i32
    %c0_i32_1 = arith.constant 0 : i32
    return %c0_i32, %c0_i32_0 : i32, i32
  }
  func.func @transform_12(%arg0: i32) -> (i32, i32) {
    %c0_i32 = arith.constant 0 : i32
    %c0_i32_0 = arith.constant 0 : i32
    %c0_i32_1 = arith.constant 0 : i32
    return %c0_i32, %c0_i32_0 : i32, i32
  }
  func.func @transform_13(%arg0: i32) -> (i32, i32, i32) {
    %c0_i32 = arith.constant 0 : i32
    %c0_i32_0 = arith.constant 0 : i32
    %c0_i32_1 = arith.constant 0 : i32
    return %arg0, %c0_i32, %c0_i32_0 : i32, i32, i32
  }
}

module attributes {stable_mosaic.version = 11 : i64} {
  func.func @_rab_kernel(%arg0: i32, %arg1: memref<1x8x32xf32, #tpu.memory_space<vmem>>, %arg2: memref<1x32xf32, #tpu.memory_space<vmem>>, %arg3: memref<1x32xf32, #tpu.memory_space<vmem>>, %arg4: memref<32x96xbf16, #tpu.memory_space<vmem>>, %arg5: memref<1x96xf32, #tpu.memory_space<vmem>>, %arg6: memref<32x32xbf16, #tpu.memory_space<vmem>>, %arg7: memref<1x32xf32, #tpu.memory_space<vmem>>, %arg8: memref<1x32xf32, #tpu.memory_space<vmem>>, %arg9: memref<1x32xf32, #tpu.memory_space<vmem>>, %arg10: memref<32x128xbf16, #tpu.memory_space<vmem>>, %arg11: memref<1x128xf32, #tpu.memory_space<vmem>>, %arg12: memref<128x32xbf16, #tpu.memory_space<vmem>>, %arg13: memref<1x32xf32, #tpu.memory_space<vmem>>, %arg14: memref<1x8x32xf32, #tpu.memory_space<vmem>>, %arg15: memref<8x32xf32, #tpu.memory_space<vmem>>) attributes {dimension_semantics = [#tpu.dimension_semantics<parallel>], iteration_bounds = array<i64: 2>, scalar_prefetch = 0 : i64, scratch_operands = 1 : i64, tpu.core_type = #tpu.core_type<tc>, window_params = [{transform_indices = @transform_0, window_bounds = array<i64: 1, 8, 32>}, {pipeline_mode = #tpu.pipeline_mode<synchronous>, transform_indices = @transform_1, window_bounds = array<i64: 1, 32>}, {pipeline_mode = #tpu.pipeline_mode<synchronous>, transform_indices = @transform_2, window_bounds = array<i64: 1, 32>}, {pipeline_mode = #tpu.pipeline_mode<synchronous>, transform_indices = @transform_3, window_bounds = array<i64: 32, 96>}, {pipeline_mode = #tpu.pipeline_mode<synchronous>, transform_indices = @transform_4, window_bounds = array<i64: 1, 96>}, {pipeline_mode = #tpu.pipeline_mode<synchronous>, transform_indices = @transform_5, window_bounds = array<i64: 32, 32>}, {pipeline_mode = #tpu.pipeline_mode<synchronous>, transform_indices = @transform_6, window_bounds = array<i64: 1, 32>}, {pipeline_mode = #tpu.pipeline_mode<synchronous>, transform_indices = @transform_7, window_bounds = array<i64: 1, 32>}, {pipeline_mode = #tpu.pipeline_mode<synchronous>, transform_indices = @transform_8, window_bounds = array<i64: 1, 32>}, {pipeline_mode = #tpu.pipeline_mode<synchronous>, transform_indices = @transform_9, window_bounds = array<i64: 32, 128>}, {pipeline_mode = #tpu.pipeline_mode<synchronous>, transform_indices = @transform_10, window_bounds = array<i64: 1, 128>}, {pipeline_mode = #tpu.pipeline_mode<synchronous>, transform_indices = @transform_11, window_bounds = array<i64: 128, 32>}, {pipeline_mode = #tpu.pipeline_mode<synchronous>, transform_indices = @transform_12, window_bounds = array<i64: 1, 32>}, {transform_indices = @transform_13, window_bounds = array<i64: 1, 8, 32>}]} {
    %c0 = arith.constant 0 : index
    %c0_0 = arith.constant 0 : index
    %c0_1 = arith.constant 0 : index
    %0 = vector.load %arg1[%c0, %c0_0, %c0_1] : memref<1x8x32xf32, #tpu.memory_space<vmem>>, vector<1x8x32xf32>
    %1 = vector.shape_cast %0 : vector<1x8x32xf32> to vector<8x32xf32>
    %c0_2 = arith.constant 0 : index
    %c0_3 = arith.constant 0 : index
    %2 = vector.load %arg2[%c0_2, %c0_3] : memref<1x32xf32, #tpu.memory_space<vmem>>, vector<1x32xf32>
    %c0_4 = arith.constant 0 : index
    %c0_5 = arith.constant 0 : index
    %3 = vector.load %arg3[%c0_4, %c0_5] : memref<1x32xf32, #tpu.memory_space<vmem>>, vector<1x32xf32>
    %cst = arith.constant dense<0.000000e+00> : vector<8xf32>
    %4 = vector.multi_reduction <add>, %1, %cst [1] : vector<8x32xf32> to vector<8xf32>
    %5 = vector.shape_cast %4 : vector<8xf32> to vector<8x1xf32>
    %cst_6 = arith.constant 3.200000e+01 : f32
    %6 = vector.broadcast %cst_6 : f32 to vector<8x1xf32>
    %7 = arith.divf %5, %6 : vector<8x1xf32>
    %8 = vector.broadcast %7 : vector<8x1xf32> to vector<8x32xf32>
    %9 = arith.subf %1, %8 : vector<8x32xf32>
    %10 = arith.mulf %9, %9 : vector<8x32xf32>
    %cst_7 = arith.constant dense<0.000000e+00> : vector<8xf32>
    %11 = vector.multi_reduction <add>, %10, %cst_7 [1] : vector<8x32xf32> to vector<8xf32>
    %12 = vector.shape_cast %11 : vector<8xf32> to vector<8x1xf32>
    %cst_8 = arith.constant 3.200000e+01 : f32
    %13 = vector.broadcast %cst_8 : f32 to vector<8x1xf32>
    %14 = arith.divf %12, %13 : vector<8x1xf32>
    %cst_9 = arith.constant 9.99999974E-6 : f32
    %15 = vector.broadcast %cst_9 : f32 to vector<8x1xf32>
    %16 = arith.addf %14, %15 : vector<8x1xf32>
    %17 = math.rsqrt %16 : vector<8x1xf32>
    %18 = vector.broadcast %17 : vector<8x1xf32> to vector<8x32xf32>
    %19 = arith.mulf %9, %18 : vector<8x32xf32>
    %20 = vector.broadcast %2 : vector<1x32xf32> to vector<8x32xf32>
    %21 = arith.mulf %19, %20 : vector<8x32xf32>
    %22 = vector.broadcast %3 : vector<1x32xf32> to vector<8x32xf32>
    %23 = arith.addf %21, %22 : vector<8x32xf32>
    %24 = arith.truncf %23 : vector<8x32xf32> to vector<8x32xbf16>
    %c0_10 = arith.constant 0 : index
    %c0_11 = arith.constant 0 : index
    %25 = vector.load %arg4[%c0_10, %c0_11] : memref<32x96xbf16, #tpu.memory_space<vmem>>, vector<32x96xbf16>
    %cst_12 = arith.constant dense<0.000000e+00> : vector<8x96xf32>
    %26 = tpu.matmul %24, %25, %cst_12 {dimension_numbers = #tpu.dot_dimension_numbers<[1], [0], [0], [1], [0, 0, 1, 1], [], []>} : vector<8x32xbf16>, vector<32x96xbf16>, vector<8x96xf32> -> vector<8x96xf32>
    %c0_13 = arith.constant 0 : index
    %c0_14 = arith.constant 0 : index
    %27 = vector.load %arg5[%c0_13, %c0_14] : memref<1x96xf32, #tpu.memory_space<vmem>>, vector<1x96xf32>
    %28 = vector.broadcast %27 : vector<1x96xf32> to vector<8x96xf32>
    %29 = arith.addf %26, %28 : vector<8x96xf32>
    %30 = vector.extract_strided_slice %29 {offsets = [0, 0], sizes = [8, 8], strides = [1, 1]} : vector<8x96xf32> to vector<8x8xf32>
    %31 = arith.truncf %30 : vector<8x8xf32> to vector<8x8xbf16>
    %32 = vector.extract_strided_slice %29 {offsets = [0, 32], sizes = [8, 8], strides = [1, 1]} : vector<8x96xf32> to vector<8x8xf32>
    %33 = arith.truncf %32 : vector<8x8xf32> to vector<8x8xbf16>
    %34 = vector.extract_strided_slice %29 {offsets = [0, 64], sizes = [8, 8], strides = [1, 1]} : vector<8x96xf32> to vector<8x8xf32>
    %35 = arith.truncf %34 : vector<8x8xf32> to vector<8x8xbf16>
    %cst_15 = arith.constant dense<0.000000e+00> : vector<8x8xf32>
    %36 = tpu.matmul %31, %33, %cst_15 {dimension_numbers = #tpu.dot_dimension_numbers<[1], [1], [0], [0], [0, 0, 1, 0], [], []>} : vector<8x8xbf16>, vector<8x8xbf16>, vector<8x8xf32> -> vector<8x8xf32>
    %cst_16 = arith.constant dense<0xFF800000> : vector<8xf32>
    %37 = vector.multi_reduction <maximumf>, %36, %cst_16 [1] : vector<8x8xf32> to vector<8xf32>
    %38 = vector.shape_cast %37 : vector<8xf32> to vector<8x1xf32>
    %39 = vector.broadcast %38 : vector<8x1xf32> to vector<8x8xf32>
    %40 = arith.subf %36, %39 : vector<8x8xf32>
    %41 = math.exp %40 : vector<8x8xf32>
    %cst_17 = arith.constant dense<0.000000e+00> : vector<8xf32>
    %42 = vector.multi_reduction <add>, %41, %cst_17 [1] : vector<8x8xf32> to vector<8xf32>
    %43 = vector.shape_cast %42 : vector<8xf32> to vector<8x1xf32>
    %44 = tpu.reciprocal %43 {approx = true} : vector<8x1xf32> -> vector<8x1xf32>
    %45 = vector.broadcast %44 : vector<8x1xf32> to vector<8x8xf32>
    %46 = arith.mulf %41, %45 : vector<8x8xf32>
    %47 = arith.truncf %46 : vector<8x8xf32> to vector<8x8xbf16>
    %cst_18 = arith.constant dense<0.000000e+00> : vector<8x8xf32>
    %48 = tpu.matmul %47, %35, %cst_18 {dimension_numbers = #tpu.dot_dimension_numbers<[1], [0], [0], [1], [0, 0, 1, 1], [], []>} : vector<8x8xbf16>, vector<8x8xbf16>, vector<8x8xf32> -> vector<8x8xf32>
    %c0_19 = arith.constant 0 : index
    %c0_20 = arith.constant 0 : index
    %49 = vector.load %arg15[%c0_19, %c0_20] : memref<8x32xf32, #tpu.memory_space<vmem>>, vector<8x8xf32>
    tpu.vector_store %arg15[%c0_19, %c0_20], %48 {strides = array<i32>} : memref<8x32xf32, #tpu.memory_space<vmem>>, vector<8x8xf32>,
    %50 = vector.extract_strided_slice %29 {offsets = [0, 8], sizes = [8, 8], strides = [1, 1]} : vector<8x96xf32> to vector<8x8xf32>
    %51 = arith.truncf %50 : vector<8x8xf32> to vector<8x8xbf16>
    %52 = vector.extract_strided_slice %29 {offsets = [0, 40], sizes = [8, 8], strides = [1, 1]} : vector<8x96xf32> to vector<8x8xf32>
    %53 = arith.truncf %52 : vector<8x8xf32> to vector<8x8xbf16>
    %54 = vector.extract_strided_slice %29 {offsets = [0, 72], sizes = [8, 8], strides = [1, 1]} : vector<8x96xf32> to vector<8x8xf32>
    %55 = arith.truncf %54 : vector<8x8xf32> to vector<8x8xbf16>
    %cst_21 = arith.constant dense<0.000000e+00> : vector<8x8xf32>
    %56 = tpu.matmul %51, %53, %cst_21 {dimension_numbers = #tpu.dot_dimension_numbers<[1], [1], [0], [0], [0, 0, 1, 0], [], []>} : vector<8x8xbf16>, vector<8x8xbf16>, vector<8x8xf32> -> vector<8x8xf32>
    %cst_22 = arith.constant dense<0xFF800000> : vector<8xf32>
    %57 = vector.multi_reduction <maximumf>, %56, %cst_22 [1] : vector<8x8xf32> to vector<8xf32>
    %58 = vector.shape_cast %57 : vector<8xf32> to vector<8x1xf32>
    %59 = vector.broadcast %58 : vector<8x1xf32> to vector<8x8xf32>
    %60 = arith.subf %56, %59 : vector<8x8xf32>
    %61 = math.exp %60 : vector<8x8xf32>
    %cst_23 = arith.constant dense<0.000000e+00> : vector<8xf32>
    %62 = vector.multi_reduction <add>, %61, %cst_23 [1] : vector<8x8xf32> to vector<8xf32>
    %63 = vector.shape_cast %62 : vector<8xf32> to vector<8x1xf32>
    %64 = tpu.reciprocal %63 {approx = true} : vector<8x1xf32> -> vector<8x1xf32>
    %65 = vector.broadcast %64 : vector<8x1xf32> to vector<8x8xf32>
    %66 = arith.mulf %61, %65 : vector<8x8xf32>
    %67 = arith.truncf %66 : vector<8x8xf32> to vector<8x8xbf16>
    %cst_24 = arith.constant dense<0.000000e+00> : vector<8x8xf32>
    %68 = tpu.matmul %67, %55, %cst_24 {dimension_numbers = #tpu.dot_dimension_numbers<[1], [0], [0], [1], [0, 0, 1, 1], [], []>} : vector<8x8xbf16>, vector<8x8xbf16>, vector<8x8xf32> -> vector<8x8xf32>
    %c0_25 = arith.constant 0 : index
    %c8 = arith.constant 8 : index
    %69 = vector.load %arg15[%c0_25, %c8] : memref<8x32xf32, #tpu.memory_space<vmem>>, vector<8x8xf32>
    tpu.vector_store %arg15[%c0_25, %c8], %68 {strides = array<i32>} : memref<8x32xf32, #tpu.memory_space<vmem>>, vector<8x8xf32>,
    %70 = vector.extract_strided_slice %29 {offsets = [0, 16], sizes = [8, 8], strides = [1, 1]} : vector<8x96xf32> to vector<8x8xf32>
    %71 = arith.truncf %70 : vector<8x8xf32> to vector<8x8xbf16>
    %72 = vector.extract_strided_slice %29 {offsets = [0, 48], sizes = [8, 8], strides = [1, 1]} : vector<8x96xf32> to vector<8x8xf32>
    %73 = arith.truncf %72 : vector<8x8xf32> to vector<8x8xbf16>
    %74 = vector.extract_strided_slice %29 {offsets = [0, 80], sizes = [8, 8], strides = [1, 1]} : vector<8x96xf32> to vector<8x8xf32>
    %75 = arith.truncf %74 : vector<8x8xf32> to vector<8x8xbf16>
    %cst_26 = arith.constant dense<0.000000e+00> : vector<8x8xf32>
    %76 = tpu.matmul %71, %73, %cst_26 {dimension_numbers = #tpu.dot_dimension_numbers<[1], [1], [0], [0], [0, 0, 1, 0], [], []>} : vector<8x8xbf16>, vector<8x8xbf16>, vector<8x8xf32> -> vector<8x8xf32>
    %cst_27 = arith.constant dense<0xFF800000> : vector<8xf32>
    %77 = vector.multi_reduction <maximumf>, %76, %cst_27 [1] : vector<8x8xf32> to vector<8xf32>
    %78 = vector.shape_cast %77 : vector<8xf32> to vector<8x1xf32>
    %79 = vector.broadcast %78 : vector<8x1xf32> to vector<8x8xf32>
    %80 = arith.subf %76, %79 : vector<8x8xf32>
    %81 = math.exp %80 : vector<8x8xf32>
    %cst_28 = arith.constant dense<0.000000e+00> : vector<8xf32>
    %82 = vector.multi_reduction <add>, %81, %cst_28 [1] : vector<8x8xf32> to vector<8xf32>
    %83 = vector.shape_cast %82 : vector<8xf32> to vector<8x1xf32>
    %84 = tpu.reciprocal %83 {approx = true} : vector<8x1xf32> -> vector<8x1xf32>
    %85 = vector.broadcast %84 : vector<8x1xf32> to vector<8x8xf32>
    %86 = arith.mulf %81, %85 : vector<8x8xf32>
    %87 = arith.truncf %86 : vector<8x8xf32> to vector<8x8xbf16>
    %cst_29 = arith.constant dense<0.000000e+00> : vector<8x8xf32>
    %88 = tpu.matmul %87, %75, %cst_29 {dimension_numbers = #tpu.dot_dimension_numbers<[1], [0], [0], [1], [0, 0, 1, 1], [], []>} : vector<8x8xbf16>, vector<8x8xbf16>, vector<8x8xf32> -> vector<8x8xf32>
    %c0_30 = arith.constant 0 : index
    %c16 = arith.constant 16 : index
    %89 = vector.load %arg15[%c0_30, %c16] : memref<8x32xf32, #tpu.memory_space<vmem>>, vector<8x8xf32>
    tpu.vector_store %arg15[%c0_30, %c16], %88 {strides = array<i32>} : memref<8x32xf32, #tpu.memory_space<vmem>>, vector<8x8xf32>,
    %90 = vector.extract_strided_slice %29 {offsets = [0, 24], sizes = [8, 8], strides = [1, 1]} : vector<8x96xf32> to vector<8x8xf32>
    %91 = arith.truncf %90 : vector<8x8xf32> to vector<8x8xbf16>
    %92 = vector.extract_strided_slice %29 {offsets = [0, 56], sizes = [8, 8], strides = [1, 1]} : vector<8x96xf32> to vector<8x8xf32>
    %93 = arith.truncf %92 : vector<8x8xf32> to vector<8x8xbf16>
    %94 = vector.extract_strided_slice %29 {offsets = [0, 88], sizes = [8, 8], strides = [1, 1]} : vector<8x96xf32> to vector<8x8xf32>
    %95 = arith.truncf %94 : vector<8x8xf32> to vector<8x8xbf16>
    %cst_31 = arith.constant dense<0.000000e+00> : vector<8x8xf32>
    %96 = tpu.matmul %91, %93, %cst_31 {dimension_numbers = #tpu.dot_dimension_numbers<[1], [1], [0], [0], [0, 0, 1, 0], [], []>} : vector<8x8xbf16>, vector<8x8xbf16>, vector<8x8xf32> -> vector<8x8xf32>
    %cst_32 = arith.constant dense<0xFF800000> : vector<8xf32>
    %97 = vector.multi_reduction <maximumf>, %96, %cst_32 [1] : vector<8x8xf32> to vector<8xf32>
    %98 = vector.shape_cast %97 : vector<8xf32> to vector<8x1xf32>
    %99 = vector.broadcast %98 : vector<8x1xf32> to vector<8x8xf32>
    %100 = arith.subf %96, %99 : vector<8x8xf32>
    %101 = math.exp %100 : vector<8x8xf32>
    %cst_33 = arith.constant dense<0.000000e+00> : vector<8xf32>
    %102 = vector.multi_reduction <add>, %101, %cst_33 [1] : vector<8x8xf32> to vector<8xf32>
    %103 = vector.shape_cast %102 : vector<8xf32> to vector<8x1xf32>
    %104 = tpu.reciprocal %103 {approx = true} : vector<8x1xf32> -> vector<8x1xf32>
    %105 = vector.broadcast %104 : vector<8x1xf32> to vector<8x8xf32>
    %106 = arith.mulf %101, %105 : vector<8x8xf32>
    %107 = arith.truncf %106 : vector<8x8xf32> to vector<8x8xbf16>
    %cst_34 = arith.constant dense<0.000000e+00> : vector<8x8xf32>
    %108 = tpu.matmul %107, %95, %cst_34 {dimension_numbers = #tpu.dot_dimension_numbers<[1], [0], [0], [1], [0, 0, 1, 1], [], []>} : vector<8x8xbf16>, vector<8x8xbf16>, vector<8x8xf32> -> vector<8x8xf32>
    %c0_35 = arith.constant 0 : index
    %c24 = arith.constant 24 : index
    %109 = vector.load %arg15[%c0_35, %c24] : memref<8x32xf32, #tpu.memory_space<vmem>>, vector<8x8xf32>
    tpu.vector_store %arg15[%c0_35, %c24], %108 {strides = array<i32>} : memref<8x32xf32, #tpu.memory_space<vmem>>, vector<8x8xf32>,
    %c0_36 = arith.constant 0 : index
    %c0_37 = arith.constant 0 : index
    %110 = vector.load %arg15[%c0_36, %c0_37] : memref<8x32xf32, #tpu.memory_space<vmem>>, vector<8x32xf32>
    %111 = arith.truncf %110 : vector<8x32xf32> to vector<8x32xbf16>
    %c0_38 = arith.constant 0 : index
    %c0_39 = arith.constant 0 : index
    %112 = vector.load %arg6[%c0_38, %c0_39] : memref<32x32xbf16, #tpu.memory_space<vmem>>, vector<32x32xbf16>
    %cst_40 = arith.constant dense<0.000000e+00> : vector<8x32xf32>
    %113 = tpu.matmul %111, %112, %cst_40 {dimension_numbers = #tpu.dot_dimension_numbers<[1], [0], [0], [1], [0, 0, 1, 1], [], []>} : vector<8x32xbf16>, vector<32x32xbf16>, vector<8x32xf32> -> vector<8x32xf32>
    %c0_41 = arith.constant 0 : index
    %c0_42 = arith.constant 0 : index
    %114 = vector.load %arg7[%c0_41, %c0_42] : memref<1x32xf32, #tpu.memory_space<vmem>>, vector<1x32xf32>
    %115 = vector.broadcast %114 : vector<1x32xf32> to vector<8x32xf32>
    %116 = arith.addf %113, %115 : vector<8x32xf32>
    %117 = arith.addf %1, %116 : vector<8x32xf32>
    %c0_43 = arith.constant 0 : index
    %c0_44 = arith.constant 0 : index
    %118 = vector.load %arg8[%c0_43, %c0_44] : memref<1x32xf32, #tpu.memory_space<vmem>>, vector<1x32xf32>
    %c0_45 = arith.constant 0 : index
    %c0_46 = arith.constant 0 : index
    %119 = vector.load %arg9[%c0_45, %c0_46] : memref<1x32xf32, #tpu.memory_space<vmem>>, vector<1x32xf32>
    %cst_47 = arith.constant dense<0.000000e+00> : vector<8xf32>
    %120 = vector.multi_reduction <add>, %117, %cst_47 [1] : vector<8x32xf32> to vector<8xf32>
    %121 = vector.shape_cast %120 : vector<8xf32> to vector<8x1xf32>
    %cst_48 = arith.constant 3.200000e+01 : f32
    %122 = vector.broadcast %cst_48 : f32 to vector<8x1xf32>
    %123 = arith.divf %121, %122 : vector<8x1xf32>
    %124 = vector.broadcast %123 : vector<8x1xf32> to vector<8x32xf32>
    %125 = arith.subf %117, %124 : vector<8x32xf32>
    %126 = arith.mulf %125, %125 : vector<8x32xf32>
    %cst_49 = arith.constant dense<0.000000e+00> : vector<8xf32>
    %127 = vector.multi_reduction <add>, %126, %cst_49 [1] : vector<8x32xf32> to vector<8xf32>
    %128 = vector.shape_cast %127 : vector<8xf32> to vector<8x1xf32>
    %cst_50 = arith.constant 3.200000e+01 : f32
    %129 = vector.broadcast %cst_50 : f32 to vector<8x1xf32>
    %130 = arith.divf %128, %129 : vector<8x1xf32>
    %cst_51 = arith.constant 9.99999974E-6 : f32
    %131 = vector.broadcast %cst_51 : f32 to vector<8x1xf32>
    %132 = arith.addf %130, %131 : vector<8x1xf32>
    %133 = math.rsqrt %132 : vector<8x1xf32>
    %134 = vector.broadcast %133 : vector<8x1xf32> to vector<8x32xf32>
    %135 = arith.mulf %125, %134 : vector<8x32xf32>
    %136 = vector.broadcast %118 : vector<1x32xf32> to vector<8x32xf32>
    %137 = arith.mulf %135, %136 : vector<8x32xf32>
    %138 = vector.broadcast %119 : vector<1x32xf32> to vector<8x32xf32>
    %139 = arith.addf %137, %138 : vector<8x32xf32>
    %140 = arith.truncf %139 : vector<8x32xf32> to vector<8x32xbf16>
    %c0_52 = arith.constant 0 : index
    %c0_53 = arith.constant 0 : index
    %141 = vector.load %arg10[%c0_52, %c0_53] : memref<32x128xbf16, #tpu.memory_space<vmem>>, vector<32x128xbf16>
    %cst_54 = arith.constant dense<0.000000e+00> : vector<8x128xf32>
    %142 = tpu.matmul %140, %141, %cst_54 {dimension_numbers = #tpu.dot_dimension_numbers<[1], [0], [0], [1], [0, 0, 1, 1], [], []>} : vector<8x32xbf16>, vector<32x128xbf16>, vector<8x128xf32> -> vector<8x128xf32>
    %c0_55 = arith.constant 0 : index
    %c0_56 = arith.constant 0 : index
    %143 = vector.load %arg11[%c0_55, %c0_56] : memref<1x128xf32, #tpu.memory_space<vmem>>, vector<1x128xf32>
    %144 = vector.broadcast %143 : vector<1x128xf32> to vector<8x128xf32>
    %145 = arith.addf %142, %144 : vector<8x128xf32>
    %cst_57 = arith.constant 1.702000e+00 : f32
    %146 = vector.broadcast %cst_57 : f32 to vector<8x128xf32>
    %147 = arith.mulf %146, %145 : vector<8x128xf32>
    %148 = arith.negf %147 : vector<8x128xf32>
    %149 = math.exp %148 : vector<8x128xf32>
    %cst_58 = arith.constant 1.000000e+00 : f32
    %150 = vector.broadcast %cst_58 : f32 to vector<8x128xf32>
    %151 = arith.addf %150, %149 : vector<8x128xf32>
    %152 = arith.divf %150, %151 : vector<8x128xf32>
    %153 = arith.mulf %145, %152 : vector<8x128xf32>
    %154 = arith.truncf %153 : vector<8x128xf32> to vector<8x128xbf16>
    %c0_59 = arith.constant 0 : index
    %c0_60 = arith.constant 0 : index
    %155 = vector.load %arg12[%c0_59, %c0_60] : memref<128x32xbf16, #tpu.memory_space<vmem>>, vector<128x32xbf16>
    %cst_61 = arith.constant dense<0.000000e+00> : vector<8x32xf32>
    %156 = tpu.matmul %154, %155, %cst_61 {dimension_numbers = #tpu.dot_dimension_numbers<[1], [0], [0], [1], [0, 0, 1, 1], [], []>} : vector<8x128xbf16>, vector<128x32xbf16>, vector<8x32xf32> -> vector<8x32xf32>
    %c0_62 = arith.constant 0 : index
    %c0_63 = arith.constant 0 : index
    %157 = vector.load %arg13[%c0_62, %c0_63] : memref<1x32xf32, #tpu.memory_space<vmem>>, vector<1x32xf32>
    %158 = vector.broadcast %157 : vector<1x32xf32> to vector<8x32xf32>
    %159 = arith.addf %156, %158 : vector<8x32xf32>
    %160 = arith.addf %117, %159 : vector<8x32xf32>
    %161 = vector.shape_cast %160 : vector<8x32xf32> to vector<1x8x32xf32>
    %c0_64 = arith.constant 0 : index
    %c0_65 = arith.constant 0 : index
    %c0_66 = arith.constant 0 : index
    %162 = vector.load %arg14[%c0_64, %c0_65, %c0_66] : memref<1x8x32xf32, #tpu.memory_space<vmem>>, vector<1x8x32xf32>
    tpu.vector_store %arg14[%c0_64, %c0_65, %c0_66], %161 {strides = array<i32>} : memref<1x8x32xf32, #tpu.memory_space<vmem>>, vector<1x8x32xf32>,
    return
  }
  func.func @transform_0(%arg0: i32) -> (i32, i32, i32) {
    %c0_i32 = arith.constant 0 : i32
    %c0_i32_0 = arith.constant 0 : i32
    %c0_i32_1 = arith.constant 0 : i32
    return %arg0, %c0_i32, %c0_i32_0 : i32, i32, i32
  }
  func.func @transform_1(%arg0: i32) -> (i32, i32) {
    %c0_i32 = arith.constant 0 : i32
    %c0_i32_0 = arith.constant 0 : i32
    %c0_i32_1 = arith.constant 0 : i32
    return %c0_i32, %c0_i32_0 : i32, i32
  }
  func.func @transform_2(%arg0: i32) -> (i32, i32) {
    %c0_i32 = arith.constant 0 : i32
    %c0_i32_0 = arith.constant 0 : i32
    %c0_i32_1 = arith.constant 0 : i32
    return %c0_i32, %c0_i32_0 : i32, i32
  }
  func.func @transform_3(%arg0: i32) -> (i32, i32) {
    %c0_i32 = arith.constant 0 : i32
    %c0_i32_0 = arith.constant 0 : i32
    %c0_i32_1 = arith.constant 0 : i32
    return %c0_i32, %c0_i32_0 : i32, i32
  }
  func.func @transform_4(%arg0: i32) -> (i32, i32) {
    %c0_i32 = arith.constant 0 : i32
    %c0_i32_0 = arith.constant 0 : i32
    %c0_i32_1 = arith.constant 0 : i32
    return %c0_i32, %c0_i32_0 : i32, i32
  }
  func.func @transform_5(%arg0: i32) -> (i32, i32) {
    %c0_i32 = arith.constant 0 : i32
    %c0_i32_0 = arith.constant 0 : i32
    %c0_i32_1 = arith.constant 0 : i32
    return %c0_i32, %c0_i32_0 : i32, i32
  }
  func.func @transform_6(%arg0: i32) -> (i32, i32) {
    %c0_i32 = arith.constant 0 : i32
    %c0_i32_0 = arith.constant 0 : i32
    %c0_i32_1 = arith.constant 0 : i32
    return %c0_i32, %c0_i32_0 : i32, i32
  }
  func.func @transform_7(%arg0: i32) -> (i32, i32) {
    %c0_i32 = arith.constant 0 : i32
    %c0_i32_0 = arith.constant 0 : i32
    %c0_i32_1 = arith.constant 0 : i32
    return %c0_i32, %c0_i32_0 : i32, i32
  }
  func.func @transform_8(%arg0: i32) -> (i32, i32) {
    %c0_i32 = arith.constant 0 : i32
    %c0_i32_0 = arith.constant 0 : i32
    %c0_i32_1 = arith.constant 0 : i32
    return %c0_i32, %c0_i32_0 : i32, i32
  }
  func.func @transform_9(%arg0: i32) -> (i32, i32) {
    %c0_i32 = arith.constant 0 : i32
    %c0_i32_0 = arith.constant 0 : i32
    %c0_i32_1 = arith.constant 0 : i32
    return %c0_i32, %c0_i32_0 : i32, i32
  }
  func.func @transform_10(%arg0: i32) -> (i32, i32) {
    %c0_i32 = arith.constant 0 : i32
    %c0_i32_0 = arith.constant 0 : i32
    %c0_i32_1 = arith.constant 0 : i32
    return %c0_i32, %c0_i32_0 : i32, i32
  }
  func.func @transform_11(%arg0: i32) -> (i32, i32) {
    %c0_i32 = arith.constant 0 : i32
    %c0_i32_0 = arith.constant 0 : i32
    %c0_i32_1 = arith.constant 0 : i32
    return %c0_i32, %c0_i32_0 : i32, i32
  }
  func.func @transform_12(%arg0: i32) -> (i32, i32) {
    %c0_i32 = arith.constant 0 : i32
    %c0_i32_0 = arith.constant 0 : i32
    %c0_i32_1 = arith.constant 0 : i32
    return %c0_i32, %c0_i32_0 : i32, i32
  }
  func.func @transform_13(%arg0: i32) -> (i32, i32, i32) {
    %c0_i32 = arith.constant 0 : i32
    %c0_i32_0 = arith.constant 0 : i32
    %c0_i32_1 = arith.constant 0 : i32
    return %arg0, %c0_i32, %c0_i32_0 : i32, i32, i32
  }
}

</mosaic_0001>

<llo_original>
// kernel: tpu_custom_call.1
$region0: #{tpu_custom_call.1}
  #allocation0 [shape = 'u32[]', space=smem, size = 0x4, offset = 0x4, fixed_abs, tag = 'smem constant byte address 0x4 - core index']
  #allocation1 [shape = 'u32[144,128]{1,0:T(1,128)}', space=vmem, size = 0x12000, scoped, tag = 'internal scratch']
  #allocation2 [shape = 'f32[8,32]{1,0:T(8,128)}', space=vmem, size = 0x1000, scoped, tag = 'scratch operand']
  %s0 = inlined_call_operand.vmem [shape: f32[2,8,32], index: 0, kind: input, shape index: {}]
  %s1 = inlined_call_operand.vmem [shape: f32[1,32], index: 1, kind: input, shape index: {}]
  %s2 = inlined_call_operand.vmem [shape: f32[1,32], index: 2, kind: input, shape index: {}]
  %s3 = inlined_call_operand.vmem [shape: bf16[32,96], index: 3, kind: input, shape index: {}]
  %s4 = inlined_call_operand.vmem [shape: f32[1,96], index: 4, kind: input, shape index: {}]
  %s5 = inlined_call_operand.vmem [shape: bf16[32,32], index: 5, kind: input, shape index: {}]
  %s6 = inlined_call_operand.vmem [shape: f32[1,32], index: 6, kind: input, shape index: {}]
  %s7 = inlined_call_operand.vmem [shape: f32[1,32], index: 7, kind: input, shape index: {}]
  %s8 = inlined_call_operand.vmem [shape: f32[1,32], index: 8, kind: input, shape index: {}]
  %s9 = inlined_call_operand.vmem [shape: bf16[32,128], index: 9, kind: input, shape index: {}]
  %s10 = inlined_call_operand.vmem [shape: f32[1,128], index: 10, kind: input, shape index: {}]
  %s11 = inlined_call_operand.vmem [shape: bf16[128,32], index: 11, kind: input, shape index: {}]
  %s12 = inlined_call_operand.vmem [shape: f32[1,32], index: 12, kind: input, shape index: {}]
  %s13 = inlined_call_operand.hbm [shape: f32[2,8,32], index: 13, kind: output, shape index: {}]
  %s14 = sld [smem:[#allocation0]]
  $region85: #{tpu_custom_call.1} parent=0
    _
  %s16 = ssub.s32 1, %s14
  %s17 = scalar_select 0, %s16, %s14
  $region1: #{tpu_custom_call.1} parent=0
    #allocation3 [shape = 'u8[8192]{0}', space=vmem, size = 0x2000, scoped, tag = 'output window, operand 0']
    #allocation4 [shape = 's32[2]{0}', space=sflag, size = 0x8, scoped, tag = 'scoped memory for tpu_custom_call.1']
    %18 = vsyncpa [#allocation4], 0
    %s19 = scalar_lea.sflag [#allocation4], 1
    %20 = vsyncpa %s19, 0
    loop: start=0, step=1, limit=4
    $region2: #{tpu_custom_call.1} parent=1 // loop_pre_header
      _
    $region3: #{tpu_custom_call.1} parent=1 // loop_header
      %s22 = sphi 0, %s26
      %p23 = scmp.ge.s32.totalorder %s22, 4
      %s32 = sphi 0, %s34
      %s35 = sphi 0, %s32
      %s36 = sphi 0, %s35
      %s52 = sphi 0, %s36
      %s56 = sphi 0, %s56
      %s58 = sphi 0, %s56
      %s59 = sphi 0, %s58
      %s73 = sphi 0, %s59
      %s77 = sphi 0, %s77
      %s79 = sphi 0, %s77
      %s80 = sphi 0, %s79
      %s94 = sphi 0, %s80
      %s98 = sphi 0, %s98
      %s100 = sphi 0, %s98
      %s101 = sphi 0, %s100
      %s115 = sphi 0, %s101
      %s119 = sphi 0, %s119
      %s121 = sphi 0, %s119
      %s122 = sphi 0, %s121
      %s136 = sphi 0, %s122
      %s140 = sphi 0, %s140
      %s142 = sphi 0, %s140
      %s143 = sphi 0, %s142
      %s157 = sphi 0, %s143
      %s161 = sphi 0, %s161
      %s163 = sphi 0, %s161
      %s164 = sphi 0, %s163
      %s178 = sphi 0, %s164
      %s182 = sphi 0, %s182
      %s184 = sphi 0, %s182
      %s185 = sphi 0, %s184
      %s199 = sphi 0, %s185
      %s203 = sphi 0, %s203
      %s205 = sphi 0, %s203
      %s206 = sphi 0, %s205
      %s220 = sphi 0, %s206
      %s224 = sphi 0, %s224
      %s226 = sphi 0, %s224
      %s227 = sphi 0, %s226
      %s241 = sphi 0, %s227
      %s245 = sphi 0, %s245
      %s247 = sphi 0, %s245
      %s248 = sphi 0, %s247
      %s262 = sphi 0, %s248
      %s266 = sphi 0, %s266
      %s268 = sphi 0, %s266
      %s269 = sphi 0, %s268
      %s283 = sphi 0, %s269
      %s287 = sphi 0, %s287
      %s289 = sphi 0, %s287
      %s290 = sphi 0, %s289
      %s304 = sphi 0, %s290
      %s310 = sphi 0, %s312
      %s313 = sphi 0, %s310
      %s314 = sphi 0, %s313
      %s330 = sphi 0, %s314
    $region4: #{tpu_custom_call.1} parent=1 // loop_header_branch
      %25 = sbr.rel (%p23) target = $region8
    $region5: #{tpu_custom_call.1} parent=1 // loop_body
      %s27 = ssub.s32 %s22, 1
      %s28 = ssub.s32 %s22, 2
      %s29 = sadd.s32 %s22, 1
      %s30 = ssub.s32 %s22, %s29
      %p31 = scmp.eq.s32.totalorder %s30, 0
      %s33 = sadd.s32 %s32, 1
      %s34 = scalar_select %p31, %s32, %s33
      %p37 = pneg %p31
      %p38 = scmp.eq.s32.totalorder %s22, 1
      %p39 = por %p37, %p38
      %p40 = scmp.ne.s32.totalorder %s32, %s35
      %p41 = scmp.eq.s32.totalorder %s22, 0
      %p42 = por %p40, %p41
      %p43 = scmp.ne.s32.totalorder %s32, %s35
      %p44 = scmp.eq.s32.totalorder %s27, 1
      %p45 = por %p43, %p44
      %p46 = scmp.ne.s32.totalorder %s35, %s36
      %p47 = scmp.eq.s32.totalorder %s27, 0
      %p48 = por %p46, %p47
      %p49 = scmp.ne.s32.totalorder %s35, %s36
      %p50 = scmp.eq.s32.totalorder %s28, 1
      %p51 = por %p49, %p50
      %p53 = scmp.ne.s32.totalorder %s36, %s52
      %p54 = scmp.eq.s32.totalorder %s28, 0
      %p55 = por %p53, %p54
      %s57 = sadd.s32 %s56, 1
      %p60 = scmp.eq.s32.totalorder %s22, 1
      %p61 = scmp.ne.s32.totalorder %s56, %s58
      %p62 = scmp.eq.s32.totalorder %s22, 0
      %p63 = por %p61, %p62
      %p64 = scmp.ne.s32.totalorder %s56, %s58
      %p65 = scmp.eq.s32.totalorder %s27, 1
      %p66 = por %p64, %p65
      %p67 = scmp.ne.s32.totalorder %s58, %s59
      %p68 = scmp.eq.s32.totalorder %s27, 0
      %p69 = por %p67, %p68
      %p70 = scmp.ne.s32.totalorder %s58, %s59
      %p71 = scmp.eq.s32.totalorder %s28, 1
      %p72 = por %p70, %p71
      %p74 = scmp.ne.s32.totalorder %s59, %s73
      %p75 = scmp.eq.s32.totalorder %s28, 0
      %p76 = por %p74, %p75
      %s78 = sadd.s32 %s77, 1
      %p81 = scmp.eq.s32.totalorder %s22, 1
      %p82 = scmp.ne.s32.totalorder %s77, %s79
      %p83 = scmp.eq.s32.totalorder %s22, 0
      %p84 = por %p82, %p83
      %p85 = scmp.ne.s32.totalorder %s77, %s79
      %p86 = scmp.eq.s32.totalorder %s27, 1
      %p87 = por %p85, %p86
      %p88 = scmp.ne.s32.totalorder %s79, %s80
      %p89 = scmp.eq.s32.totalorder %s27, 0
      %p90 = por %p88, %p89
      %p91 = scmp.ne.s32.totalorder %s79, %s80
      %p92 = scmp.eq.s32.totalorder %s28, 1
      %p93 = por %p91, %p92
      %p95 = scmp.ne.s32.totalorder %s80, %s94
      %p96 = scmp.eq.s32.totalorder %s28, 0
      %p97 = por %p95, %p96
      %s99 = sadd.s32 %s98, 1
      %p102 = scmp.eq.s32.totalorder %s22, 1
      %p103 = scmp.ne.s32.totalorder %s98, %s100
      %p104 = scmp.eq.s32.totalorder %s22, 0
      %p105 = por %p103, %p104
      %p106 = scmp.ne.s32.totalorder %s98, %s100
      %p107 = scmp.eq.s32.totalorder %s27, 1
      %p108 = por %p106, %p107
      %p109 = scmp.ne.s32.totalorder %s100, %s101
      %p110 = scmp.eq.s32.totalorder %s27, 0
      %p111 = por %p109, %p110
      %p112 = scmp.ne.s32.totalorder %s100, %s101
      %p113 = scmp.eq.s32.totalorder %s28, 1
      %p114 = por %p112, %p113
      %p116 = scmp.ne.s32.totalorder %s101, %s115
      %p117 = scmp.eq.s32.totalorder %s28, 0
      %p118 = por %p116, %p117
      %s120 = sadd.s32 %s119, 1
      %p123 = scmp.eq.s32.totalorder %s22, 1
      %p124 = scmp.ne.s32.totalorder %s119, %s121
      %p125 = scmp.eq.s32.totalorder %s22, 0
      %p126 = por %p124, %p125
      %p127 = scmp.ne.s32.totalorder %s119, %s121
      %p128 = scmp.eq.s32.totalorder %s27, 1
      %p129 = por %p127, %p128
      %p130 = scmp.ne.s32.totalorder %s121, %s122
      %p131 = scmp.eq.s32.totalorder %s27, 0
      %p132 = por %p130, %p131
      %p133 = scmp.ne.s32.totalorder %s121, %s122
      %p134 = scmp.eq.s32.totalorder %s28, 1
      %p135 = por %p133, %p134
      %p137 = scmp.ne.s32.totalorder %s122, %s136
      %p138 = scmp.eq.s32.totalorder %s28, 0
      %p139 = por %p137, %p138
      %s141 = sadd.s32 %s140, 1
      %p144 = scmp.eq.s32.totalorder %s22, 1
      %p145 = scmp.ne.s32.totalorder %s140, %s142
      %p146 = scmp.eq.s32.totalorder %s22, 0
      %p147 = por %p145, %p146
      %p148 = scmp.ne.s32.totalorder %s140, %s142
      %p149 = scmp.eq.s32.totalorder %s27, 1
      %p150 = por %p148, %p149
      %p151 = scmp.ne.s32.totalorder %s142, %s143
      %p152 = scmp.eq.s32.totalorder %s27, 0
      %p153 = por %p151, %p152
      %p154 = scmp.ne.s32.totalorder %s142, %s143
      %p155 = scmp.eq.s32.totalorder %s28, 1
      %p156 = por %p154, %p155
      %p158 = scmp.ne.s32.totalorder %s143, %s157
      %p159 = scmp.eq.s32.totalorder %s28, 0
      %p160 = por %p158, %p159
      %s162 = sadd.s32 %s161, 1
      %p165 = scmp.eq.s32.totalorder %s22, 1
      %p166 = scmp.ne.s32.totalorder %s161, %s163
      %p167 = scmp.eq.s32.totalorder %s22, 0
      %p168 = por %p166, %p167
      %p169 = scmp.ne.s32.totalorder %s161, %s163
      %p170 = scmp.eq.s32.totalorder %s27, 1
      %p171 = por %p169, %p170
      %p172 = scmp.ne.s32.totalorder %s163, %s164
      %p173 = scmp.eq.s32.totalorder %s27, 0
      %p174 = por %p172, %p173
      %p175 = scmp.ne.s32.totalorder %s163, %s164
      %p176 = scmp.eq.s32.totalorder %s28, 1
      %p177 = por %p175, %p176
      %p179 = scmp.ne.s32.totalorder %s164, %s178
      %p180 = scmp.eq.s32.totalorder %s28, 0
      %p181 = por %p179, %p180
      %s183 = sadd.s32 %s182, 1
      %p186 = scmp.eq.s32.totalorder %s22, 1
      %p187 = scmp.ne.s32.totalorder %s182, %s184
      %p188 = scmp.eq.s32.totalorder %s22, 0
      %p189 = por %p187, %p188
      %p190 = scmp.ne.s32.totalorder %s182, %s184
      %p191 = scmp.eq.s32.totalorder %s27, 1
      %p192 = por %p190, %p191
      %p193 = scmp.ne.s32.totalorder %s184, %s185
      %p194 = scmp.eq.s32.totalorder %s27, 0
      %p195 = por %p193, %p194
      %p196 = scmp.ne.s32.totalorder %s184, %s185
      %p197 = scmp.eq.s32.totalorder %s28, 1
      %p198 = por %p196, %p197
      %p200 = scmp.ne.s32.totalorder %s185, %s199
      %p201 = scmp.eq.s32.totalorder %s28, 0
      %p202 = por %p200, %p201
      %s204 = sadd.s32 %s203, 1
      %p207 = scmp.eq.s32.totalorder %s22, 1
      %p208 = scmp.ne.s32.totalorder %s203, %s205
      %p209 = scmp.eq.s32.totalorder %s22, 0
      %p210 = por %p208, %p209
      %p211 = scmp.ne.s32.totalorder %s203, %s205
      %p212 = scmp.eq.s32.totalorder %s27, 1
      %p213 = por %p211, %p212
      %p214 = scmp.ne.s32.totalorder %s205, %s206
      %p215 = scmp.eq.s32.totalorder %s27, 0
      %p216 = por %p214, %p215
      %p217 = scmp.ne.s32.totalorder %s205, %s206
      %p218 = scmp.eq.s32.totalorder %s28, 1
      %p219 = por %p217, %p218
      %p221 = scmp.ne.s32.totalorder %s206, %s220
      %p222 = scmp.eq.s32.totalorder %s28, 0
      %p223 = por %p221, %p222
      %s225 = sadd.s32 %s224, 1
      %p228 = scmp.eq.s32.totalorder %s22, 1
      %p229 = scmp.ne.s32.totalorder %s224, %s226
      %p230 = scmp.eq.s32.totalorder %s22, 0
      %p231 = por %p229, %p230
      %p232 = scmp.ne.s32.totalorder %s224, %s226
      %p233 = scmp.eq.s32.totalorder %s27, 1
      %p234 = por %p232, %p233
      %p235 = scmp.ne.s32.totalorder %s226, %s227
      %p236 = scmp.eq.s32.totalorder %s27, 0
      %p237 = por %p235, %p236
      %p238 = scmp.ne.s32.totalorder %s226, %s227
      %p239 = scmp.eq.s32.totalorder %s28, 1
      %p240 = por %p238, %p239
      %p242 = scmp.ne.s32.totalorder %s227, %s241
      %p243 = scmp.eq.s32.totalorder %s28, 0
      %p244 = por %p242, %p243
      %s246 = sadd.s32 %s245, 1
      %p249 = scmp.eq.s32.totalorder %s22, 1
      %p250 = scmp.ne.s32.totalorder %s245, %s247
      %p251 = scmp.eq.s32.totalorder %s22, 0
      %p252 = por %p250, %p251
      %p253 = scmp.ne.s32.totalorder %s245, %s247
      %p254 = scmp.eq.s32.totalorder %s27, 1
      %p255 = por %p253, %p254
      %p256 = scmp.ne.s32.totalorder %s247, %s248
      %p257 = scmp.eq.s32.totalorder %s27, 0
      %p258 = por %p256, %p257
      %p259 = scmp.ne.s32.totalorder %s247, %s248
      %p260 = scmp.eq.s32.totalorder %s28, 1
      %p261 = por %p259, %p260
      %p263 = scmp.ne.s32.totalorder %s248, %s262
      %p264 = scmp.eq.s32.totalorder %s28, 0
      %p265 = por %p263, %p264
      %s267 = sadd.s32 %s266, 1
      %p270 = scmp.eq.s32.totalorder %s22, 1
      %p271 = scmp.ne.s32.totalorder %s266, %s268
      %p272 = scmp.eq.s32.totalorder %s22, 0
      %p273 = por %p271, %p272
      %p274 = scmp.ne.s32.totalorder %s266, %s268
      %p275 = scmp.eq.s32.totalorder %s27, 1
      %p276 = por %p274, %p275
      %p277 = scmp.ne.s32.totalorder %s268, %s269
      %p278 = scmp.eq.s32.totalorder %s27, 0
      %p279 = por %p277, %p278
      %p280 = scmp.ne.s32.totalorder %s268, %s269
      %p281 = scmp.eq.s32.totalorder %s28, 1
      %p282 = por %p280, %p281
      %p284 = scmp.ne.s32.totalorder %s269, %s283
      %p285 = scmp.eq.s32.totalorder %s28, 0
      %p286 = por %p284, %p285
      %s288 = sadd.s32 %s287, 1
      %p291 = scmp.eq.s32.totalorder %s22, 1
      %p292 = scmp.ne.s32.totalorder %s287, %s289
      %p293 = scmp.eq.s32.totalorder %s22, 0
      %p294 = por %p292, %p293
      %p295 = scmp.ne.s32.totalorder %s287, %s289
      %p296 = scmp.eq.s32.totalorder %s27, 1
      %p297 = por %p295, %p296
      %p298 = scmp.ne.s32.totalorder %s289, %s290
      %p299 = scmp.eq.s32.totalorder %s27, 0
      %p300 = por %p298, %p299
      %p301 = scmp.ne.s32.totalorder %s289, %s290
      %p302 = scmp.eq.s32.totalorder %s28, 1
      %p303 = por %p301, %p302
      %p305 = scmp.ne.s32.totalorder %s290, %s304
      %p306 = scmp.eq.s32.totalorder %s28, 0
      %p307 = por %p305, %p306
      %s308 = ssub.s32 %s22, %s29
      %p309 = scmp.eq.s32.totalorder %s308, 0
      %s311 = sadd.s32 %s310, 1
      %s312 = scalar_select %p309, %s310, %s311
      %p315 = pneg %p309
      %p316 = scmp.eq.s32.totalorder %s22, 1
      %p317 = por %p315, %p316
      %p318 = scmp.ne.s32.totalorder %s310, %s313
      %p319 = scmp.eq.s32.totalorder %s22, 0
      %p320 = por %p318, %p319
      %p321 = scmp.ne.s32.totalorder %s310, %s313
      %p322 = scmp.eq.s32.totalorder %s27, 1
      %p323 = por %p321, %p322
      %p324 = scmp.ne.s32.totalorder %s313, %s314
      %p325 = scmp.eq.s32.totalorder %s27, 0
      %p326 = por %p324, %p325
      %p327 = scmp.ne.s32.totalorder %s313, %s314
      %p328 = scmp.eq.s32.totalorder %s28, 1
      %p329 = por %p327, %p328
      %p331 = scmp.ne.s32.totalorder %s314, %s330
      %p332 = scmp.eq.s32.totalorder %s28, 0
      %p333 = por %p331, %p332
      %p334 = scmp.le.s32.totalorder 1, %s22
      %p335 = scmp.lt.s32.totalorder %s22, 3
      %p336 = pnand %p334, %p335
      %p337 = pneg %p336
      // Predicated region
      $region9: #{tpu_custom_call.1} parent=5 // pred_check
        _
      $region10: #{tpu_custom_call.1} parent=5 // pred_check_branch
        %339 = sbr.rel (%p336) target = $region12
      $region11: #{tpu_custom_call.1} parent=5 // pred_region
        %s340 = ssub.s32 %s22, 1
        // Predicated region
        $region13: #{tpu_custom_call.1} parent=11 // pred_check
          %p341 = pneg %p69
        $region14: #{tpu_custom_call.1} parent=11 // pred_check_branch
          %343 = sbr.rel (%p341) target = $region16
        $region15: #{tpu_custom_call.1} parent=11 // pred_region
          _
        $region16: #{tpu_custom_call.1} parent=11 // pred_fallthru
          _
        // Predicated region
        $region17: #{tpu_custom_call.1} parent=11 // pred_check
          %p344 = pneg %p90
        $region18: #{tpu_custom_call.1} parent=11 // pred_check_branch
          %346 = sbr.rel (%p344) target = $region20
        $region19: #{tpu_custom_call.1} parent=11 // pred_region
          _
        $region20: #{tpu_custom_call.1} parent=11 // pred_fallthru
          _
        // Predicated region
        $region21: #{tpu_custom_call.1} parent=11 // pred_check
          %p347 = pneg %p111
        $region22: #{tpu_custom_call.1} parent=11 // pred_check_branch
          %349 = sbr.rel (%p347) target = $region24
        $region23: #{tpu_custom_call.1} parent=11 // pred_region
          _
        $region24: #{tpu_custom_call.1} parent=11 // pred_fallthru
          _
        // Predicated region
        $region25: #{tpu_custom_call.1} parent=11 // pred_check
          %p350 = pneg %p132
        $region26: #{tpu_custom_call.1} parent=11 // pred_check_branch
          %352 = sbr.rel (%p350) target = $region28
        $region27: #{tpu_custom_call.1} parent=11 // pred_region
          _
        $region28: #{tpu_custom_call.1} parent=11 // pred_fallthru
          _
        // Predicated region
        $region29: #{tpu_custom_call.1} parent=11 // pred_check
          %p353 = pneg %p153
        $region30: #{tpu_custom_call.1} parent=11 // pred_check_branch
          %355 = sbr.rel (%p353) target = $region32
        $region31: #{tpu_custom_call.1} parent=11 // pred_region
          _
        $region32: #{tpu_custom_call.1} parent=11 // pred_fallthru
          _
        // Predicated region
        $region33: #{tpu_custom_call.1} parent=11 // pred_check
          %p356 = pneg %p174
        $region34: #{tpu_custom_call.1} parent=11 // pred_check_branch
          %358 = sbr.rel (%p356) target = $region36
        $region35: #{tpu_custom_call.1} parent=11 // pred_region
          _
        $region36: #{tpu_custom_call.1} parent=11 // pred_fallthru
          _
        // Predicated region
        $region37: #{tpu_custom_call.1} parent=11 // pred_check
          %p359 = pneg %p195
        $region38: #{tpu_custom_call.1} parent=11 // pred_check_branch
          %361 = sbr.rel (%p359) target = $region40
        $region39: #{tpu_custom_call.1} parent=11 // pred_region
          _
        $region40: #{tpu_custom_call.1} parent=11 // pred_fallthru
          _
        // Predicated region
        $region41: #{tpu_custom_call.1} parent=11 // pred_check
          %p362 = pneg %p216
        $region42: #{tpu_custom_call.1} parent=11 // pred_check_branch
          %364 = sbr.rel (%p362) target = $region44
        $region43: #{tpu_custom_call.1} parent=11 // pred_region
          _
        $region44: #{tpu_custom_call.1} parent=11 // pred_fallthru
          _
        // Predicated region
        $region45: #{tpu_custom_call.1} parent=11 // pred_check
          %p365 = pneg %p237
        $region46: #{tpu_custom_call.1} parent=11 // pred_check_branch
          %367 = sbr.rel (%p365) target = $region48
        $region47: #{tpu_custom_call.1} parent=11 // pred_region
          _
        $region48: #{tpu_custom_call.1} parent=11 // pred_fallthru
          _
        // Predicated region
        $region49: #{tpu_custom_call.1} parent=11 // pred_check
          %p368 = pneg %p258
        $region50: #{tpu_custom_call.1} parent=11 // pred_check_branch
          %370 = sbr.rel (%p368) target = $region52
        $region51: #{tpu_custom_call.1} parent=11 // pred_region
          _
        $region52: #{tpu_custom_call.1} parent=11 // pred_fallthru
          _
        // Predicated region
        $region53: #{tpu_custom_call.1} parent=11 // pred_check
          %p371 = pneg %p279
        $region54: #{tpu_custom_call.1} parent=11 // pred_check_branch
          %373 = sbr.rel (%p371) target = $region56
        $region55: #{tpu_custom_call.1} parent=11 // pred_region
          _
        $region56: #{tpu_custom_call.1} parent=11 // pred_fallthru
          _
        // Predicated region
        $region57: #{tpu_custom_call.1} parent=11 // pred_check
          %p374 = pneg %p300
        $region58: #{tpu_custom_call.1} parent=11 // pred_check_branch
          %376 = sbr.rel (%p374) target = $region60
        $region59: #{tpu_custom_call.1} parent=11 // pred_region
          _
        $region60: #{tpu_custom_call.1} parent=11 // pred_fallthru
          _
      $region12: #{tpu_custom_call.1} parent=5 // pred_fallthru
        _
      %p377 = scmp.lt.s32.totalorder %s22, 2
      // Predicated region
      $region61: #{tpu_custom_call.1} parent=5 // pred_check
        %p378 = pneg %p377
      $region62: #{tpu_custom_call.1} parent=5 // pred_check_branch
        %380 = sbr.rel (%p378) target = $region64
      $region63: #{tpu_custom_call.1} parent=5 // pred_region
        // Predicated region
        $region65: #{tpu_custom_call.1} parent=63 // pred_check
          %p381 = pneg %p42
        $region66: #{tpu_custom_call.1} parent=63 // pred_check_branch
          %383 = sbr.rel (%p381) target = $region68
        $region67: #{tpu_custom_call.1} parent=63 // pred_region
          %p384 = scmp.lt.s32.totalorder %s22, 1
          %s385 = scalar_select %p384, %s22, 1
          %s386 = smul.addr %s385, 8
          %s387 = scalar_lea.vmem %s0, %s386
        $region68: #{tpu_custom_call.1} parent=63 // pred_fallthru
          _
      $region64: #{tpu_custom_call.1} parent=5 // pred_fallthru
        _
      %p388 = scmp.le.s32.totalorder 1, %s22
      %p389 = scmp.lt.s32.totalorder %s22, 3
      %p390 = pnand %p388, %p389
      %p391 = pneg %p390
      // Predicated region
      $region69: #{tpu_custom_call.1} parent=5 // pred_check
        _
      $region70: #{tpu_custom_call.1} parent=5 // pred_check_branch
        %393 = sbr.rel (%p390) target = $region72
      $region71: #{tpu_custom_call.1} parent=5 // pred_region
        %s394 = ssub.s32 %s22, 1
        %p395 = scmp.lt.s32.totalorder %s27, 1
        %s396 = scalar_select %p395, %s27, 1
        %s397 = smul.addr %s396, 8
        %s398 = scalar_lea.vmem %s0, %s397
        %p399 = pneg %p48
        %p400 = pneg %p45
        %p401 = pneg %p69
        %p402 = pneg %p66
        %p403 = pneg %p90
        %p404 = pneg %p87
        %p405 = pneg %p111
        %p406 = pneg %p108
        %p407 = pneg %p132
        %p408 = pneg %p129
        %p409 = pneg %p153
        %p410 = pneg %p150
        %p411 = pneg %p174
        %p412 = pneg %p171
        %p413 = pneg %p195
        %p414 = pneg %p192
        %p415 = pneg %p216
        %p416 = pneg %p213
        %p417 = pneg %p237
        %p418 = pneg %p234
        %p419 = pneg %p258
        %p420 = pneg %p255
        %p421 = pneg %p279
        %p422 = pneg %p276
        %p423 = pneg %p300
        %p424 = pneg %p297
        %p425 = pneg %p326
        %p426 = pneg %p323
        %s427 = sand.u32 %s313, 1
        %s428 = scalar_lea.sflag [#allocation4], %s427
        %s429 = sand.u32 %s313, 1
        %s430 = smul.addr %s429, 8
        %s431 = scalar_lea.vmem [#allocation3], %s430
        %p432 = scmp.lt.s32.totalorder %s27, 1
        %s433 = scalar_select %p432, %s27, 1
        %s434 = smul.addr %s433, 8
        %s435 = scalar_lea.vmem %s0, %s434
        %v437 = vld [vmem:[%s435] sm:$0xff]
        %v438 = vld [vmem:[%s1] sm:$0x1]
        %v439 = vld [vmem:[%s2] sm:$0x1]
        %vm440 = vcmask 261120
        %v441 = vsel %vm440, %v437, 0.0
        %442 = vadd.xlane.f32.xlu0 %v441
        %v443 = vpop.xlane.xlu0 %442
        %v444 = vrcp.pop 32.0
        %v445 = vmul.f32 %v443, %v444
        %v446 = vsub.f32 %v437, %v445
        %v447 = vmul.f32 %v446, %v446
        %v448 = vsel %vm440, %v447, 0.0
        %449 = vadd.xlane.f32.xlu0 %v448
        %v450 = vpop.xlane.xlu0 %449
        %v451 = vmul.f32 %v450, %v444
        %v452 = vadd.f32 %v451, 1e-05
        %v453 = vrsqrt.pop %v452
        %v454 = vmul.f32 %v446, %v453
        %v456 = vlaneseq
        %v457 = vshrl.u32 %v456, 7
        %v458 = vsub.s32 0, %v457
        %v459 = vrot.slane %v438, %v458
        %v461 = vmul.f32 %v454, %v459
        %v463 = vlaneseq
        %v464 = vshrl.u32 %v463, 7
        %v465 = vsub.s32 0, %v464
        %v466 = vrot.slane %v439, %v465
        %v468 = vadd.f32 %v461, %v466
        %v469 = vpack.c.bf16 %v468, %v468
        %v470 = vld [vmem:[%s3] sm:$0xf]
        %v471 = vld [vmem:[%s3 + $0x4] sm:$0xf]
        %v472 = vld [vmem:[%s3 + $0x8] sm:$0xf]
        %v473 = vld [vmem:[%s3 + $0xc] sm:$0xf]
        %v474 = vld [vmem:[%s4] sm:$0x1]
        %v476 = vlaneseq
        %v477 = vshrl.u32 %v476, 7
        %v478 = vsub.s32 0, %v477
        %v479 = vrot.slane %v474, %v478
        %v485 = vunpack.c.l.b16 %v470
        %v486 = vunpack.c.l.b16 %v471
        %v487 = vunpack.c.l.b16 %v472
        %v488 = vunpack.c.l.b16 %v473
        %v489 = vpack.c.b16 %v486, %v485
        %v490 = vpack.c.b16 %v488, %v487
        %v494 = vsel %vm440, %v469, 0
        %496 = vmatprep.subr.bf16.mxu0 0
        %497 = vmatpush1.bf16.msra.mxu0 0
        %498 = vmatprep.subr.bf16.mxu0 0
        %499 = vmatpush1.bf16.msra.mxu0 0
        %500 = vmatprep.subr.bf16.mxu0 0
        %501 = vmatpush1.bf16.msra.mxu0 0
        %502 = vmatprep.subr.bf16.mxu0 0
        %503 = vmatpush1.bf16.msra.mxu0 0
        %504 = vmatprep.subr.bf16.mxu0 0
        %505 = vmatpush1.bf16.msra.mxu0 0
        %506 = vmatprep.subr.bf16.mxu0 0
        %507 = vmatpush1.bf16.msra.mxu0 0
        %508 = vmatprep.subr.bf16.mxu0 0
        %509 = vmatpush1.bf16.msra.mxu0 %v490
        %510 = vmatprep.subr.bf16.mxu0 0
        %511 = vmatpush1.bf16.msra.mxu0 %v489
        %512 = vmatprep.subr.bf16.mxu0 0
        %513 = vmatpush2.bf16.msra.mxu0 0
        %514 = vmatprep.subr.bf16.mxu0 0
        %515 = vmatpush2.bf16.msra.mxu0 0
        %516 = vmatprep.subr.bf16.mxu0 0
        %517 = vmatpush2.bf16.msra.mxu0 0
        %518 = vmatprep.subr.bf16.mxu0 0
        %519 = vmatpush2.bf16.msra.mxu0 0
        %520 = vmatprep.subr.bf16.mxu0 0
        %521 = vmatpush2.bf16.msra.mxu0 0
        %522 = vmatprep.subr.bf16.mxu0 0
        %523 = vmatpush2.bf16.msra.mxu0 0
        %524 = vmatprep.subr.bf16.mxu0 0
        %525 = vmatpush2.bf16.msra.mxu0 0
        %526 = vmatprep.subr.bf16.mxu0 0
        %527 = vmatpush2.bf16.msra.mxu0 0
        %528 = vmatprep.mubr.bf16.mxu0 0
        %529 = vmatmul.mubr.bf16.gmra.mxu0 %v494
        %v530 = vpop.f32.mrf.mxu0
        %v531 = vadd.f32 %v479, %v530
        %v532 = vpop.f32.mrf.mxu0
        %v533 = vpop.f32.mrf.mxu0
        %v534 = vpop.f32.mrf.mxu0
        %535 = vdwg.mxu0
        %v536 = vpack.c.bf16 %v531, %v531
        %538 = vrot.lane.b32.xlu0 %v536, 96
        %v539 = vpop.permute.xlu0 %538
        %vm540 = vcmask 64512
        %v542 = vsel %vm540, %v536, 0
        %v545 = vsel %vm540, %v539, 0
        %547 = vmatprep.subr.bf16.mxu0 0
        %548 = vmatpush1.bf16.xpose.msra.mxu0 0
        %549 = vmatprep.subr.bf16.mxu0 0
        %550 = vmatpush1.bf16.xpose.msra.mxu0 0
        %551 = vmatprep.subr.bf16.mxu0 0
        %552 = vmatpush1.bf16.xpose.msra.mxu0 0
        %553 = vmatprep.subr.bf16.mxu0 0
        %554 = vmatpush1.bf16.xpose.msra.mxu0 0
        %555 = vmatprep.subr.bf16.mxu0 0
        %556 = vmatpush1.bf16.xpose.msra.mxu0 0
        %557 = vmatprep.subr.bf16.mxu0 0
        %558 = vmatpush1.bf16.xpose.msra.mxu0 0
        %559 = vmatprep.subr.bf16.mxu0 0
        %560 = vmatpush1.bf16.xpose.msra.mxu0 0
        %561 = vmatprep.subr.bf16.mxu0 0
        %562 = vmatpush1.bf16.xpose.msra.mxu0 %v545
        %563 = vmatprep.subr.bf16.mxu0 0
        %564 = vmatpush2.bf16.xpose.msra.mxu0 0
        %565 = vmatprep.subr.bf16.mxu0 0
        %566 = vmatpush2.bf16.xpose.msra.mxu0 0
        %567 = vmatprep.subr.bf16.mxu0 0
        %568 = vmatpush2.bf16.xpose.msra.mxu0 0
        %569 = vmatprep.subr.bf16.mxu0 0
        %570 = vmatpush2.bf16.xpose.msra.mxu0 0
        %571 = vmatprep.subr.bf16.mxu0 0
        %572 = vmatpush2.bf16.xpose.msra.mxu0 0
        %573 = vmatprep.subr.bf16.mxu0 0
        %574 = vmatpush2.bf16.xpose.msra.mxu0 0
        %575 = vmatprep.subr.bf16.mxu0 0
        %576 = vmatpush2.bf16.xpose.msra.mxu0 0
        %577 = vmatprep.subr.bf16.mxu0 0
        %578 = vmatpush2.bf16.xpose.msra.mxu0 0
        %579 = vmatprep.mubr.bf16.mxu0 0
        %580 = vmatmul.mubr.bf16.gmra.mxu0 %v542
        %v581 = vpop.f32.mrf.mxu0
        %v582 = vadd.f32 0.0, %v581
        %v583 = vpop.f32.mrf.mxu0
        %v584 = vpop.f32.mrf.mxu0
        %v585 = vpop.f32.mrf.mxu0
        %586 = vdwg.mxu0
        %v587 = vsel %vm540, %v582, -inf
        %588 = vmax.xlane.f32.xlu0 %v587
        %v589 = vpop.xlane.xlu0 %588
        %v590 = vsub.f32 %v582, %v589
        %v591 = vmul.f32 %v590, 1.442695
        %v592 = vpow.pop %v591
        %v593 = vsel %vm540, %v592, 0.0
        %594 = vadd.xlane.f32.xlu0 %v593
        %v595 = vpop.xlane.xlu0 %594
        %v596 = vrcp.pop %v595
        %v597 = vmul.f32 %v592, %v596
        %v598 = vpack.c.bf16 %v597, %v597
        %599 = vrot.lane.b32.xlu0 %v536, 64
        %v600 = vpop.permute.xlu0 %599
        %v602 = vsel %vm540, %v598, 0
        %vm604 = vcmask 1043456
        %v606 = vsel %vm604, %v600, 0
        %608 = vmatprep.subr.bf16.mxu0 0
        %609 = vmatpush1.bf16.msra.mxu0 0
        %610 = vmatprep.subr.bf16.mxu0 0
        %611 = vmatpush1.bf16.msra.mxu0 0
        %612 = vmatprep.subr.bf16.mxu0 0
        %613 = vmatpush1.bf16.msra.mxu0 0
        %614 = vmatprep.subr.bf16.mxu0 0
        %615 = vmatpush1.bf16.msra.mxu0 0
        %616 = vmatprep.subr.bf16.mxu0 0
        %617 = vmatpush1.bf16.msra.mxu0 0
        %618 = vmatprep.subr.bf16.mxu0 0
        %619 = vmatpush1.bf16.msra.mxu0 0
        %620 = vmatprep.subr.bf16.mxu0 0
        %621 = vmatpush1.bf16.msra.mxu0 0
        %622 = vmatprep.subr.bf16.mxu0 0
        %623 = vmatpush1.bf16.msra.mxu0 %v606
        %624 = vmatprep.subr.bf16.mxu0 0
        %625 = vmatpush2.bf16.msra.mxu0 0
        %626 = vmatprep.subr.bf16.mxu0 0
        %627 = vmatpush2.bf16.msra.mxu0 0
        %628 = vmatprep.subr.bf16.mxu0 0
        %629 = vmatpush2.bf16.msra.mxu0 0
        %630 = vmatprep.subr.bf16.mxu0 0
        %631 = vmatpush2.bf16.msra.mxu0 0
        %632 = vmatprep.subr.bf16.mxu0 0
        %633 = vmatpush2.bf16.msra.mxu0 0
        %634 = vmatprep.subr.bf16.mxu0 0
        %635 = vmatpush2.bf16.msra.mxu0 0
        %636 = vmatprep.subr.bf16.mxu0 0
        %637 = vmatpush2.bf16.msra.mxu0 0
        %638 = vmatprep.subr.bf16.mxu0 0
        %639 = vmatpush2.bf16.msra.mxu0 0
        %640 = vmatprep.mubr.bf16.mxu0 0
        %641 = vmatmul.mubr.bf16.gmra.mxu0 %v602
        %v642 = vpop.f32.mrf.mxu0
        %v643 = vadd.f32 0.0, %v642
        %v644 = vpop.f32.mrf.mxu0
        %v645 = vpop.f32.mrf.mxu0
        %v646 = vpop.f32.mrf.mxu0
        %647 = vdwg.mxu0
        %648 = vst.msk [vmem:[#allocation2] sm:$0xff] %vm540, %v643
        %649 = vrot.lane.b32.xlu0 %v536, 120
        %v650 = vpop.permute.xlu0 %649
        %651 = vrot.lane.b32.xlu0 %v536, 88
        %v652 = vpop.permute.xlu0 %651
        %v654 = vsel %vm540, %v650, 0
        %v657 = vsel %vm540, %v652, 0
        %659 = vmatprep.subr.bf16.mxu0 0
        %660 = vmatpush1.bf16.xpose.msra.mxu0 0
        %661 = vmatprep.subr.bf16.mxu0 0
        %662 = vmatpush1.bf16.xpose.msra.mxu0 0
        %663 = vmatprep.subr.bf16.mxu0 0
        %664 = vmatpush1.bf16.xpose.msra.mxu0 0
        %665 = vmatprep.subr.bf16.mxu0 0
        %666 = vmatpush1.bf16.xpose.msra.mxu0 0
        %667 = vmatprep.subr.bf16.mxu0 0
        %668 = vmatpush1.bf16.xpose.msra.mxu0 0
        %669 = vmatprep.subr.bf16.mxu0 0
        %670 = vmatpush1.bf16.xpose.msra.mxu0 0
        %671 = vmatprep.subr.bf16.mxu0 0
        %672 = vmatpush1.bf16.xpose.msra.mxu0 0
        %673 = vmatprep.subr.bf16.mxu0 0
        %674 = vmatpush1.bf16.xpose.msra.mxu0 %v657
        %675 = vmatprep.subr.bf16.mxu0 0
        %676 = vmatpush2.bf16.xpose.msra.mxu0 0
        %677 = vmatprep.subr.bf16.mxu0 0
        %678 = vmatpush2.bf16.xpose.msra.mxu0 0
        %679 = vmatprep.subr.bf16.mxu0 0
        %680 = vmatpush2.bf16.xpose.msra.mxu0 0
        %681 = vmatprep.subr.bf16.mxu0 0
        %682 = vmatpush2.bf16.xpose.msra.mxu0 0
        %683 = vmatprep.subr.bf16.mxu0 0
        %684 = vmatpush2.bf16.xpose.msra.mxu0 0
        %685 = vmatprep.subr.bf16.mxu0 0
        %686 = vmatpush2.bf16.xpose.msra.mxu0 0
        %687 = vmatprep.subr.bf16.mxu0 0
        %688 = vmatpush2.bf16.xpose.msra.mxu0 0
        %689 = vmatprep.subr.bf16.mxu0 0
        %690 = vmatpush2.bf16.xpose.msra.mxu0 0
        %691 = vmatprep.mubr.bf16.mxu0 0
        %692 = vmatmul.mubr.bf16.gmra.mxu0 %v654
        %v693 = vpop.f32.mrf.mxu0
        %v694 = vadd.f32 0.0, %v693
        %v695 = vpop.f32.mrf.mxu0
        %v696 = vpop.f32.mrf.mxu0
        %v697 = vpop.f32.mrf.mxu0
        %698 = vdwg.mxu0
        %v699 = vsel %vm540, %v694, -inf
        %700 = vmax.xlane.f32.xlu0 %v699
        %v701 = vpop.xlane.xlu0 %700
        %v702 = vsub.f32 %v694, %v701
        %v703 = vmul.f32 %v702, 1.442695
        %v704 = vpow.pop %v703
        %v705 = vsel %vm540, %v704, 0.0
        %706 = vadd.xlane.f32.xlu0 %v705
        %v707 = vpop.xlane.xlu0 %706
        %v708 = vrcp.pop %v707
        %v709 = vmul.f32 %v704, %v708
        %v710 = vpack.c.bf16 %v709, %v709
        %711 = vrot.lane.b32.xlu0 %v536, 56
        %v712 = vpop.permute.xlu0 %711
        %v714 = vsel %vm540, %v710, 0
        %v717 = vsel %vm604, %v712, 0
        %719 = vmatprep.subr.bf16.mxu0 0
        %720 = vmatpush1.bf16.msra.mxu0 0
        %721 = vmatprep.subr.bf16.mxu0 0
        %722 = vmatpush1.bf16.msra.mxu0 0
        %723 = vmatprep.subr.bf16.mxu0 0
        %724 = vmatpush1.bf16.msra.mxu0 0
        %725 = vmatprep.subr.bf16.mxu0 0
        %726 = vmatpush1.bf16.msra.mxu0 0
        %727 = vmatprep.subr.bf16.mxu0 0
        %728 = vmatpush1.bf16.msra.mxu0 0
        %729 = vmatprep.subr.bf16.mxu0 0
        %730 = vmatpush1.bf16.msra.mxu0 0
        %731 = vmatprep.subr.bf16.mxu0 0
        %732 = vmatpush1.bf16.msra.mxu0 0
        %733 = vmatprep.subr.bf16.mxu0 0
        %734 = vmatpush1.bf16.msra.mxu0 %v717
        %735 = vmatprep.subr.bf16.mxu0 0
        %736 = vmatpush2.bf16.msra.mxu0 0
        %737 = vmatprep.subr.bf16.mxu0 0
        %738 = vmatpush2.bf16.msra.mxu0 0
        %739 = vmatprep.subr.bf16.mxu0 0
        %740 = vmatpush2.bf16.msra.mxu0 0
        %741 = vmatprep.subr.bf16.mxu0 0
        %742 = vmatpush2.bf16.msra.mxu0 0
        %743 = vmatprep.subr.bf16.mxu0 0
        %744 = vmatpush2.bf16.msra.mxu0 0
        %745 = vmatprep.subr.bf16.mxu0 0
        %746 = vmatpush2.bf16.msra.mxu0 0
        %747 = vmatprep.subr.bf16.mxu0 0
        %748 = vmatpush2.bf16.msra.mxu0 0
        %749 = vmatprep.subr.bf16.mxu0 0
        %750 = vmatpush2.bf16.msra.mxu0 0
        %751 = vmatprep.mubr.bf16.mxu0 0
        %752 = vmatmul.mubr.bf16.gmra.mxu0 %v714
        %v753 = vpop.f32.mrf.mxu0
        %v754 = vadd.f32 0.0, %v753
        %v755 = vpop.f32.mrf.mxu0
        %v756 = vpop.f32.mrf.mxu0
        %v757 = vpop.f32.mrf.mxu0
        %758 = vdwg.mxu0
        %760 = vrot.lane.b32.xlu0 %v754, 8
        %v761 = vpop.permute.xlu0 %760
        %vm763 = vcmask 130112
        %764 = vst.msk [vmem:[#allocation2] sm:$0xff] %vm763, %v761
        %765 = vrot.lane.b32.xlu0 %v536, 112
        %v766 = vpop.permute.xlu0 %765
        %767 = vrot.lane.b32.xlu0 %v536, 80
        %v768 = vpop.permute.xlu0 %767
        %v770 = vsel %vm540, %v766, 0
        %v773 = vsel %vm540, %v768, 0
        %775 = vmatprep.subr.bf16.mxu0 0
        %776 = vmatpush1.bf16.xpose.msra.mxu0 0
        %777 = vmatprep.subr.bf16.mxu0 0
        %778 = vmatpush1.bf16.xpose.msra.mxu0 0
        %779 = vmatprep.subr.bf16.mxu0 0
        %780 = vmatpush1.bf16.xpose.msra.mxu0 0
        %781 = vmatprep.subr.bf16.mxu0 0
        %782 = vmatpush1.bf16.xpose.msra.mxu0 0
        %783 = vmatprep.subr.bf16.mxu0 0
        %784 = vmatpush1.bf16.xpose.msra.mxu0 0
        %785 = vmatprep.subr.bf16.mxu0 0
        %786 = vmatpush1.bf16.xpose.msra.mxu0 0
        %787 = vmatprep.subr.bf16.mxu0 0
        %788 = vmatpush1.bf16.xpose.msra.mxu0 0
        %789 = vmatprep.subr.bf16.mxu0 0
        %790 = vmatpush1.bf16.xpose.msra.mxu0 %v773
        %791 = vmatprep.subr.bf16.mxu0 0
        %792 = vmatpush2.bf16.xpose.msra.mxu0 0
        %793 = vmatprep.subr.bf16.mxu0 0
        %794 = vmatpush2.bf16.xpose.msra.mxu0 0
        %795 = vmatprep.subr.bf16.mxu0 0
        %796 = vmatpush2.bf16.xpose.msra.mxu0 0
        %797 = vmatprep.subr.bf16.mxu0 0
        %798 = vmatpush2.bf16.xpose.msra.mxu0 0
        %799 = vmatprep.subr.bf16.mxu0 0
        %800 = vmatpush2.bf16.xpose.msra.mxu0 0
        %801 = vmatprep.subr.bf16.mxu0 0
        %802 = vmatpush2.bf16.xpose.msra.mxu0 0
        %803 = vmatprep.subr.bf16.mxu0 0
        %804 = vmatpush2.bf16.xpose.msra.mxu0 0
        %805 = vmatprep.subr.bf16.mxu0 0
        %806 = vmatpush2.bf16.xpose.msra.mxu0 0
        %807 = vmatprep.mubr.bf16.mxu0 0
        %808 = vmatmul.mubr.bf16.gmra.mxu0 %v770
        %v809 = vpop.f32.mrf.mxu0
        %v810 = vadd.f32 0.0, %v809
        %v811 = vpop.f32.mrf.mxu0
        %v812 = vpop.f32.mrf.mxu0
        %v813 = vpop.f32.mrf.mxu0
        %814 = vdwg.mxu0
        %v815 = vsel %vm540, %v810, -inf
        %816 = vmax.xlane.f32.xlu0 %v815
        %v817 = vpop.xlane.xlu0 %816
        %v818 = vsub.f32 %v810, %v817
        %v819 = vmul.f32 %v818, 1.442695
        %v820 = vpow.pop %v819
        %v821 = vsel %vm540, %v820, 0.0
        %822 = vadd.xlane.f32.xlu0 %v821
        %v823 = vpop.xlane.xlu0 %822
        %v824 = vrcp.pop %v823
        %v825 = vmul.f32 %v820, %v824
        %v826 = vpack.c.bf16 %v825, %v825
        %827 = vrot.lane.b32.xlu0 %v536, 48
        %v828 = vpop.permute.xlu0 %827
        %v830 = vsel %vm540, %v826, 0
        %v833 = vsel %vm604, %v828, 0
        %835 = vmatprep.subr.bf16.mxu0 0
        %836 = vmatpush1.bf16.msra.mxu0 0
        %837 = vmatprep.subr.bf16.mxu0 0
        %838 = vmatpush1.bf16.msra.mxu0 0
        %839 = vmatprep.subr.bf16.mxu0 0
        %840 = vmatpush1.bf16.msra.mxu0 0
        %841 = vmatprep.subr.bf16.mxu0 0
        %842 = vmatpush1.bf16.msra.mxu0 0
        %843 = vmatprep.subr.bf16.mxu0 0
        %844 = vmatpush1.bf16.msra.mxu0 0
        %845 = vmatprep.subr.bf16.mxu0 0
        %846 = vmatpush1.bf16.msra.mxu0 0
        %847 = vmatprep.subr.bf16.mxu0 0
        %848 = vmatpush1.bf16.msra.mxu0 0
        %849 = vmatprep.subr.bf16.mxu0 0
        %850 = vmatpush1.bf16.msra.mxu0 %v833
        %851 = vmatprep.subr.bf16.mxu0 0
        %852 = vmatpush2.bf16.msra.mxu0 0
        %853 = vmatprep.subr.bf16.mxu0 0
        %854 = vmatpush2.bf16.msra.mxu0 0
        %855 = vmatprep.subr.bf16.mxu0 0
        %856 = vmatpush2.bf16.msra.mxu0 0
        %857 = vmatprep.subr.bf16.mxu0 0
        %858 = vmatpush2.bf16.msra.mxu0 0
        %859 = vmatprep.subr.bf16.mxu0 0
        %860 = vmatpush2.bf16.msra.mxu0 0
        %861 = vmatprep.subr.bf16.mxu0 0
        %862 = vmatpush2.bf16.msra.mxu0 0
        %863 = vmatprep.subr.bf16.mxu0 0
        %864 = vmatpush2.bf16.msra.mxu0 0
        %865 = vmatprep.subr.bf16.mxu0 0
        %866 = vmatpush2.bf16.msra.mxu0 0
        %867 = vmatprep.mubr.bf16.mxu0 0
        %868 = vmatmul.mubr.bf16.gmra.mxu0 %v830
        %v869 = vpop.f32.mrf.mxu0
        %v870 = vadd.f32 0.0, %v869
        %v871 = vpop.f32.mrf.mxu0
        %v872 = vpop.f32.mrf.mxu0
        %v873 = vpop.f32.mrf.mxu0
        %874 = vdwg.mxu0
        %876 = vrot.lane.b32.xlu0 %v870, 16
        %v877 = vpop.permute.xlu0 %876
        %vm879 = vcmask 195712
        %880 = vst.msk [vmem:[#allocation2] sm:$0xff] %vm879, %v877
        %881 = vrot.lane.b32.xlu0 %v536, 104
        %v882 = vpop.permute.xlu0 %881
        %883 = vrot.lane.b32.xlu0 %v536, 72
        %v884 = vpop.permute.xlu0 %883
        %v886 = vsel %vm540, %v882, 0
        %v889 = vsel %vm540, %v884, 0
        %891 = vmatprep.subr.bf16.mxu0 0
        %892 = vmatpush1.bf16.xpose.msra.mxu0 0
        %893 = vmatprep.subr.bf16.mxu0 0
        %894 = vmatpush1.bf16.xpose.msra.mxu0 0
        %895 = vmatprep.subr.bf16.mxu0 0
        %896 = vmatpush1.bf16.xpose.msra.mxu0 0
        %897 = vmatprep.subr.bf16.mxu0 0
        %898 = vmatpush1.bf16.xpose.msra.mxu0 0
        %899 = vmatprep.subr.bf16.mxu0 0
        %900 = vmatpush1.bf16.xpose.msra.mxu0 0
        %901 = vmatprep.subr.bf16.mxu0 0
        %902 = vmatpush1.bf16.xpose.msra.mxu0 0
        %903 = vmatprep.subr.bf16.mxu0 0
        %904 = vmatpush1.bf16.xpose.msra.mxu0 0
        %905 = vmatprep.subr.bf16.mxu0 0
        %906 = vmatpush1.bf16.xpose.msra.mxu0 %v889
        %907 = vmatprep.subr.bf16.mxu0 0
        %908 = vmatpush2.bf16.xpose.msra.mxu0 0
        %909 = vmatprep.subr.bf16.mxu0 0
        %910 = vmatpush2.bf16.xpose.msra.mxu0 0
        %911 = vmatprep.subr.bf16.mxu0 0
        %912 = vmatpush2.bf16.xpose.msra.mxu0 0
        %913 = vmatprep.subr.bf16.mxu0 0
        %914 = vmatpush2.bf16.xpose.msra.mxu0 0
        %915 = vmatprep.subr.bf16.mxu0 0
        %916 = vmatpush2.bf16.xpose.msra.mxu0 0
        %917 = vmatprep.subr.bf16.mxu0 0
        %918 = vmatpush2.bf16.xpose.msra.mxu0 0
        %919 = vmatprep.subr.bf16.mxu0 0
        %920 = vmatpush2.bf16.xpose.msra.mxu0 0
        %921 = vmatprep.subr.bf16.mxu0 0
        %922 = vmatpush2.bf16.xpose.msra.mxu0 0
        %923 = vmatprep.mubr.bf16.mxu0 0
        %924 = vmatmul.mubr.bf16.gmra.mxu0 %v886
        %v925 = vpop.f32.mrf.mxu0
        %v926 = vadd.f32 0.0, %v925
        %v927 = vpop.f32.mrf.mxu0
        %v928 = vpop.f32.mrf.mxu0
        %v929 = vpop.f32.mrf.mxu0
        %930 = vdwg.mxu0
        %v931 = vsel %vm540, %v926, -inf
        %932 = vmax.xlane.f32.xlu0 %v931
        %v933 = vpop.xlane.xlu0 %932
        %v934 = vsub.f32 %v926, %v933
        %v935 = vmul.f32 %v934, 1.442695
        %v936 = vpow.pop %v935
        %v937 = vsel %vm540, %v936, 0.0
        %938 = vadd.xlane.f32.xlu0 %v937
        %v939 = vpop.xlane.xlu0 %938
        %v940 = vrcp.pop %v939
        %v941 = vmul.f32 %v936, %v940
        %v942 = vpack.c.bf16 %v941, %v941
        %943 = vrot.lane.b32.xlu0 %v536, 40
        %v944 = vpop.permute.xlu0 %943
        %v946 = vsel %vm540, %v942, 0
        %v949 = vsel %vm604, %v944, 0
        %951 = vmatprep.subr.bf16.mxu0 0
        %952 = vmatpush1.bf16.msra.mxu0 0
        %953 = vmatprep.subr.bf16.mxu0 0
        %954 = vmatpush1.bf16.msra.mxu0 0
        %955 = vmatprep.subr.bf16.mxu0 0
        %956 = vmatpush1.bf16.msra.mxu0 0
        %957 = vmatprep.subr.bf16.mxu0 0
        %958 = vmatpush1.bf16.msra.mxu0 0
        %959 = vmatprep.subr.bf16.mxu0 0
        %960 = vmatpush1.bf16.msra.mxu0 0
        %961 = vmatprep.subr.bf16.mxu0 0
        %962 = vmatpush1.bf16.msra.mxu0 0
        %963 = vmatprep.subr.bf16.mxu0 0
        %964 = vmatpush1.bf16.msra.mxu0 0
        %965 = vmatprep.subr.bf16.mxu0 0
        %966 = vmatpush1.bf16.msra.mxu0 %v949
        %967 = vmatprep.subr.bf16.mxu0 0
        %968 = vmatpush2.bf16.msra.mxu0 0
        %969 = vmatprep.subr.bf16.mxu0 0
        %970 = vmatpush2.bf16.msra.mxu0 0
        %971 = vmatprep.subr.bf16.mxu0 0
        %972 = vmatpush2.bf16.msra.mxu0 0
        %973 = vmatprep.subr.bf16.mxu0 0
        %974 = vmatpush2.bf16.msra.mxu0 0
        %975 = vmatprep.subr.bf16.mxu0 0
        %976 = vmatpush2.bf16.msra.mxu0 0
        %977 = vmatprep.subr.bf16.mxu0 0
        %978 = vmatpush2.bf16.msra.mxu0 0
        %979 = vmatprep.subr.bf16.mxu0 0
        %980 = vmatpush2.bf16.msra.mxu0 0
        %981 = vmatprep.subr.bf16.mxu0 0
        %982 = vmatpush2.bf16.msra.mxu0 0
        %983 = vmatprep.mubr.bf16.mxu0 0
        %984 = vmatmul.mubr.bf16.gmra.mxu0 %v946
        %v985 = vpop.f32.mrf.mxu0
        %v986 = vadd.f32 0.0, %v985
        %v987 = vpop.f32.mrf.mxu0
        %v988 = vpop.f32.mrf.mxu0
        %v989 = vpop.f32.mrf.mxu0
        %990 = vdwg.mxu0
        %992 = vrot.lane.b32.xlu0 %v986, 24
        %v993 = vpop.permute.xlu0 %992
        %vm995 = vcmask 261312
        %996 = vst.msk [vmem:[#allocation2] sm:$0xff] %vm995, %v993
        %v997 = vld [vmem:[#allocation2] sm:$0xff]
        %v998 = vpack.c.bf16 %v997, %v997
        %v999 = vld [vmem:[%s5] sm:$0xf]
        %v1000 = vld [vmem:[%s5 + $0x4] sm:$0xf]
        %v1001 = vld [vmem:[%s5 + $0x8] sm:$0xf]
        %v1002 = vld [vmem:[%s5 + $0xc] sm:$0xf]
        %v1003 = vld [vmem:[%s6] sm:$0x1]
        %v1005 = vlaneseq
        %v1006 = vshrl.u32 %v1005, 7
        %v1007 = vsub.s32 0, %v1006
        %v1008 = vrot.slane %v1003, %v1007
        %v1014 = vunpack.c.l.b16 %v999
        %v1015 = vunpack.c.l.b16 %v1000
        %v1016 = vunpack.c.l.b16 %v1001
        %v1017 = vunpack.c.l.b16 %v1002
        %v1018 = vpack.c.b16 %v1015, %v1014
        %v1019 = vpack.c.b16 %v1017, %v1016
        %v1023 = vsel %vm440, %v998, 0
        %1025 = vmatprep.subr.bf16.mxu0 0
        %1026 = vmatpush1.bf16.msra.mxu0 0
        %1027 = vmatprep.subr.bf16.mxu0 0
        %1028 = vmatpush1.bf16.msra.mxu0 0
        %1029 = vmatprep.subr.bf16.mxu0 0
        %1030 = vmatpush1.bf16.msra.mxu0 0
        %1031 = vmatprep.subr.bf16.mxu0 0
        %1032 = vmatpush1.bf16.msra.mxu0 0
        %1033 = vmatprep.subr.bf16.mxu0 0
        %1034 = vmatpush1.bf16.msra.mxu0 0
        %1035 = vmatprep.subr.bf16.mxu0 0
        %1036 = vmatpush1.bf16.msra.mxu0 0
        %1037 = vmatprep.subr.bf16.mxu0 0
        %1038 = vmatpush1.bf16.msra.mxu0 %v1019
        %1039 = vmatprep.subr.bf16.mxu0 0
        %1040 = vmatpush1.bf16.msra.mxu0 %v1018
        %1041 = vmatprep.subr.bf16.mxu0 0
        %1042 = vmatpush2.bf16.msra.mxu0 0
        %1043 = vmatprep.subr.bf16.mxu0 0
        %1044 = vmatpush2.bf16.msra.mxu0 0
        %1045 = vmatprep.subr.bf16.mxu0 0
        %1046 = vmatpush2.bf16.msra.mxu0 0
        %1047 = vmatprep.subr.bf16.mxu0 0
        %1048 = vmatpush2.bf16.msra.mxu0 0
        %1049 = vmatprep.subr.bf16.mxu0 0
        %1050 = vmatpush2.bf16.msra.mxu0 0
        %1051 = vmatprep.subr.bf16.mxu0 0
        %1052 = vmatpush2.bf16.msra.mxu0 0
        %1053 = vmatprep.subr.bf16.mxu0 0
        %1054 = vmatpush2.bf16.msra.mxu0 0
        %1055 = vmatprep.subr.bf16.mxu0 0
        %1056 = vmatpush2.bf16.msra.mxu0 0
        %1057 = vmatprep.mubr.bf16.mxu0 0
        %1058 = vmatmul.mubr.bf16.gmra.mxu0 %v1023
        %v1059 = vpop.f32.mrf.mxu0
        %v1060 = vadd.f32 %v1008, %v1059
        %v1061 = vpop.f32.mrf.mxu0
        %v1062 = vpop.f32.mrf.mxu0
        %v1063 = vpop.f32.mrf.mxu0
        %1064 = vdwg.mxu0
        %v1065 = vadd.f32 %v437, %v1060
        %v1066 = vld [vmem:[%s7] sm:$0x1]
        %v1067 = vld [vmem:[%s8] sm:$0x1]
        %v1068 = vsel %vm440, %v1065, 0.0
        %1069 = vadd.xlane.f32.xlu0 %v1068
        %v1070 = vpop.xlane.xlu0 %1069
        %v1071 = vmul.f32 %v1070, %v444
        %v1072 = vsub.f32 %v1065, %v1071
        %v1073 = vmul.f32 %v1072, %v1072
        %v1074 = vsel %vm440, %v1073, 0.0
        %1075 = vadd.xlane.f32.xlu0 %v1074
        %v1076 = vpop.xlane.xlu0 %1075
        %v1077 = vmul.f32 %v1076, %v444
        %v1078 = vadd.f32 %v1077, 1e-05
        %v1079 = vrsqrt.pop %v1078
        %v1080 = vmul.f32 %v1072, %v1079
        %v1082 = vlaneseq
        %v1083 = vshrl.u32 %v1082, 7
        %v1084 = vsub.s32 0, %v1083
        %v1085 = vrot.slane %v1066, %v1084
        %v1087 = vmul.f32 %v1080, %v1085
        %v1089 = vlaneseq
        %v1090 = vshrl.u32 %v1089, 7
        %v1091 = vsub.s32 0, %v1090
        %v1092 = vrot.slane %v1067, %v1091
        %v1094 = vadd.f32 %v1087, %v1092
        %v1095 = vpack.c.bf16 %v1094, %v1094
        %v1096 = vld [vmem:[%s9] sm:$0xf]
        %v1097 = vld [vmem:[%s9 + $0x4] sm:$0xf]
        %v1098 = vld [vmem:[%s9 + $0x8] sm:$0xf]
        %v1099 = vld [vmem:[%s9 + $0xc] sm:$0xf]
        %v1100 = vld [vmem:[%s10] sm:$0x1]
        %v1102 = vlaneseq
        %v1103 = vshrl.u32 %v1102, 7
        %v1104 = vsub.s32 0, %v1103
        %v1105 = vrot.slane %v1100, %v1104
        %v1111 = vunpack.c.l.b16 %v1096
        %v1112 = vunpack.c.l.b16 %v1097
        %v1113 = vunpack.c.l.b16 %v1098
        %v1114 = vunpack.c.l.b16 %v1099
        %v1115 = vpack.c.b16 %v1112, %v1111
        %v1116 = vpack.c.b16 %v1114, %v1113
        %v1120 = vsel %vm440, %v1095, 0
        %1122 = vmatprep.subr.bf16.mxu0 0
        %1123 = vmatpush1.bf16.msra.mxu0 0
        %1124 = vmatprep.subr.bf16.mxu0 0
        %1125 = vmatpush1.bf16.msra.mxu0 0
        %1126 = vmatprep.subr.bf16.mxu0 0
        %1127 = vmatpush1.bf16.msra.mxu0 0
        %1128 = vmatprep.subr.bf16.mxu0 0
        %1129 = vmatpush1.bf16.msra.mxu0 0
        %1130 = vmatprep.subr.bf16.mxu0 0
        %1131 = vmatpush1.bf16.msra.mxu0 0
        %1132 = vmatprep.subr.bf16.mxu0 0
        %1133 = vmatpush1.bf16.msra.mxu0 0
        %1134 = vmatprep.subr.bf16.mxu0 0
        %1135 = vmatpush1.bf16.msra.mxu0 %v1116
        %1136 = vmatprep.subr.bf16.mxu0 0
        %1137 = vmatpush1.bf16.msra.mxu0 %v1115
        %1138 = vmatprep.subr.bf16.mxu0 0
        %1139 = vmatpush2.bf16.msra.mxu0 0
        %1140 = vmatprep.subr.bf16.mxu0 0
        %1141 = vmatpush2.bf16.msra.mxu0 0
        %1142 = vmatprep.subr.bf16.mxu0 0
        %1143 = vmatpush2.bf16.msra.mxu0 0
        %1144 = vmatprep.subr.bf16.mxu0 0
        %1145 = vmatpush2.bf16.msra.mxu0 0
        %1146 = vmatprep.subr.bf16.mxu0 0
        %1147 = vmatpush2.bf16.msra.mxu0 0
        %1148 = vmatprep.subr.bf16.mxu0 0
        %1149 = vmatpush2.bf16.msra.mxu0 0
        %1150 = vmatprep.subr.bf16.mxu0 0
        %1151 = vmatpush2.bf16.msra.mxu0 0
        %1152 = vmatprep.subr.bf16.mxu0 0
        %1153 = vmatpush2.bf16.msra.mxu0 0
        %1154 = vmatprep.mubr.bf16.mxu0 0
        %1155 = vmatmul.mubr.bf16.gmra.mxu0 %v1120
        %v1156 = vpop.f32.mrf.mxu0
        %v1157 = vadd.f32 %v1105, %v1156
        %v1158 = vpop.f32.mrf.mxu0
        %v1159 = vpop.f32.mrf.mxu0
        %v1160 = vpop.f32.mrf.mxu0
        %1161 = vdwg.mxu0
        %v1162 = vmul.f32 %v1157, 1.702
        %v1163 = vxor.u32 %v1162, 2147483648
        %v1164 = vmul.f32 %v1163, 1.442695
        %v1165 = vpow.pop %v1164
        %v1166 = vadd.f32 %v1165, 1.0
        %v1167 = vrcp.pop %v1166
        %v1168 = vmul.f32 1.0, %v1167
        %v1169 = vmul.f32 %v1157, %v1168
        %v1170 = vpack.c.bf16 %v1169, %v1169
        %v1171 = vld [vmem:[%s11] sm:$0xf]
        %v1172 = vld [vmem:[%s11 + $0x4] sm:$0xf]
        %v1173 = vld [vmem:[%s11 + $0x8] sm:$0xf]
        %v1174 = vld [vmem:[%s11 + $0xc] sm:$0xf]
        %v1175 = vld [vmem:[%s11 + $0x10] sm:$0xf]
        %v1176 = vld [vmem:[%s11 + $0x14] sm:$0xf]
        %v1177 = vld [vmem:[%s11 + $0x18] sm:$0xf]
        %v1178 = vld [vmem:[%s11 + $0x1c] sm:$0xf]
        %v1179 = vld [vmem:[%s11 + $0x20] sm:$0xf]
        %v1180 = vld [vmem:[%s11 + $0x24] sm:$0xf]
        %v1181 = vld [vmem:[%s11 + $0x28] sm:$0xf]
        %v1182 = vld [vmem:[%s11 + $0x2c] sm:$0xf]
        %v1183 = vld [vmem:[%s11 + $0x30] sm:$0xf]
        %v1184 = vld [vmem:[%s11 + $0x34] sm:$0xf]
        %v1185 = vld [vmem:[%s11 + $0x38] sm:$0xf]
        %v1186 = vld [vmem:[%s11 + $0x3c] sm:$0xf]
        %v1187 = vld [vmem:[%s12] sm:$0x1]
        %v1189 = vlaneseq
        %v1190 = vshrl.u32 %v1189, 7
        %v1191 = vsub.s32 0, %v1190
        %v1192 = vrot.slane %v1187, %v1191
        %v1210 = vunpack.c.l.b16 %v1171
        %v1211 = vunpack.c.l.b16 %v1172
        %v1212 = vunpack.c.l.b16 %v1173
        %v1213 = vunpack.c.l.b16 %v1174
        %v1214 = vunpack.c.l.b16 %v1175
        %v1215 = vunpack.c.l.b16 %v1176
        %v1216 = vunpack.c.l.b16 %v1177
        %v1217 = vunpack.c.l.b16 %v1178
        %v1218 = vunpack.c.l.b16 %v1179
        %v1219 = vunpack.c.l.b16 %v1180
        %v1220 = vunpack.c.l.b16 %v1181
        %v1221 = vunpack.c.l.b16 %v1182
        %v1222 = vunpack.c.l.b16 %v1183
        %v1223 = vunpack.c.l.b16 %v1184
        %v1224 = vunpack.c.l.b16 %v1185
        %v1225 = vunpack.c.l.b16 %v1186
        %v1226 = vpack.c.b16 %v1211, %v1210
        %v1227 = vpack.c.b16 %v1213, %v1212
        %v1228 = vpack.c.b16 %v1215, %v1214
        %v1229 = vpack.c.b16 %v1217, %v1216
        %v1230 = vpack.c.b16 %v1219, %v1218
        %v1231 = vpack.c.b16 %v1221, %v1220
        %v1232 = vpack.c.b16 %v1223, %v1222
        %v1233 = vpack.c.b16 %v1225, %v1224
        %1242 = vmatprep.subr.bf16.mxu0 0
        %1243 = vmatpush1.bf16.msra.mxu0 %v1233
        %1244 = vmatprep.subr.bf16.mxu0 0
        %1245 = vmatpush1.bf16.msra.mxu0 %v1232
        %1246 = vmatprep.subr.bf16.mxu0 0
        %1247 = vmatpush1.bf16.msra.mxu0 %v1231
        %1248 = vmatprep.subr.bf16.mxu0 0
        %1249 = vmatpush1.bf16.msra.mxu0 %v1230
        %1250 = vmatprep.subr.bf16.mxu0 0
        %1251 = vmatpush1.bf16.msra.mxu0 %v1229
        %1252 = vmatprep.subr.bf16.mxu0 0
        %1253 = vmatpush1.bf16.msra.mxu0 %v1228
        %1254 = vmatprep.subr.bf16.mxu0 0
        %1255 = vmatpush1.bf16.msra.mxu0 %v1227
        %1256 = vmatprep.subr.bf16.mxu0 0
        %1257 = vmatpush1.bf16.msra.mxu0 %v1226
        %1258 = vmatprep.subr.bf16.mxu0 0
        %1259 = vmatpush2.bf16.msra.mxu0 0
        %1260 = vmatprep.subr.bf16.mxu0 0
        %1261 = vmatpush2.bf16.msra.mxu0 0
        %1262 = vmatprep.subr.bf16.mxu0 0
        %1263 = vmatpush2.bf16.msra.mxu0 0
        %1264 = vmatprep.subr.bf16.mxu0 0
        %1265 = vmatpush2.bf16.msra.mxu0 0
        %1266 = vmatprep.subr.bf16.mxu0 0
        %1267 = vmatpush2.bf16.msra.mxu0 0
        %1268 = vmatprep.subr.bf16.mxu0 0
        %1269 = vmatpush2.bf16.msra.mxu0 0
        %1270 = vmatprep.subr.bf16.mxu0 0
        %1271 = vmatpush2.bf16.msra.mxu0 0
        %1272 = vmatprep.subr.bf16.mxu0 0
        %1273 = vmatpush2.bf16.msra.mxu0 0
        %1274 = vmatprep.mubr.bf16.mxu0 0
        %1275 = vmatmul.mubr.bf16.gmra.mxu0 %v1170
        %v1276 = vpop.f32.mrf.mxu0
        %v1277 = vadd.f32 %v1192, %v1276
        %v1278 = vpop.f32.mrf.mxu0
        %v1279 = vpop.f32.mrf.mxu0
        %v1280 = vpop.f32.mrf.mxu0
        %1281 = vdwg.mxu0
        %v1282 = vadd.f32 %v1065, %v1277
        %1283 = vst.msk [vmem:[%s431] sm:$0xff] %vm440, %v1282
        %s1284 = sand.u32 %s313, 1
        %s1285 = scalar_lea.sflag [#allocation4], %s1284
        %s1286 = sand.u32 %s313, 1
        %s1287 = smul.addr %s1286, 8
        %s1288 = scalar_lea.vmem [#allocation3], %s1287
        // Predicated region
        $region73: #{tpu_custom_call.1} parent=71 // pred_check
          %p1289 = pneg %p323
        $region74: #{tpu_custom_call.1} parent=71 // pred_check_branch
          %1291 = sbr.rel (%p1289) target = $region76
        $region75: #{tpu_custom_call.1} parent=71 // pred_region
          %s1293 = ssub.s32 128, 128
          %1294 = vsyncadd %s1285, %s1293
          %s1295 = smul.addr %s27, 128
          %s1296 = scalar_lea.hbm %s13, %s1295
          %s1298 = sshll.u32 %s1288, 4
          %s1299 = int_to_ptr.vmem [resolvable:$true] %s1298
          %1301 = dma.vmem_to_hbm [thread:$0]  %s1299, 128, %s1296, %s1285
        $region76: #{tpu_custom_call.1} parent=71 // pred_fallthru
          _
      $region72: #{tpu_custom_call.1} parent=5 // pred_fallthru
        _
      %p1302 = scmp.le.s32.totalorder 2, %s22
      // Predicated region
      $region77: #{tpu_custom_call.1} parent=5 // pred_check
        %p1303 = pneg %p1302
      $region78: #{tpu_custom_call.1} parent=5 // pred_check_branch
        %1305 = sbr.rel (%p1303) target = $region80
      $region79: #{tpu_custom_call.1} parent=5 // pred_region
        %s1306 = ssub.s32 %s22, 2
        // Predicated region
        $region81: #{tpu_custom_call.1} parent=79 // pred_check
          %p1307 = pneg %p329
        $region82: #{tpu_custom_call.1} parent=79 // pred_check_branch
          %1309 = sbr.rel (%p1307) target = $region84
        $region83: #{tpu_custom_call.1} parent=79 // pred_region
          %s1310 = sand.u32 %s314, 1
          %s1311 = scalar_lea.sflag [#allocation4], %s1310
          %s1312 = sand.u32 %s314, 1
          %s1313 = smul.addr %s1312, 8
          %s1314 = scalar_lea.vmem [#allocation3], %s1313
          %1315 = dma.done %s1311, 128
        $region84: #{tpu_custom_call.1} parent=79 // pred_fallthru
          _
      $region80: #{tpu_custom_call.1} parent=5 // pred_fallthru
        _
    $region6: #{tpu_custom_call.1} parent=1 // loop_footer
      %s26 = sadd.s32 1, %s22
    $region7: #{tpu_custom_call.1} parent=1 // loop_footer_branch
      %21 = sbr.rel target = $region3
    $region8: #{tpu_custom_call.1} parent=1 // loop_exit
      _
    %1316 = vsyncpa [#allocation4], 1
    %s1317 = scalar_lea.sflag [#allocation4], 1
    %1318 = vsyncpa %s1317, 1

// kernel: tpu_custom_call.1
$region0: #{tpu_custom_call.1}
  #allocation0 [shape = 'u32[]', space=smem, size = 0x4, offset = 0x4, fixed_abs, tag = 'smem constant byte address 0x4 - core index']
  #allocation1 [shape = 'u32[144,128]{1,0:T(1,128)}', space=vmem, size = 0x12000, scoped, tag = 'internal scratch']
  #allocation2 [shape = 'f32[8,32]{1,0:T(8,128)}', space=vmem, size = 0x1000, scoped, tag = 'scratch operand']
  %s0 = inlined_call_operand.vmem [shape: f32[2,8,32], index: 0, kind: input, shape index: {}]
  %s1 = inlined_call_operand.vmem [shape: f32[1,32], index: 1, kind: input, shape index: {}]
  %s2 = inlined_call_operand.vmem [shape: f32[1,32], index: 2, kind: input, shape index: {}]
  %s3 = inlined_call_operand.vmem [shape: bf16[32,96], index: 3, kind: input, shape index: {}]
  %s4 = inlined_call_operand.vmem [shape: f32[1,96], index: 4, kind: input, shape index: {}]
  %s5 = inlined_call_operand.vmem [shape: bf16[32,32], index: 5, kind: input, shape index: {}]
  %s6 = inlined_call_operand.vmem [shape: f32[1,32], index: 6, kind: input, shape index: {}]
  %s7 = inlined_call_operand.vmem [shape: f32[1,32], index: 7, kind: input, shape index: {}]
  %s8 = inlined_call_operand.vmem [shape: f32[1,32], index: 8, kind: input, shape index: {}]
  %s9 = inlined_call_operand.vmem [shape: bf16[32,128], index: 9, kind: input, shape index: {}]
  %s10 = inlined_call_operand.vmem [shape: f32[1,128], index: 10, kind: input, shape index: {}]
  %s11 = inlined_call_operand.vmem [shape: bf16[128,32], index: 11, kind: input, shape index: {}]
  %s12 = inlined_call_operand.vmem [shape: f32[1,32], index: 12, kind: input, shape index: {}]
  %s13 = inlined_call_operand.hbm [shape: f32[2,8,32], index: 13, kind: output, shape index: {}]
  %s14 = sld [smem:[#allocation0]]
  $region85: #{tpu_custom_call.1} parent=0
    _
  %s16 = ssub.s32 1, %s14
  %s17 = scalar_select 0, %s16, %s14
  $region1: #{tpu_custom_call.1} parent=0
    #allocation3 [shape = 'u8[8192]{0}', space=vmem, size = 0x2000, scoped, tag = 'output window, operand 0']
    #allocation4 [shape = 's32[2]{0}', space=sflag, size = 0x8, scoped, tag = 'scoped memory for tpu_custom_call.1']
    %18 = vsyncpa [#allocation4], 0
    %s19 = scalar_lea.sflag [#allocation4], 1
    %20 = vsyncpa %s19, 0
    loop: start=0, step=1, limit=4
    $region2: #{tpu_custom_call.1} parent=1 // loop_pre_header
      _
    $region3: #{tpu_custom_call.1} parent=1 // loop_header
      %s22 = sphi 0, %s26
      %p23 = scmp.ge.s32.totalorder %s22, 4
      %s32 = sphi 0, %s34
      %s35 = sphi 0, %s32
      %s36 = sphi 0, %s35
      %s52 = sphi 0, %s36
      %s56 = sphi 0, %s56
      %s58 = sphi 0, %s56
      %s59 = sphi 0, %s58
      %s73 = sphi 0, %s59
      %s77 = sphi 0, %s77
      %s79 = sphi 0, %s77
      %s80 = sphi 0, %s79
      %s94 = sphi 0, %s80
      %s98 = sphi 0, %s98
      %s100 = sphi 0, %s98
      %s101 = sphi 0, %s100
      %s115 = sphi 0, %s101
      %s119 = sphi 0, %s119
      %s121 = sphi 0, %s119
      %s122 = sphi 0, %s121
      %s136 = sphi 0, %s122
      %s140 = sphi 0, %s140
      %s142 = sphi 0, %s140
      %s143 = sphi 0, %s142
      %s157 = sphi 0, %s143
      %s161 = sphi 0, %s161
      %s163 = sphi 0, %s161
      %s164 = sphi 0, %s163
      %s178 = sphi 0, %s164
      %s182 = sphi 0, %s182
      %s184 = sphi 0, %s182
      %s185 = sphi 0, %s184
      %s199 = sphi 0, %s185
      %s203 = sphi 0, %s203
      %s205 = sphi 0, %s203
      %s206 = sphi 0, %s205
      %s220 = sphi 0, %s206
      %s224 = sphi 0, %s224
      %s226 = sphi 0, %s224
      %s227 = sphi 0, %s226
      %s241 = sphi 0, %s227
      %s245 = sphi 0, %s245
      %s247 = sphi 0, %s245
      %s248 = sphi 0, %s247
      %s262 = sphi 0, %s248
      %s266 = sphi 0, %s266
      %s268 = sphi 0, %s266
      %s269 = sphi 0, %s268
      %s283 = sphi 0, %s269
      %s287 = sphi 0, %s287
      %s289 = sphi 0, %s287
      %s290 = sphi 0, %s289
      %s304 = sphi 0, %s290
      %s310 = sphi 0, %s312
      %s313 = sphi 0, %s310
      %s314 = sphi 0, %s313
      %s330 = sphi 0, %s314
    $region4: #{tpu_custom_call.1} parent=1 // loop_header_branch
      %25 = sbr.rel (%p23) target = $region8
    $region5: #{tpu_custom_call.1} parent=1 // loop_body
      %s27 = ssub.s32 %s22, 1
      %s28 = ssub.s32 %s22, 2
      %s29 = sadd.s32 %s22, 1
      %s30 = ssub.s32 %s22, %s29
      %p31 = scmp.eq.s32.totalorder %s30, 0
      %s33 = sadd.s32 %s32, 1
      %s34 = scalar_select %p31, %s32, %s33
      %p37 = pneg %p31
      %p38 = scmp.eq.s32.totalorder %s22, 1
      %p39 = por %p37, %p38
      %p40 = scmp.ne.s32.totalorder %s32, %s35
      %p41 = scmp.eq.s32.totalorder %s22, 0
      %p42 = por %p40, %p41
      %p43 = scmp.ne.s32.totalorder %s32, %s35
      %p44 = scmp.eq.s32.totalorder %s27, 1
      %p45 = por %p43, %p44
      %p46 = scmp.ne.s32.totalorder %s35, %s36
      %p47 = scmp.eq.s32.totalorder %s27, 0
      %p48 = por %p46, %p47
      %p49 = scmp.ne.s32.totalorder %s35, %s36
      %p50 = scmp.eq.s32.totalorder %s28, 1
      %p51 = por %p49, %p50
      %p53 = scmp.ne.s32.totalorder %s36, %s52
      %p54 = scmp.eq.s32.totalorder %s28, 0
      %p55 = por %p53, %p54
      %s57 = sadd.s32 %s56, 1
      %p60 = scmp.eq.s32.totalorder %s22, 1
      %p61 = scmp.ne.s32.totalorder %s56, %s58
      %p62 = scmp.eq.s32.totalorder %s22, 0
      %p63 = por %p61, %p62
      %p64 = scmp.ne.s32.totalorder %s56, %s58
      %p65 = scmp.eq.s32.totalorder %s27, 1
      %p66 = por %p64, %p65
      %p67 = scmp.ne.s32.totalorder %s58, %s59
      %p68 = scmp.eq.s32.totalorder %s27, 0
      %p69 = por %p67, %p68
      %p70 = scmp.ne.s32.totalorder %s58, %s59
      %p71 = scmp.eq.s32.totalorder %s28, 1
      %p72 = por %p70, %p71
      %p74 = scmp.ne.s32.totalorder %s59, %s73
      %p75 = scmp.eq.s32.totalorder %s28, 0
      %p76 = por %p74, %p75
      %s78 = sadd.s32 %s77, 1
      %p81 = scmp.eq.s32.totalorder %s22, 1
      %p82 = scmp.ne.s32.totalorder %s77, %s79
      %p83 = scmp.eq.s32.totalorder %s22, 0
      %p84 = por %p82, %p83
      %p85 = scmp.ne.s32.totalorder %s77, %s79
      %p86 = scmp.eq.s32.totalorder %s27, 1
      %p87 = por %p85, %p86
      %p88 = scmp.ne.s32.totalorder %s79, %s80
      %p89 = scmp.eq.s32.totalorder %s27, 0
      %p90 = por %p88, %p89
      %p91 = scmp.ne.s32.totalorder %s79, %s80
      %p92 = scmp.eq.s32.totalorder %s28, 1
      %p93 = por %p91, %p92
      %p95 = scmp.ne.s32.totalorder %s80, %s94
      %p96 = scmp.eq.s32.totalorder %s28, 0
      %p97 = por %p95, %p96
      %s99 = sadd.s32 %s98, 1
      %p102 = scmp.eq.s32.totalorder %s22, 1
      %p103 = scmp.ne.s32.totalorder %s98, %s100
      %p104 = scmp.eq.s32.totalorder %s22, 0
      %p105 = por %p103, %p104
      %p106 = scmp.ne.s32.totalorder %s98, %s100
      %p107 = scmp.eq.s32.totalorder %s27, 1
      %p108 = por %p106, %p107
      %p109 = scmp.ne.s32.totalorder %s100, %s101
      %p110 = scmp.eq.s32.totalorder %s27, 0
      %p111 = por %p109, %p110
      %p112 = scmp.ne.s32.totalorder %s100, %s101
      %p113 = scmp.eq.s32.totalorder %s28, 1
      %p114 = por %p112, %p113
      %p116 = scmp.ne.s32.totalorder %s101, %s115
      %p117 = scmp.eq.s32.totalorder %s28, 0
      %p118 = por %p116, %p117
      %s120 = sadd.s32 %s119, 1
      %p123 = scmp.eq.s32.totalorder %s22, 1
      %p124 = scmp.ne.s32.totalorder %s119, %s121
      %p125 = scmp.eq.s32.totalorder %s22, 0
      %p126 = por %p124, %p125
      %p127 = scmp.ne.s32.totalorder %s119, %s121
      %p128 = scmp.eq.s32.totalorder %s27, 1
      %p129 = por %p127, %p128
      %p130 = scmp.ne.s32.totalorder %s121, %s122
      %p131 = scmp.eq.s32.totalorder %s27, 0
      %p132 = por %p130, %p131
      %p133 = scmp.ne.s32.totalorder %s121, %s122
      %p134 = scmp.eq.s32.totalorder %s28, 1
      %p135 = por %p133, %p134
      %p137 = scmp.ne.s32.totalorder %s122, %s136
      %p138 = scmp.eq.s32.totalorder %s28, 0
      %p139 = por %p137, %p138
      %s141 = sadd.s32 %s140, 1
      %p144 = scmp.eq.s32.totalorder %s22, 1
      %p145 = scmp.ne.s32.totalorder %s140, %s142
      %p146 = scmp.eq.s32.totalorder %s22, 0
      %p147 = por %p145, %p146
      %p148 = scmp.ne.s32.totalorder %s140, %s142
      %p149 = scmp.eq.s32.totalorder %s27, 1
      %p150 = por %p148, %p149
      %p151 = scmp.ne.s32.totalorder %s142, %s143
      %p152 = scmp.eq.s32.totalorder %s27, 0
      %p153 = por %p151, %p152
      %p154 = scmp.ne.s32.totalorder %s142, %s143
      %p155 = scmp.eq.s32.totalorder %s28, 1
      %p156 = por %p154, %p155
      %p158 = scmp.ne.s32.totalorder %s143, %s157
      %p159 = scmp.eq.s32.totalorder %s28, 0
      %p160 = por %p158, %p159
      %s162 = sadd.s32 %s161, 1
      %p165 = scmp.eq.s32.totalorder %s22, 1
      %p166 = scmp.ne.s32.totalorder %s161, %s163
      %p167 = scmp.eq.s32.totalorder %s22, 0
      %p168 = por %p166, %p167
      %p169 = scmp.ne.s32.totalorder %s161, %s163
      %p170 = scmp.eq.s32.totalorder %s27, 1
      %p171 = por %p169, %p170
      %p172 = scmp.ne.s32.totalorder %s163, %s164
      %p173 = scmp.eq.s32.totalorder %s27, 0
      %p174 = por %p172, %p173
      %p175 = scmp.ne.s32.totalorder %s163, %s164
      %p176 = scmp.eq.s32.totalorder %s28, 1
      %p177 = por %p175, %p176
      %p179 = scmp.ne.s32.totalorder %s164, %s178
      %p180 = scmp.eq.s32.totalorder %s28, 0
      %p181 = por %p179, %p180
      %s183 = sadd.s32 %s182, 1
      %p186 = scmp.eq.s32.totalorder %s22, 1
      %p187 = scmp.ne.s32.totalorder %s182, %s184
      %p188 = scmp.eq.s32.totalorder %s22, 0
      %p189 = por %p187, %p188
      %p190 = scmp.ne.s32.totalorder %s182, %s184
      %p191 = scmp.eq.s32.totalorder %s27, 1
      %p192 = por %p190, %p191
      %p193 = scmp.ne.s32.totalorder %s184, %s185
      %p194 = scmp.eq.s32.totalorder %s27, 0
      %p195 = por %p193, %p194
      %p196 = scmp.ne.s32.totalorder %s184, %s185
      %p197 = scmp.eq.s32.totalorder %s28, 1
      %p198 = por %p196, %p197
      %p200 = scmp.ne.s32.totalorder %s185, %s199
      %p201 = scmp.eq.s32.totalorder %s28, 0
      %p202 = por %p200, %p201
      %s204 = sadd.s32 %s203, 1
      %p207 = scmp.eq.s32.totalorder %s22, 1
      %p208 = scmp.ne.s32.totalorder %s203, %s205
      %p209 = scmp.eq.s32.totalorder %s22, 0
      %p210 = por %p208, %p209
      %p211 = scmp.ne.s32.totalorder %s203, %s205
      %p212 = scmp.eq.s32.totalorder %s27, 1
      %p213 = por %p211, %p212
      %p214 = scmp.ne.s32.totalorder %s205, %s206
      %p215 = scmp.eq.s32.totalorder %s27, 0
      %p216 = por %p214, %p215
      %p217 = scmp.ne.s32.totalorder %s205, %s206
      %p218 = scmp.eq.s32.totalorder %s28, 1
      %p219 = por %p217, %p218
      %p221 = scmp.ne.s32.totalorder %s206, %s220
      %p222 = scmp.eq.s32.totalorder %s28, 0
      %p223 = por %p221, %p222
      %s225 = sadd.s32 %s224, 1
      %p228 = scmp.eq.s32.totalorder %s22, 1
      %p229 = scmp.ne.s32.totalorder %s224, %s226
      %p230 = scmp.eq.s32.totalorder %s22, 0
      %p231 = por %p229, %p230
      %p232 = scmp.ne.s32.totalorder %s224, %s226
      %p233 = scmp.eq.s32.totalorder %s27, 1
      %p234 = por %p232, %p233
      %p235 = scmp.ne.s32.totalorder %s226, %s227
      %p236 = scmp.eq.s32.totalorder %s27, 0
      %p237 = por %p235, %p236
      %p238 = scmp.ne.s32.totalorder %s226, %s227
      %p239 = scmp.eq.s32.totalorder %s28, 1
      %p240 = por %p238, %p239
      %p242 = scmp.ne.s32.totalorder %s227, %s241
      %p243 = scmp.eq.s32.totalorder %s28, 0
      %p244 = por %p242, %p243
      %s246 = sadd.s32 %s245, 1
      %p249 = scmp.eq.s32.totalorder %s22, 1
      %p250 = scmp.ne.s32.totalorder %s245, %s247
      %p251 = scmp.eq.s32.totalorder %s22, 0
      %p252 = por %p250, %p251
      %p253 = scmp.ne.s32.totalorder %s245, %s247
      %p254 = scmp.eq.s32.totalorder %s27, 1
      %p255 = por %p253, %p254
      %p256 = scmp.ne.s32.totalorder %s247, %s248
      %p257 = scmp.eq.s32.totalorder %s27, 0
      %p258 = por %p256, %p257
      %p259 = scmp.ne.s32.totalorder %s247, %s248
      %p260 = scmp.eq.s32.totalorder %s28, 1
      %p261 = por %p259, %p260
      %p263 = scmp.ne.s32.totalorder %s248, %s262
      %p264 = scmp.eq.s32.totalorder %s28, 0
      %p265 = por %p263, %p264
      %s267 = sadd.s32 %s266, 1
      %p270 = scmp.eq.s32.totalorder %s22, 1
      %p271 = scmp.ne.s32.totalorder %s266, %s268
      %p272 = scmp.eq.s32.totalorder %s22, 0
      %p273 = por %p271, %p272
      %p274 = scmp.ne.s32.totalorder %s266, %s268
      %p275 = scmp.eq.s32.totalorder %s27, 1
      %p276 = por %p274, %p275
      %p277 = scmp.ne.s32.totalorder %s268, %s269
      %p278 = scmp.eq.s32.totalorder %s27, 0
      %p279 = por %p277, %p278
      %p280 = scmp.ne.s32.totalorder %s268, %s269
      %p281 = scmp.eq.s32.totalorder %s28, 1
      %p282 = por %p280, %p281
      %p284 = scmp.ne.s32.totalorder %s269, %s283
      %p285 = scmp.eq.s32.totalorder %s28, 0
      %p286 = por %p284, %p285
      %s288 = sadd.s32 %s287, 1
      %p291 = scmp.eq.s32.totalorder %s22, 1
      %p292 = scmp.ne.s32.totalorder %s287, %s289
      %p293 = scmp.eq.s32.totalorder %s22, 0
      %p294 = por %p292, %p293
      %p295 = scmp.ne.s32.totalorder %s287, %s289
      %p296 = scmp.eq.s32.totalorder %s27, 1
      %p297 = por %p295, %p296
      %p298 = scmp.ne.s32.totalorder %s289, %s290
      %p299 = scmp.eq.s32.totalorder %s27, 0
      %p300 = por %p298, %p299
      %p301 = scmp.ne.s32.totalorder %s289, %s290
      %p302 = scmp.eq.s32.totalorder %s28, 1
      %p303 = por %p301, %p302
      %p305 = scmp.ne.s32.totalorder %s290, %s304
      %p306 = scmp.eq.s32.totalorder %s28, 0
      %p307 = por %p305, %p306
      %s308 = ssub.s32 %s22, %s29
      %p309 = scmp.eq.s32.totalorder %s308, 0
      %s311 = sadd.s32 %s310, 1
      %s312 = scalar_select %p309, %s310, %s311
      %p315 = pneg %p309
      %p316 = scmp.eq.s32.totalorder %s22, 1
      %p317 = por %p315, %p316
      %p318 = scmp.ne.s32.totalorder %s310, %s313
      %p319 = scmp.eq.s32.totalorder %s22, 0
      %p320 = por %p318, %p319
      %p321 = scmp.ne.s32.totalorder %s310, %s313
      %p322 = scmp.eq.s32.totalorder %s27, 1
      %p323 = por %p321, %p322
      %p324 = scmp.ne.s32.totalorder %s313, %s314
      %p325 = scmp.eq.s32.totalorder %s27, 0
      %p326 = por %p324, %p325
      %p327 = scmp.ne.s32.totalorder %s313, %s314
      %p328 = scmp.eq.s32.totalorder %s28, 1
      %p329 = por %p327, %p328
      %p331 = scmp.ne.s32.totalorder %s314, %s330
      %p332 = scmp.eq.s32.totalorder %s28, 0
      %p333 = por %p331, %p332
      %p334 = scmp.le.s32.totalorder 1, %s22
      %p335 = scmp.lt.s32.totalorder %s22, 3
      %p336 = pnand %p334, %p335
      %p337 = pneg %p336
      // Predicated region
      $region9: #{tpu_custom_call.1} parent=5 // pred_check
        _
      $region10: #{tpu_custom_call.1} parent=5 // pred_check_branch
        %339 = sbr.rel (%p336) target = $region12
      $region11: #{tpu_custom_call.1} parent=5 // pred_region
        %s340 = ssub.s32 %s22, 1
        // Predicated region
        $region13: #{tpu_custom_call.1} parent=11 // pred_check
          %p341 = pneg %p69
        $region14: #{tpu_custom_call.1} parent=11 // pred_check_branch
          %343 = sbr.rel (%p341) target = $region16
        $region15: #{tpu_custom_call.1} parent=11 // pred_region
          _
        $region16: #{tpu_custom_call.1} parent=11 // pred_fallthru
          _
        // Predicated region
        $region17: #{tpu_custom_call.1} parent=11 // pred_check
          %p344 = pneg %p90
        $region18: #{tpu_custom_call.1} parent=11 // pred_check_branch
          %346 = sbr.rel (%p344) target = $region20
        $region19: #{tpu_custom_call.1} parent=11 // pred_region
          _
        $region20: #{tpu_custom_call.1} parent=11 // pred_fallthru
          _
        // Predicated region
        $region21: #{tpu_custom_call.1} parent=11 // pred_check
          %p347 = pneg %p111
        $region22: #{tpu_custom_call.1} parent=11 // pred_check_branch
          %349 = sbr.rel (%p347) target = $region24
        $region23: #{tpu_custom_call.1} parent=11 // pred_region
          _
        $region24: #{tpu_custom_call.1} parent=11 // pred_fallthru
          _
        // Predicated region
        $region25: #{tpu_custom_call.1} parent=11 // pred_check
          %p350 = pneg %p132
        $region26: #{tpu_custom_call.1} parent=11 // pred_check_branch
          %352 = sbr.rel (%p350) target = $region28
        $region27: #{tpu_custom_call.1} parent=11 // pred_region
          _
        $region28: #{tpu_custom_call.1} parent=11 // pred_fallthru
          _
        // Predicated region
        $region29: #{tpu_custom_call.1} parent=11 // pred_check
          %p353 = pneg %p153
        $region30: #{tpu_custom_call.1} parent=11 // pred_check_branch
          %355 = sbr.rel (%p353) target = $region32
        $region31: #{tpu_custom_call.1} parent=11 // pred_region
          _
        $region32: #{tpu_custom_call.1} parent=11 // pred_fallthru
          _
        // Predicated region
        $region33: #{tpu_custom_call.1} parent=11 // pred_check
          %p356 = pneg %p174
        $region34: #{tpu_custom_call.1} parent=11 // pred_check_branch
          %358 = sbr.rel (%p356) target = $region36
        $region35: #{tpu_custom_call.1} parent=11 // pred_region
          _
        $region36: #{tpu_custom_call.1} parent=11 // pred_fallthru
          _
        // Predicated region
        $region37: #{tpu_custom_call.1} parent=11 // pred_check
          %p359 = pneg %p195
        $region38: #{tpu_custom_call.1} parent=11 // pred_check_branch
          %361 = sbr.rel (%p359) target = $region40
        $region39: #{tpu_custom_call.1} parent=11 // pred_region
          _
        $region40: #{tpu_custom_call.1} parent=11 // pred_fallthru
          _
        // Predicated region
        $region41: #{tpu_custom_call.1} parent=11 // pred_check
          %p362 = pneg %p216
        $region42: #{tpu_custom_call.1} parent=11 // pred_check_branch
          %364 = sbr.rel (%p362) target = $region44
        $region43: #{tpu_custom_call.1} parent=11 // pred_region
          _
        $region44: #{tpu_custom_call.1} parent=11 // pred_fallthru
          _
        // Predicated region
        $region45: #{tpu_custom_call.1} parent=11 // pred_check
          %p365 = pneg %p237
        $region46: #{tpu_custom_call.1} parent=11 // pred_check_branch
          %367 = sbr.rel (%p365) target = $region48
        $region47: #{tpu_custom_call.1} parent=11 // pred_region
          _
        $region48: #{tpu_custom_call.1} parent=11 // pred_fallthru
          _
        // Predicated region
        $region49: #{tpu_custom_call.1} parent=11 // pred_check
          %p368 = pneg %p258
        $region50: #{tpu_custom_call.1} parent=11 // pred_check_branch
          %370 = sbr.rel (%p368) target = $region52
        $region51: #{tpu_custom_call.1} parent=11 // pred_region
          _
        $region52: #{tpu_custom_call.1} parent=11 // pred_fallthru
          _
        // Predicated region
        $region53: #{tpu_custom_call.1} parent=11 // pred_check
          %p371 = pneg %p279
        $region54: #{tpu_custom_call.1} parent=11 // pred_check_branch
          %373 = sbr.rel (%p371) target = $region56
        $region55: #{tpu_custom_call.1} parent=11 // pred_region
          _
        $region56: #{tpu_custom_call.1} parent=11 // pred_fallthru
          _
        // Predicated region
        $region57: #{tpu_custom_call.1} parent=11 // pred_check
          %p374 = pneg %p300
        $region58: #{tpu_custom_call.1} parent=11 // pred_check_branch
          %376 = sbr.rel (%p374) target = $region60
        $region59: #{tpu_custom_call.1} parent=11 // pred_region
          _
        $region60: #{tpu_custom_call.1} parent=11 // pred_fallthru
          _
      $region12: #{tpu_custom_call.1} parent=5 // pred_fallthru
        _
      %p377 = scmp.lt.s32.totalorder %s22, 2
      // Predicated region
      $region61: #{tpu_custom_call.1} parent=5 // pred_check
        %p378 = pneg %p377
      $region62: #{tpu_custom_call.1} parent=5 // pred_check_branch
        %380 = sbr.rel (%p378) target = $region64
      $region63: #{tpu_custom_call.1} parent=5 // pred_region
        // Predicated region
        $region65: #{tpu_custom_call.1} parent=63 // pred_check
          %p381 = pneg %p42
        $region66: #{tpu_custom_call.1} parent=63 // pred_check_branch
          %383 = sbr.rel (%p381) target = $region68
        $region67: #{tpu_custom_call.1} parent=63 // pred_region
          %p384 = scmp.lt.s32.totalorder %s22, 1
          %s385 = scalar_select %p384, %s22, 1
          %s386 = smul.addr %s385, 8
          %s387 = scalar_lea.vmem %s0, %s386
        $region68: #{tpu_custom_call.1} parent=63 // pred_fallthru
          _
      $region64: #{tpu_custom_call.1} parent=5 // pred_fallthru
        _
      %p388 = scmp.le.s32.totalorder 1, %s22
      %p389 = scmp.lt.s32.totalorder %s22, 3
      %p390 = pnand %p388, %p389
      %p391 = pneg %p390
      // Predicated region
      $region69: #{tpu_custom_call.1} parent=5 // pred_check
        _
      $region70: #{tpu_custom_call.1} parent=5 // pred_check_branch
        %393 = sbr.rel (%p390) target = $region72
      $region71: #{tpu_custom_call.1} parent=5 // pred_region
        %s394 = ssub.s32 %s22, 1
        %p395 = scmp.lt.s32.totalorder %s27, 1
        %s396 = scalar_select %p395, %s27, 1
        %s397 = smul.addr %s396, 8
        %s398 = scalar_lea.vmem %s0, %s397
        %p399 = pneg %p48
        %p400 = pneg %p45
        %p401 = pneg %p69
        %p402 = pneg %p66
        %p403 = pneg %p90
        %p404 = pneg %p87
        %p405 = pneg %p111
        %p406 = pneg %p108
        %p407 = pneg %p132
        %p408 = pneg %p129
        %p409 = pneg %p153
        %p410 = pneg %p150
        %p411 = pneg %p174
        %p412 = pneg %p171
        %p413 = pneg %p195
        %p414 = pneg %p192
        %p415 = pneg %p216
        %p416 = pneg %p213
        %p417 = pneg %p237
        %p418 = pneg %p234
        %p419 = pneg %p258
        %p420 = pneg %p255
        %p421 = pneg %p279
        %p422 = pneg %p276
        %p423 = pneg %p300
        %p424 = pneg %p297
        %p425 = pneg %p326
        %p426 = pneg %p323
        %s427 = sand.u32 %s313, 1
        %s428 = scalar_lea.sflag [#allocation4], %s427
        %s429 = sand.u32 %s313, 1
        %s430 = smul.addr %s429, 8
        %s431 = scalar_lea.vmem [#allocation3], %s430
        %p432 = scmp.lt.s32.totalorder %s27, 1
        %s433 = scalar_select %p432, %s27, 1
        %s434 = smul.addr %s433, 8
        %s435 = scalar_lea.vmem %s0, %s434
        %v437 = vld [vmem:[%s435] sm:$0xff]
        %v438 = vld [vmem:[%s1] sm:$0x1]
        %v439 = vld [vmem:[%s2] sm:$0x1]
        %vm440 = vcmask 261120
        %v441 = vsel %vm440, %v437, 0.0
        %442 = vadd.xlane.f32.xlu0 %v441
        %v443 = vpop.xlane.xlu0 %442
        %v444 = vrcp.pop 32.0
        %v445 = vmul.f32 %v443, %v444
        %v446 = vsub.f32 %v437, %v445
        %v447 = vmul.f32 %v446, %v446
        %v448 = vsel %vm440, %v447, 0.0
        %449 = vadd.xlane.f32.xlu0 %v448
        %v450 = vpop.xlane.xlu0 %449
        %v451 = vmul.f32 %v450, %v444
        %v452 = vadd.f32 %v451, 1e-05
        %v453 = vrsqrt.pop %v452
        %v454 = vmul.f32 %v446, %v453
        %v456 = vlaneseq
        %v457 = vshrl.u32 %v456, 7
        %v458 = vsub.s32 0, %v457
        %v459 = vrot.slane %v438, %v458
        %v461 = vmul.f32 %v454, %v459
        %v463 = vlaneseq
        %v464 = vshrl.u32 %v463, 7
        %v465 = vsub.s32 0, %v464
        %v466 = vrot.slane %v439, %v465
        %v468 = vadd.f32 %v461, %v466
        %v469 = vpack.c.bf16 %v468, %v468
        %v470 = vld [vmem:[%s3] sm:$0xf]
        %v471 = vld [vmem:[%s3 + $0x4] sm:$0xf]
        %v472 = vld [vmem:[%s3 + $0x8] sm:$0xf]
        %v473 = vld [vmem:[%s3 + $0xc] sm:$0xf]
        %v474 = vld [vmem:[%s4] sm:$0x1]
        %v476 = vlaneseq
        %v477 = vshrl.u32 %v476, 7
        %v478 = vsub.s32 0, %v477
        %v479 = vrot.slane %v474, %v478
        %v485 = vunpack.c.l.b16 %v470
        %v486 = vunpack.c.l.b16 %v471
        %v487 = vunpack.c.l.b16 %v472
        %v488 = vunpack.c.l.b16 %v473
        %v489 = vpack.c.b16 %v486, %v485
        %v490 = vpack.c.b16 %v488, %v487
        %v494 = vsel %vm440, %v469, 0
        %496 = vmatprep.subr.bf16.mxu0 0
        %497 = vmatpush1.bf16.msra.mxu0 0
        %498 = vmatprep.subr.bf16.mxu0 0
        %499 = vmatpush1.bf16.msra.mxu0 0
        %500 = vmatprep.subr.bf16.mxu0 0
        %501 = vmatpush1.bf16.msra.mxu0 0
        %502 = vmatprep.subr.bf16.mxu0 0
        %503 = vmatpush1.bf16.msra.mxu0 0
        %504 = vmatprep.subr.bf16.mxu0 0
        %505 = vmatpush1.bf16.msra.mxu0 0
        %506 = vmatprep.subr.bf16.mxu0 0
        %507 = vmatpush1.bf16.msra.mxu0 0
        %508 = vmatprep.subr.bf16.mxu0 0
        %509 = vmatpush1.bf16.msra.mxu0 %v490
        %510 = vmatprep.subr.bf16.mxu0 0
        %511 = vmatpush1.bf16.msra.mxu0 %v489
        %512 = vmatprep.subr.bf16.mxu0 0
        %513 = vmatpush2.bf16.msra.mxu0 0
        %514 = vmatprep.subr.bf16.mxu0 0
        %515 = vmatpush2.bf16.msra.mxu0 0
        %516 = vmatprep.subr.bf16.mxu0 0
        %517 = vmatpush2.bf16.msra.mxu0 0
        %518 = vmatprep.subr.bf16.mxu0 0
        %519 = vmatpush2.bf16.msra.mxu0 0
        %520 = vmatprep.subr.bf16.mxu0 0
        %521 = vmatpush2.bf16.msra.mxu0 0
        %522 = vmatprep.subr.bf16.mxu0 0
        %523 = vmatpush2.bf16.msra.mxu0 0
        %524 = vmatprep.subr.bf16.mxu0 0
        %525 = vmatpush2.bf16.msra.mxu0 0
        %526 = vmatprep.subr.bf16.mxu0 0
        %527 = vmatpush2.bf16.msra.mxu0 0
        %528 = vmatprep.mubr.bf16.mxu0 0
        %529 = vmatmul.mubr.bf16.gmra.mxu0 %v494
        %v530 = vpop.f32.mrf.mxu0
        %v531 = vadd.f32 %v479, %v530
        %v532 = vpop.f32.mrf.mxu0
        %v533 = vpop.f32.mrf.mxu0
        %v534 = vpop.f32.mrf.mxu0
        %535 = vdwg.mxu0
        %v536 = vpack.c.bf16 %v531, %v531
        %538 = vrot.lane.b32.xlu0 %v536, 96
        %v539 = vpop.permute.xlu0 %538
        %vm540 = vcmask 64512
        %v542 = vsel %vm540, %v536, 0
        %v545 = vsel %vm540, %v539, 0
        %547 = vmatprep.subr.bf16.mxu0 0
        %548 = vmatpush1.bf16.xpose.msra.mxu0 0
        %549 = vmatprep.subr.bf16.mxu0 0
        %550 = vmatpush1.bf16.xpose.msra.mxu0 0
        %551 = vmatprep.subr.bf16.mxu0 0
        %552 = vmatpush1.bf16.xpose.msra.mxu0 0
        %553 = vmatprep.subr.bf16.mxu0 0
        %554 = vmatpush1.bf16.xpose.msra.mxu0 0
        %555 = vmatprep.subr.bf16.mxu0 0
        %556 = vmatpush1.bf16.xpose.msra.mxu0 0
        %557 = vmatprep.subr.bf16.mxu0 0
        %558 = vmatpush1.bf16.xpose.msra.mxu0 0
        %559 = vmatprep.subr.bf16.mxu0 0
        %560 = vmatpush1.bf16.xpose.msra.mxu0 0
        %561 = vmatprep.subr.bf16.mxu0 0
        %562 = vmatpush1.bf16.xpose.msra.mxu0 %v545
        %563 = vmatprep.subr.bf16.mxu0 0
        %564 = vmatpush2.bf16.xpose.msra.mxu0 0
        %565 = vmatprep.subr.bf16.mxu0 0
        %566 = vmatpush2.bf16.xpose.msra.mxu0 0
        %567 = vmatprep.subr.bf16.mxu0 0
        %568 = vmatpush2.bf16.xpose.msra.mxu0 0
        %569 = vmatprep.subr.bf16.mxu0 0
        %570 = vmatpush2.bf16.xpose.msra.mxu0 0
        %571 = vmatprep.subr.bf16.mxu0 0
        %572 = vmatpush2.bf16.xpose.msra.mxu0 0
        %573 = vmatprep.subr.bf16.mxu0 0
        %574 = vmatpush2.bf16.xpose.msra.mxu0 0
        %575 = vmatprep.subr.bf16.mxu0 0
        %576 = vmatpush2.bf16.xpose.msra.mxu0 0
        %577 = vmatprep.subr.bf16.mxu0 0
        %578 = vmatpush2.bf16.xpose.msra.mxu0 0
        %579 = vmatprep.mubr.bf16.mxu0 0
        %580 = vmatmul.mubr.bf16.gmra.mxu0 %v542
        %v581 = vpop.f32.mrf.mxu0
        %v582 = vadd.f32 0.0, %v581
        %v583 = vpop.f32.mrf.mxu0
        %v584 = vpop.f32.mrf.mxu0
        %v585 = vpop.f32.mrf.mxu0
        %586 = vdwg.mxu0
        %v587 = vsel %vm540, %v582, -inf
        %588 = vmax.xlane.f32.xlu0 %v587
        %v589 = vpop.xlane.xlu0 %588
        %v590 = vsub.f32 %v582, %v589
        %v591 = vmul.f32 %v590, 1.442695
        %v592 = vpow.pop %v591
        %v593 = vsel %vm540, %v592, 0.0
        %594 = vadd.xlane.f32.xlu0 %v593
        %v595 = vpop.xlane.xlu0 %594
        %v596 = vrcp.pop %v595
        %v597 = vmul.f32 %v592, %v596
        %v598 = vpack.c.bf16 %v597, %v597
        %599 = vrot.lane.b32.xlu0 %v536, 64
        %v600 = vpop.permute.xlu0 %599
        %v602 = vsel %vm540, %v598, 0
        %vm604 = vcmask 1043456
        %v606 = vsel %vm604, %v600, 0
        %608 = vmatprep.subr.bf16.mxu0 0
        %609 = vmatpush1.bf16.msra.mxu0 0
        %610 = vmatprep.subr.bf16.mxu0 0
        %611 = vmatpush1.bf16.msra.mxu0 0
        %612 = vmatprep.subr.bf16.mxu0 0
        %613 = vmatpush1.bf16.msra.mxu0 0
        %614 = vmatprep.subr.bf16.mxu0 0
        %615 = vmatpush1.bf16.msra.mxu0 0
        %616 = vmatprep.subr.bf16.mxu0 0
        %617 = vmatpush1.bf16.msra.mxu0 0
        %618 = vmatprep.subr.bf16.mxu0 0
        %619 = vmatpush1.bf16.msra.mxu0 0
        %620 = vmatprep.subr.bf16.mxu0 0
        %621 = vmatpush1.bf16.msra.mxu0 0
        %622 = vmatprep.subr.bf16.mxu0 0
        %623 = vmatpush1.bf16.msra.mxu0 %v606
        %624 = vmatprep.subr.bf16.mxu0 0
        %625 = vmatpush2.bf16.msra.mxu0 0
        %626 = vmatprep.subr.bf16.mxu0 0
        %627 = vmatpush2.bf16.msra.mxu0 0
        %628 = vmatprep.subr.bf16.mxu0 0
        %629 = vmatpush2.bf16.msra.mxu0 0
        %630 = vmatprep.subr.bf16.mxu0 0
        %631 = vmatpush2.bf16.msra.mxu0 0
        %632 = vmatprep.subr.bf16.mxu0 0
        %633 = vmatpush2.bf16.msra.mxu0 0
        %634 = vmatprep.subr.bf16.mxu0 0
        %635 = vmatpush2.bf16.msra.mxu0 0
        %636 = vmatprep.subr.bf16.mxu0 0
        %637 = vmatpush2.bf16.msra.mxu0 0
        %638 = vmatprep.subr.bf16.mxu0 0
        %639 = vmatpush2.bf16.msra.mxu0 0
        %640 = vmatprep.mubr.bf16.mxu0 0
        %641 = vmatmul.mubr.bf16.gmra.mxu0 %v602
        %v642 = vpop.f32.mrf.mxu0
        %v643 = vadd.f32 0.0, %v642
        %v644 = vpop.f32.mrf.mxu0
        %v645 = vpop.f32.mrf.mxu0
        %v646 = vpop.f32.mrf.mxu0
        %647 = vdwg.mxu0
        %648 = vst.msk [vmem:[#allocation2] sm:$0xff] %vm540, %v643
        %649 = vrot.lane.b32.xlu0 %v536, 120
        %v650 = vpop.permute.xlu0 %649
        %651 = vrot.lane.b32.xlu0 %v536, 88
        %v652 = vpop.permute.xlu0 %651
        %v654 = vsel %vm540, %v650, 0
        %v657 = vsel %vm540, %v652, 0
        %659 = vmatprep.subr.bf16.mxu0 0
        %660 = vmatpush1.bf16.xpose.msra.mxu0 0
        %661 = vmatprep.subr.bf16.mxu0 0
        %662 = vmatpush1.bf16.xpose.msra.mxu0 0
        %663 = vmatprep.subr.bf16.mxu0 0
        %664 = vmatpush1.bf16.xpose.msra.mxu0 0
        %665 = vmatprep.subr.bf16.mxu0 0
        %666 = vmatpush1.bf16.xpose.msra.mxu0 0
        %667 = vmatprep.subr.bf16.mxu0 0
        %668 = vmatpush1.bf16.xpose.msra.mxu0 0
        %669 = vmatprep.subr.bf16.mxu0 0
        %670 = vmatpush1.bf16.xpose.msra.mxu0 0
        %671 = vmatprep.subr.bf16.mxu0 0
        %672 = vmatpush1.bf16.xpose.msra.mxu0 0
        %673 = vmatprep.subr.bf16.mxu0 0
        %674 = vmatpush1.bf16.xpose.msra.mxu0 %v657
        %675 = vmatprep.subr.bf16.mxu0 0
        %676 = vmatpush2.bf16.xpose.msra.mxu0 0
        %677 = vmatprep.subr.bf16.mxu0 0
        %678 = vmatpush2.bf16.xpose.msra.mxu0 0
        %679 = vmatprep.subr.bf16.mxu0 0
        %680 = vmatpush2.bf16.xpose.msra.mxu0 0
        %681 = vmatprep.subr.bf16.mxu0 0
        %682 = vmatpush2.bf16.xpose.msra.mxu0 0
        %683 = vmatprep.subr.bf16.mxu0 0
        %684 = vmatpush2.bf16.xpose.msra.mxu0 0
        %685 = vmatprep.subr.bf16.mxu0 0
        %686 = vmatpush2.bf16.xpose.msra.mxu0 0
        %687 = vmatprep.subr.bf16.mxu0 0
        %688 = vmatpush2.bf16.xpose.msra.mxu0 0
        %689 = vmatprep.subr.bf16.mxu0 0
        %690 = vmatpush2.bf16.xpose.msra.mxu0 0
        %691 = vmatprep.mubr.bf16.mxu0 0
        %692 = vmatmul.mubr.bf16.gmra.mxu0 %v654
        %v693 = vpop.f32.mrf.mxu0
        %v694 = vadd.f32 0.0, %v693
        %v695 = vpop.f32.mrf.mxu0
        %v696 = vpop.f32.mrf.mxu0
        %v697 = vpop.f32.mrf.mxu0
        %698 = vdwg.mxu0
        %v699 = vsel %vm540, %v694, -inf
        %700 = vmax.xlane.f32.xlu0 %v699
        %v701 = vpop.xlane.xlu0 %700
        %v702 = vsub.f32 %v694, %v701
        %v703 = vmul.f32 %v702, 1.442695
        %v704 = vpow.pop %v703
        %v705 = vsel %vm540, %v704, 0.0
        %706 = vadd.xlane.f32.xlu0 %v705
        %v707 = vpop.xlane.xlu0 %706
        %v708 = vrcp.pop %v707
        %v709 = vmul.f32 %v704, %v708
        %v710 = vpack.c.bf16 %v709, %v709
        %711 = vrot.lane.b32.xlu0 %v536, 56
        %v712 = vpop.permute.xlu0 %711
        %v714 = vsel %vm540, %v710, 0
        %v717 = vsel %vm604, %v712, 0
        %719 = vmatprep.subr.bf16.mxu0 0
        %720 = vmatpush1.bf16.msra.mxu0 0
        %721 = vmatprep.subr.bf16.mxu0 0
        %722 = vmatpush1.bf16.msra.mxu0 0
        %723 = vmatprep.subr.bf16.mxu0 0
        %724 = vmatpush1.bf16.msra.mxu0 0
        %725 = vmatprep.subr.bf16.mxu0 0
        %726 = vmatpush1.bf16.msra.mxu0 0
        %727 = vmatprep.subr.bf16.mxu0 0
        %728 = vmatpush1.bf16.msra.mxu0 0
        %729 = vmatprep.subr.bf16.mxu0 0
        %730 = vmatpush1.bf16.msra.mxu0 0
        %731 = vmatprep.subr.bf16.mxu0 0
        %732 = vmatpush1.bf16.msra.mxu0 0
        %733 = vmatprep.subr.bf16.mxu0 0
        %734 = vmatpush1.bf16.msra.mxu0 %v717
        %735 = vmatprep.subr.bf16.mxu0 0
        %736 = vmatpush2.bf16.msra.mxu0 0
        %737 = vmatprep.subr.bf16.mxu0 0
        %738 = vmatpush2.bf16.msra.mxu0 0
        %739 = vmatprep.subr.bf16.mxu0 0
        %740 = vmatpush2.bf16.msra.mxu0 0
        %741 = vmatprep.subr.bf16.mxu0 0
        %742 = vmatpush2.bf16.msra.mxu0 0
        %743 = vmatprep.subr.bf16.mxu0 0
        %744 = vmatpush2.bf16.msra.mxu0 0
        %745 = vmatprep.subr.bf16.mxu0 0
        %746 = vmatpush2.bf16.msra.mxu0 0
        %747 = vmatprep.subr.bf16.mxu0 0
        %748 = vmatpush2.bf16.msra.mxu0 0
        %749 = vmatprep.subr.bf16.mxu0 0
        %750 = vmatpush2.bf16.msra.mxu0 0
        %751 = vmatprep.mubr.bf16.mxu0 0
        %752 = vmatmul.mubr.bf16.gmra.mxu0 %v714
        %v753 = vpop.f32.mrf.mxu0
        %v754 = vadd.f32 0.0, %v753
        %v755 = vpop.f32.mrf.mxu0
        %v756 = vpop.f32.mrf.mxu0
        %v757 = vpop.f32.mrf.mxu0
        %758 = vdwg.mxu0
        %760 = vrot.lane.b32.xlu0 %v754, 8
        %v761 = vpop.permute.xlu0 %760
        %vm763 = vcmask 130112
        %764 = vst.msk [vmem:[#allocation2] sm:$0xff] %vm763, %v761
        %765 = vrot.lane.b32.xlu0 %v536, 112
        %v766 = vpop.permute.xlu0 %765
        %767 = vrot.lane.b32.xlu0 %v536, 80
        %v768 = vpop.permute.xlu0 %767
        %v770 = vsel %vm540, %v766, 0
        %v773 = vsel %vm540, %v768, 0
        %775 = vmatprep.subr.bf16.mxu0 0
        %776 = vmatpush1.bf16.xpose.msra.mxu0 0
        %777 = vmatprep.subr.bf16.mxu0 0
        %778 = vmatpush1.bf16.xpose.msra.mxu0 0
        %779 = vmatprep.subr.bf16.mxu0 0
        %780 = vmatpush1.bf16.xpose.msra.mxu0 0
        %781 = vmatprep.subr.bf16.mxu0 0
        %782 = vmatpush1.bf16.xpose.msra.mxu0 0
        %783 = vmatprep.subr.bf16.mxu0 0
        %784 = vmatpush1.bf16.xpose.msra.mxu0 0
        %785 = vmatprep.subr.bf16.mxu0 0
        %786 = vmatpush1.bf16.xpose.msra.mxu0 0
        %787 = vmatprep.subr.bf16.mxu0 0
        %788 = vmatpush1.bf16.xpose.msra.mxu0 0
        %789 = vmatprep.subr.bf16.mxu0 0
        %790 = vmatpush1.bf16.xpose.msra.mxu0 %v773
        %791 = vmatprep.subr.bf16.mxu0 0
        %792 = vmatpush2.bf16.xpose.msra.mxu0 0
        %793 = vmatprep.subr.bf16.mxu0 0
        %794 = vmatpush2.bf16.xpose.msra.mxu0 0
        %795 = vmatprep.subr.bf16.mxu0 0
        %796 = vmatpush2.bf16.xpose.msra.mxu0 0
        %797 = vmatprep.subr.bf16.mxu0 0
        %798 = vmatpush2.bf16.xpose.msra.mxu0 0
        %799 = vmatprep.subr.bf16.mxu0 0
        %800 = vmatpush2.bf16.xpose.msra.mxu0 0
        %801 = vmatprep.subr.bf16.mxu0 0
        %802 = vmatpush2.bf16.xpose.msra.mxu0 0
        %803 = vmatprep.subr.bf16.mxu0 0
        %804 = vmatpush2.bf16.xpose.msra.mxu0 0
        %805 = vmatprep.subr.bf16.mxu0 0
        %806 = vmatpush2.bf16.xpose.msra.mxu0 0
        %807 = vmatprep.mubr.bf16.mxu0 0
        %808 = vmatmul.mubr.bf16.gmra.mxu0 %v770
        %v809 = vpop.f32.mrf.mxu0
        %v810 = vadd.f32 0.0, %v809
        %v811 = vpop.f32.mrf.mxu0
        %v812 = vpop.f32.mrf.mxu0
        %v813 = vpop.f32.mrf.mxu0
        %814 = vdwg.mxu0
        %v815 = vsel %vm540, %v810, -inf
        %816 = vmax.xlane.f32.xlu0 %v815
        %v817 = vpop.xlane.xlu0 %816
        %v818 = vsub.f32 %v810, %v817
        %v819 = vmul.f32 %v818, 1.442695
        %v820 = vpow.pop %v819
        %v821 = vsel %vm540, %v820, 0.0
        %822 = vadd.xlane.f32.xlu0 %v821
        %v823 = vpop.xlane.xlu0 %822
        %v824 = vrcp.pop %v823
        %v825 = vmul.f32 %v820, %v824
        %v826 = vpack.c.bf16 %v825, %v825
        %827 = vrot.lane.b32.xlu0 %v536, 48
        %v828 = vpop.permute.xlu0 %827
        %v830 = vsel %vm540, %v826, 0
        %v833 = vsel %vm604, %v828, 0
        %835 = vmatprep.subr.bf16.mxu0 0
        %836 = vmatpush1.bf16.msra.mxu0 0
        %837 = vmatprep.subr.bf16.mxu0 0
        %838 = vmatpush1.bf16.msra.mxu0 0
        %839 = vmatprep.subr.bf16.mxu0 0
        %840 = vmatpush1.bf16.msra.mxu0 0
        %841 = vmatprep.subr.bf16.mxu0 0
        %842 = vmatpush1.bf16.msra.mxu0 0
        %843 = vmatprep.subr.bf16.mxu0 0
        %844 = vmatpush1.bf16.msra.mxu0 0
        %845 = vmatprep.subr.bf16.mxu0 0
        %846 = vmatpush1.bf16.msra.mxu0 0
        %847 = vmatprep.subr.bf16.mxu0 0
        %848 = vmatpush1.bf16.msra.mxu0 0
        %849 = vmatprep.subr.bf16.mxu0 0
        %850 = vmatpush1.bf16.msra.mxu0 %v833
        %851 = vmatprep.subr.bf16.mxu0 0
        %852 = vmatpush2.bf16.msra.mxu0 0
        %853 = vmatprep.subr.bf16.mxu0 0
        %854 = vmatpush2.bf16.msra.mxu0 0
        %855 = vmatprep.subr.bf16.mxu0 0
        %856 = vmatpush2.bf16.msra.mxu0 0
        %857 = vmatprep.subr.bf16.mxu0 0
        %858 = vmatpush2.bf16.msra.mxu0 0
        %859 = vmatprep.subr.bf16.mxu0 0
        %860 = vmatpush2.bf16.msra.mxu0 0
        %861 = vmatprep.subr.bf16.mxu0 0
        %862 = vmatpush2.bf16.msra.mxu0 0
        %863 = vmatprep.subr.bf16.mxu0 0
        %864 = vmatpush2.bf16.msra.mxu0 0
        %865 = vmatprep.subr.bf16.mxu0 0
        %866 = vmatpush2.bf16.msra.mxu0 0
        %867 = vmatprep.mubr.bf16.mxu0 0
        %868 = vmatmul.mubr.bf16.gmra.mxu0 %v830
        %v869 = vpop.f32.mrf.mxu0
        %v870 = vadd.f32 0.0, %v869
        %v871 = vpop.f32.mrf.mxu0
        %v872 = vpop.f32.mrf.mxu0
        %v873 = vpop.f32.mrf.mxu0
        %874 = vdwg.mxu0
        %876 = vrot.lane.b32.xlu0 %v870, 16
        %v877 = vpop.permute.xlu0 %876
        %vm879 = vcmask 195712
        %880 = vst.msk [vmem:[#allocation2] sm:$0xff] %vm879, %v877
        %881 = vrot.lane.b32.xlu0 %v536, 104
        %v882 = vpop.permute.xlu0 %881
        %883 = vrot.lane.b32.xlu0 %v536, 72
        %v884 = vpop.permute.xlu0 %883
        %v886 = vsel %vm540, %v882, 0
        %v889 = vsel %vm540, %v884, 0
        %891 = vmatprep.subr.bf16.mxu0 0
        %892 = vmatpush1.bf16.xpose.msra.mxu0 0
        %893 = vmatprep.subr.bf16.mxu0 0
        %894 = vmatpush1.bf16.xpose.msra.mxu0 0
        %895 = vmatprep.subr.bf16.mxu0 0
        %896 = vmatpush1.bf16.xpose.msra.mxu0 0
        %897 = vmatprep.subr.bf16.mxu0 0
        %898 = vmatpush1.bf16.xpose.msra.mxu0 0
        %899 = vmatprep.subr.bf16.mxu0 0
        %900 = vmatpush1.bf16.xpose.msra.mxu0 0
        %901 = vmatprep.subr.bf16.mxu0 0
        %902 = vmatpush1.bf16.xpose.msra.mxu0 0
        %903 = vmatprep.subr.bf16.mxu0 0
        %904 = vmatpush1.bf16.xpose.msra.mxu0 0
        %905 = vmatprep.subr.bf16.mxu0 0
        %906 = vmatpush1.bf16.xpose.msra.mxu0 %v889
        %907 = vmatprep.subr.bf16.mxu0 0
        %908 = vmatpush2.bf16.xpose.msra.mxu0 0
        %909 = vmatprep.subr.bf16.mxu0 0
        %910 = vmatpush2.bf16.xpose.msra.mxu0 0
        %911 = vmatprep.subr.bf16.mxu0 0
        %912 = vmatpush2.bf16.xpose.msra.mxu0 0
        %913 = vmatprep.subr.bf16.mxu0 0
        %914 = vmatpush2.bf16.xpose.msra.mxu0 0
        %915 = vmatprep.subr.bf16.mxu0 0
        %916 = vmatpush2.bf16.xpose.msra.mxu0 0
        %917 = vmatprep.subr.bf16.mxu0 0
        %918 = vmatpush2.bf16.xpose.msra.mxu0 0
        %919 = vmatprep.subr.bf16.mxu0 0
        %920 = vmatpush2.bf16.xpose.msra.mxu0 0
        %921 = vmatprep.subr.bf16.mxu0 0
        %922 = vmatpush2.bf16.xpose.msra.mxu0 0
        %923 = vmatprep.mubr.bf16.mxu0 0
        %924 = vmatmul.mubr.bf16.gmra.mxu0 %v886
        %v925 = vpop.f32.mrf.mxu0
        %v926 = vadd.f32 0.0, %v925
        %v927 = vpop.f32.mrf.mxu0
        %v928 = vpop.f32.mrf.mxu0
        %v929 = vpop.f32.mrf.mxu0
        %930 = vdwg.mxu0
        %v931 = vsel %vm540, %v926, -inf
        %932 = vmax.xlane.f32.xlu0 %v931
        %v933 = vpop.xlane.xlu0 %932
        %v934 = vsub.f32 %v926, %v933
        %v935 = vmul.f32 %v934, 1.442695
        %v936 = vpow.pop %v935
        %v937 = vsel %vm540, %v936, 0.0
        %938 = vadd.xlane.f32.xlu0 %v937
        %v939 = vpop.xlane.xlu0 %938
        %v940 = vrcp.pop %v939
        %v941 = vmul.f32 %v936, %v940
        %v942 = vpack.c.bf16 %v941, %v941
        %943 = vrot.lane.b32.xlu0 %v536, 40
        %v944 = vpop.permute.xlu0 %943
        %v946 = vsel %vm540, %v942, 0
        %v949 = vsel %vm604, %v944, 0
        %951 = vmatprep.subr.bf16.mxu0 0
        %952 = vmatpush1.bf16.msra.mxu0 0
        %953 = vmatprep.subr.bf16.mxu0 0
        %954 = vmatpush1.bf16.msra.mxu0 0
        %955 = vmatprep.subr.bf16.mxu0 0
        %956 = vmatpush1.bf16.msra.mxu0 0
        %957 = vmatprep.subr.bf16.mxu0 0
        %958 = vmatpush1.bf16.msra.mxu0 0
        %959 = vmatprep.subr.bf16.mxu0 0
        %960 = vmatpush1.bf16.msra.mxu0 0
        %961 = vmatprep.subr.bf16.mxu0 0
        %962 = vmatpush1.bf16.msra.mxu0 0
        %963 = vmatprep.subr.bf16.mxu0 0
        %964 = vmatpush1.bf16.msra.mxu0 0
        %965 = vmatprep.subr.bf16.mxu0 0
        %966 = vmatpush1.bf16.msra.mxu0 %v949
        %967 = vmatprep.subr.bf16.mxu0 0
        %968 = vmatpush2.bf16.msra.mxu0 0
        %969 = vmatprep.subr.bf16.mxu0 0
        %970 = vmatpush2.bf16.msra.mxu0 0
        %971 = vmatprep.subr.bf16.mxu0 0
        %972 = vmatpush2.bf16.msra.mxu0 0
        %973 = vmatprep.subr.bf16.mxu0 0
        %974 = vmatpush2.bf16.msra.mxu0 0
        %975 = vmatprep.subr.bf16.mxu0 0
        %976 = vmatpush2.bf16.msra.mxu0 0
        %977 = vmatprep.subr.bf16.mxu0 0
        %978 = vmatpush2.bf16.msra.mxu0 0
        %979 = vmatprep.subr.bf16.mxu0 0
        %980 = vmatpush2.bf16.msra.mxu0 0
        %981 = vmatprep.subr.bf16.mxu0 0
        %982 = vmatpush2.bf16.msra.mxu0 0
        %983 = vmatprep.mubr.bf16.mxu0 0
        %984 = vmatmul.mubr.bf16.gmra.mxu0 %v946
        %v985 = vpop.f32.mrf.mxu0
        %v986 = vadd.f32 0.0, %v985
        %v987 = vpop.f32.mrf.mxu0
        %v988 = vpop.f32.mrf.mxu0
        %v989 = vpop.f32.mrf.mxu0
        %990 = vdwg.mxu0
        %992 = vrot.lane.b32.xlu0 %v986, 24
        %v993 = vpop.permute.xlu0 %992
        %vm995 = vcmask 261312
        %996 = vst.msk [vmem:[#allocation2] sm:$0xff] %vm995, %v993
        %v997 = vld [vmem:[#allocation2] sm:$0xff]
        %v998 = vpack.c.bf16 %v997, %v997
        %v999 = vld [vmem:[%s5] sm:$0xf]
        %v1000 = vld [vmem:[%s5 + $0x4] sm:$0xf]
        %v1001 = vld [vmem:[%s5 + $0x8] sm:$0xf]
        %v1002 = vld [vmem:[%s5 + $0xc] sm:$0xf]
        %v1003 = vld [vmem:[%s6] sm:$0x1]
        %v1005 = vlaneseq
        %v1006 = vshrl.u32 %v1005, 7
        %v1007 = vsub.s32 0, %v1006
        %v1008 = vrot.slane %v1003, %v1007
        %v1014 = vunpack.c.l.b16 %v999
        %v1015 = vunpack.c.l.b16 %v1000
        %v1016 = vunpack.c.l.b16 %v1001
        %v1017 = vunpack.c.l.b16 %v1002
        %v1018 = vpack.c.b16 %v1015, %v1014
        %v1019 = vpack.c.b16 %v1017, %v1016
        %v1023 = vsel %vm440, %v998, 0
        %1025 = vmatprep.subr.bf16.mxu0 0
        %1026 = vmatpush1.bf16.msra.mxu0 0
        %1027 = vmatprep.subr.bf16.mxu0 0
        %1028 = vmatpush1.bf16.msra.mxu0 0
        %1029 = vmatprep.subr.bf16.mxu0 0
        %1030 = vmatpush1.bf16.msra.mxu0 0
        %1031 = vmatprep.subr.bf16.mxu0 0
        %1032 = vmatpush1.bf16.msra.mxu0 0
        %1033 = vmatprep.subr.bf16.mxu0 0
        %1034 = vmatpush1.bf16.msra.mxu0 0
        %1035 = vmatprep.subr.bf16.mxu0 0
        %1036 = vmatpush1.bf16.msra.mxu0 0
        %1037 = vmatprep.subr.bf16.mxu0 0
        %1038 = vmatpush1.bf16.msra.mxu0 %v1019
        %1039 = vmatprep.subr.bf16.mxu0 0
        %1040 = vmatpush1.bf16.msra.mxu0 %v1018
        %1041 = vmatprep.subr.bf16.mxu0 0
        %1042 = vmatpush2.bf16.msra.mxu0 0
        %1043 = vmatprep.subr.bf16.mxu0 0
        %1044 = vmatpush2.bf16.msra.mxu0 0
        %1045 = vmatprep.subr.bf16.mxu0 0
        %1046 = vmatpush2.bf16.msra.mxu0 0
        %1047 = vmatprep.subr.bf16.mxu0 0
        %1048 = vmatpush2.bf16.msra.mxu0 0
        %1049 = vmatprep.subr.bf16.mxu0 0
        %1050 = vmatpush2.bf16.msra.mxu0 0
        %1051 = vmatprep.subr.bf16.mxu0 0
        %1052 = vmatpush2.bf16.msra.mxu0 0
        %1053 = vmatprep.subr.bf16.mxu0 0
        %1054 = vmatpush2.bf16.msra.mxu0 0
        %1055 = vmatprep.subr.bf16.mxu0 0
        %1056 = vmatpush2.bf16.msra.mxu0 0
        %1057 = vmatprep.mubr.bf16.mxu0 0
        %1058 = vmatmul.mubr.bf16.gmra.mxu0 %v1023
        %v1059 = vpop.f32.mrf.mxu0
        %v1060 = vadd.f32 %v1008, %v1059
        %v1061 = vpop.f32.mrf.mxu0
        %v1062 = vpop.f32.mrf.mxu0
        %v1063 = vpop.f32.mrf.mxu0
        %1064 = vdwg.mxu0
        %v1065 = vadd.f32 %v437, %v1060
        %v1066 = vld [vmem:[%s7] sm:$0x1]
        %v1067 = vld [vmem:[%s8] sm:$0x1]
        %v1068 = vsel %vm440, %v1065, 0.0
        %1069 = vadd.xlane.f32.xlu0 %v1068
        %v1070 = vpop.xlane.xlu0 %1069
        %v1071 = vmul.f32 %v1070, %v444
        %v1072 = vsub.f32 %v1065, %v1071
        %v1073 = vmul.f32 %v1072, %v1072
        %v1074 = vsel %vm440, %v1073, 0.0
        %1075 = vadd.xlane.f32.xlu0 %v1074
        %v1076 = vpop.xlane.xlu0 %1075
        %v1077 = vmul.f32 %v1076, %v444
        %v1078 = vadd.f32 %v1077, 1e-05
        %v1079 = vrsqrt.pop %v1078
        %v1080 = vmul.f32 %v1072, %v1079
        %v1082 = vlaneseq
        %v1083 = vshrl.u32 %v1082, 7
        %v1084 = vsub.s32 0, %v1083
        %v1085 = vrot.slane %v1066, %v1084
        %v1087 = vmul.f32 %v1080, %v1085
        %v1089 = vlaneseq
        %v1090 = vshrl.u32 %v1089, 7
        %v1091 = vsub.s32 0, %v1090
        %v1092 = vrot.slane %v1067, %v1091
        %v1094 = vadd.f32 %v1087, %v1092
        %v1095 = vpack.c.bf16 %v1094, %v1094
        %v1096 = vld [vmem:[%s9] sm:$0xf]
        %v1097 = vld [vmem:[%s9 + $0x4] sm:$0xf]
        %v1098 = vld [vmem:[%s9 + $0x8] sm:$0xf]
        %v1099 = vld [vmem:[%s9 + $0xc] sm:$0xf]
        %v1100 = vld [vmem:[%s10] sm:$0x1]
        %v1102 = vlaneseq
        %v1103 = vshrl.u32 %v1102, 7
        %v1104 = vsub.s32 0, %v1103
        %v1105 = vrot.slane %v1100, %v1104
        %v1111 = vunpack.c.l.b16 %v1096
        %v1112 = vunpack.c.l.b16 %v1097
        %v1113 = vunpack.c.l.b16 %v1098
        %v1114 = vunpack.c.l.b16 %v1099
        %v1115 = vpack.c.b16 %v1112, %v1111
        %v1116 = vpack.c.b16 %v1114, %v1113
        %v1120 = vsel %vm440, %v1095, 0
        %1122 = vmatprep.subr.bf16.mxu0 0
        %1123 = vmatpush1.bf16.msra.mxu0 0
        %1124 = vmatprep.subr.bf16.mxu0 0
        %1125 = vmatpush1.bf16.msra.mxu0 0
        %1126 = vmatprep.subr.bf16.mxu0 0
        %1127 = vmatpush1.bf16.msra.mxu0 0
        %1128 = vmatprep.subr.bf16.mxu0 0
        %1129 = vmatpush1.bf16.msra.mxu0 0
        %1130 = vmatprep.subr.bf16.mxu0 0
        %1131 = vmatpush1.bf16.msra.mxu0 0
        %1132 = vmatprep.subr.bf16.mxu0 0
        %1133 = vmatpush1.bf16.msra.mxu0 0
        %1134 = vmatprep.subr.bf16.mxu0 0
        %1135 = vmatpush1.bf16.msra.mxu0 %v1116
        %1136 = vmatprep.subr.bf16.mxu0 0
        %1137 = vmatpush1.bf16.msra.mxu0 %v1115
        %1138 = vmatprep.subr.bf16.mxu0 0
        %1139 = vmatpush2.bf16.msra.mxu0 0
        %1140 = vmatprep.subr.bf16.mxu0 0
        %1141 = vmatpush2.bf16.msra.mxu0 0
        %1142 = vmatprep.subr.bf16.mxu0 0
        %1143 = vmatpush2.bf16.msra.mxu0 0
        %1144 = vmatprep.subr.bf16.mxu0 0
        %1145 = vmatpush2.bf16.msra.mxu0 0
        %1146 = vmatprep.subr.bf16.mxu0 0
        %1147 = vmatpush2.bf16.msra.mxu0 0
        %1148 = vmatprep.subr.bf16.mxu0 0
        %1149 = vmatpush2.bf16.msra.mxu0 0
        %1150 = vmatprep.subr.bf16.mxu0 0
        %1151 = vmatpush2.bf16.msra.mxu0 0
        %1152 = vmatprep.subr.bf16.mxu0 0
        %1153 = vmatpush2.bf16.msra.mxu0 0
        %1154 = vmatprep.mubr.bf16.mxu0 0
        %1155 = vmatmul.mubr.bf16.gmra.mxu0 %v1120
        %v1156 = vpop.f32.mrf.mxu0
        %v1157 = vadd.f32 %v1105, %v1156
        %v1158 = vpop.f32.mrf.mxu0
        %v1159 = vpop.f32.mrf.mxu0
        %v1160 = vpop.f32.mrf.mxu0
        %1161 = vdwg.mxu0
        %v1162 = vmul.f32 %v1157, 1.702
        %v1163 = vxor.u32 %v1162, 2147483648
        %v1164 = vmul.f32 %v1163, 1.442695
        %v1165 = vpow.pop %v1164
        %v1166 = vadd.f32 %v1165, 1.0
        %v1167 = vrcp.pop %v1166
        %v1168 = vmul.f32 1.0, %v1167
        %v1169 = vmul.f32 %v1157, %v1168
        %v1170 = vpack.c.bf16 %v1169, %v1169
        %v1171 = vld [vmem:[%s11] sm:$0xf]
        %v1172 = vld [vmem:[%s11 + $0x4] sm:$0xf]
        %v1173 = vld [vmem:[%s11 + $0x8] sm:$0xf]
        %v1174 = vld [vmem:[%s11 + $0xc] sm:$0xf]
        %v1175 = vld [vmem:[%s11 + $0x10] sm:$0xf]
        %v1176 = vld [vmem:[%s11 + $0x14] sm:$0xf]
        %v1177 = vld [vmem:[%s11 + $0x18] sm:$0xf]
        %v1178 = vld [vmem:[%s11 + $0x1c] sm:$0xf]
        %v1179 = vld [vmem:[%s11 + $0x20] sm:$0xf]
        %v1180 = vld [vmem:[%s11 + $0x24] sm:$0xf]
        %v1181 = vld [vmem:[%s11 + $0x28] sm:$0xf]
        %v1182 = vld [vmem:[%s11 + $0x2c] sm:$0xf]
        %v1183 = vld [vmem:[%s11 + $0x30] sm:$0xf]
        %v1184 = vld [vmem:[%s11 + $0x34] sm:$0xf]
        %v1185 = vld [vmem:[%s11 + $0x38] sm:$0xf]
        %v1186 = vld [vmem:[%s11 + $0x3c] sm:$0xf]
        %v1187 = vld [vmem:[%s12] sm:$0x1]
        %v1189 = vlaneseq
        %v1190 = vshrl.u32 %v1189, 7
        %v1191 = vsub.s32 0, %v1190
        %v1192 = vrot.slane %v1187, %v1191
        %v1210 = vunpack.c.l.b16 %v1171
        %v1211 = vunpack.c.l.b16 %v1172
        %v1212 = vunpack.c.l.b16 %v1173
        %v1213 = vunpack.c.l.b16 %v1174
        %v1214 = vunpack.c.l.b16 %v1175
        %v1215 = vunpack.c.l.b16 %v1176
        %v1216 = vunpack.c.l.b16 %v1177
        %v1217 = vunpack.c.l.b16 %v1178
        %v1218 = vunpack.c.l.b16 %v1179
        %v1219 = vunpack.c.l.b16 %v1180
        %v1220 = vunpack.c.l.b16 %v1181
        %v1221 = vunpack.c.l.b16 %v1182
        %v1222 = vunpack.c.l.b16 %v1183
        %v1223 = vunpack.c.l.b16 %v1184
        %v1224 = vunpack.c.l.b16 %v1185
        %v1225 = vunpack.c.l.b16 %v1186
        %v1226 = vpack.c.b16 %v1211, %v1210
        %v1227 = vpack.c.b16 %v1213, %v1212
        %v1228 = vpack.c.b16 %v1215, %v1214
        %v1229 = vpack.c.b16 %v1217, %v1216
        %v1230 = vpack.c.b16 %v1219, %v1218
        %v1231 = vpack.c.b16 %v1221, %v1220
        %v1232 = vpack.c.b16 %v1223, %v1222
        %v1233 = vpack.c.b16 %v1225, %v1224
        %1242 = vmatprep.subr.bf16.mxu0 0
        %1243 = vmatpush1.bf16.msra.mxu0 %v1233
        %1244 = vmatprep.subr.bf16.mxu0 0
        %1245 = vmatpush1.bf16.msra.mxu0 %v1232
        %1246 = vmatprep.subr.bf16.mxu0 0
        %1247 = vmatpush1.bf16.msra.mxu0 %v1231
        %1248 = vmatprep.subr.bf16.mxu0 0
        %1249 = vmatpush1.bf16.msra.mxu0 %v1230
        %1250 = vmatprep.subr.bf16.mxu0 0
        %1251 = vmatpush1.bf16.msra.mxu0 %v1229
        %1252 = vmatprep.subr.bf16.mxu0 0
        %1253 = vmatpush1.bf16.msra.mxu0 %v1228
        %1254 = vmatprep.subr.bf16.mxu0 0
        %1255 = vmatpush1.bf16.msra.mxu0 %v1227
        %1256 = vmatprep.subr.bf16.mxu0 0
        %1257 = vmatpush1.bf16.msra.mxu0 %v1226
        %1258 = vmatprep.subr.bf16.mxu0 0
        %1259 = vmatpush2.bf16.msra.mxu0 0
        %1260 = vmatprep.subr.bf16.mxu0 0
        %1261 = vmatpush2.bf16.msra.mxu0 0
        %1262 = vmatprep.subr.bf16.mxu0 0
        %1263 = vmatpush2.bf16.msra.mxu0 0
        %1264 = vmatprep.subr.bf16.mxu0 0
        %1265 = vmatpush2.bf16.msra.mxu0 0
        %1266 = vmatprep.subr.bf16.mxu0 0
        %1267 = vmatpush2.bf16.msra.mxu0 0
        %1268 = vmatprep.subr.bf16.mxu0 0
        %1269 = vmatpush2.bf16.msra.mxu0 0
        %1270 = vmatprep.subr.bf16.mxu0 0
        %1271 = vmatpush2.bf16.msra.mxu0 0
        %1272 = vmatprep.subr.bf16.mxu0 0
        %1273 = vmatpush2.bf16.msra.mxu0 0
        %1274 = vmatprep.mubr.bf16.mxu0 0
        %1275 = vmatmul.mubr.bf16.gmra.mxu0 %v1170
        %v1276 = vpop.f32.mrf.mxu0
        %v1277 = vadd.f32 %v1192, %v1276
        %v1278 = vpop.f32.mrf.mxu0
        %v1279 = vpop.f32.mrf.mxu0
        %v1280 = vpop.f32.mrf.mxu0
        %1281 = vdwg.mxu0
        %v1282 = vadd.f32 %v1065, %v1277
        %1283 = vst.msk [vmem:[%s431] sm:$0xff] %vm440, %v1282
        %s1284 = sand.u32 %s313, 1
        %s1285 = scalar_lea.sflag [#allocation4], %s1284
        %s1286 = sand.u32 %s313, 1
        %s1287 = smul.addr %s1286, 8
        %s1288 = scalar_lea.vmem [#allocation3], %s1287
        // Predicated region
        $region73: #{tpu_custom_call.1} parent=71 // pred_check
          %p1289 = pneg %p323
        $region74: #{tpu_custom_call.1} parent=71 // pred_check_branch
          %1291 = sbr.rel (%p1289) target = $region76
        $region75: #{tpu_custom_call.1} parent=71 // pred_region
          %s1293 = ssub.s32 128, 128
          %1294 = vsyncadd %s1285, %s1293
          %s1295 = smul.addr %s27, 128
          %s1296 = scalar_lea.hbm %s13, %s1295
          %s1298 = sshll.u32 %s1288, 4
          %s1299 = int_to_ptr.vmem [resolvable:$true] %s1298
          %1301 = dma.vmem_to_hbm [thread:$0]  %s1299, 128, %s1296, %s1285
        $region76: #{tpu_custom_call.1} parent=71 // pred_fallthru
          _
      $region72: #{tpu_custom_call.1} parent=5 // pred_fallthru
        _
      %p1302 = scmp.le.s32.totalorder 2, %s22
      // Predicated region
      $region77: #{tpu_custom_call.1} parent=5 // pred_check
        %p1303 = pneg %p1302
      $region78: #{tpu_custom_call.1} parent=5 // pred_check_branch
        %1305 = sbr.rel (%p1303) target = $region80
      $region79: #{tpu_custom_call.1} parent=5 // pred_region
        %s1306 = ssub.s32 %s22, 2
        // Predicated region
        $region81: #{tpu_custom_call.1} parent=79 // pred_check
          %p1307 = pneg %p329
        $region82: #{tpu_custom_call.1} parent=79 // pred_check_branch
          %1309 = sbr.rel (%p1307) target = $region84
        $region83: #{tpu_custom_call.1} parent=79 // pred_region
          %s1310 = sand.u32 %s314, 1
          %s1311 = scalar_lea.sflag [#allocation4], %s1310
          %s1312 = sand.u32 %s314, 1
          %s1313 = smul.addr %s1312, 8
          %s1314 = scalar_lea.vmem [#allocation3], %s1313
          %1315 = dma.done %s1311, 128
        $region84: #{tpu_custom_call.1} parent=79 // pred_fallthru
          _
      $region80: #{tpu_custom_call.1} parent=5 // pred_fallthru
        _
    $region6: #{tpu_custom_call.1} parent=1 // loop_footer
      %s26 = sadd.s32 1, %s22
    $region7: #{tpu_custom_call.1} parent=1 // loop_footer_branch
      %21 = sbr.rel target = $region3
    $region8: #{tpu_custom_call.1} parent=1 // loop_exit
      _
    %1316 = vsyncpa [#allocation4], 1
    %s1317 = scalar_lea.sflag [#allocation4], 1
    %1318 = vsyncpa %s1317, 1

</llo_original>
